<compile_context>
chip_gen: v5e
topology: v5e:2x2
jax: 0.10.0
libtpu: 0.0.40
codegen_flags: <defaults>
</compile_context>

<pallas_src>
import jax
import jax.numpy as jnp
from jax.experimental import pallas as pl
from jax.experimental.pallas import tpu as pltpu


def _layer_norm(x, gamma, beta, eps=1e-5):
    mu = jnp.mean(x, axis=-1, keepdims=True)
    var = jnp.mean((x - mu) ** 2, axis=-1, keepdims=True)
    return (x - mu) * jax.lax.rsqrt(var + eps) * gamma + beta


def _make_kernel(num_heads, need_weights, average_heads):
    def kernel(src_ref, q_ref, k_ref, v_ref,
               wo_ref, bo_ref, w1_ref, b1_ref, w2_ref, b2_ref,
               g1_ref, be1_ref, g2_ref, be2_ref,
               out_ref, *attnw_refs):
        xs = src_ref[0]                      # (TQ, D)  f32 residual rows
        q = q_ref[0]                         # (H, TQ, hd)  (1/sqrt(hd) already folded in)
        k = k_ref[0]                         # (H, L, hd)
        v = v_ref[0]                         # (H, L, hd)

        # ---- head-batched scaled-dot-product attention (scores / softmax in f32) ----
        s = jnp.einsum('hqe,hke->hqk', q, k, preferred_element_type=jnp.float32)
        s = s - jnp.max(s, axis=-1, keepdims=True)
        p = jnp.exp(s)
        inv = pl.reciprocal(jnp.sum(p, axis=-1, keepdims=True))   # exact recip (EUP) + vmul
        p = p * inv

        if need_weights:
            aw_ref = attnw_refs[0]
            if average_heads:
                acc = p[0]
                for h in range(1, num_heads):
                    acc = acc + p[h]
                aw_ref[0] = acc * (1.0 / num_heads)
            else:
                aw_ref[0] = p                                     # per-head weights (f32)

        ctx = jnp.einsum('hqk,hke->hqe', p.astype(v.dtype), v,
                         preferred_element_type=jnp.float32)      # (H, TQ, hd) f32

        # ---- out-projection: per-head dots chained into ONE f32 (TQ, D) accumulator ----
        attn_out = None
        for h in range(num_heads):
            wo_h = wo_ref[h]                                      # (hd, D)
            c = jnp.dot(ctx[h].astype(wo_h.dtype), wo_h,
                        preferred_element_type=jnp.float32)
            attn_out = c if attn_out is None else attn_out + c
        attn_out = attn_out + bo_ref[...]

        # ---- residual + LayerNorm 1 (dropout1 = identity in eval) ----
        x1 = xs + attn_out
        x1n = _layer_norm(x1, g1_ref[...], be1_ref[...])

        # ---- FFN: linear1 -> relu -> (dropout = identity) -> linear2 ----
        w1 = w1_ref[...]
        h1 = jnp.maximum(
            jnp.dot(x1n.astype(w1.dtype), w1, preferred_element_type=jnp.float32)
            + b1_ref[...], 0.0)
        w2 = w2_ref[...]
        y = jnp.dot(h1.astype(w2.dtype), w2, preferred_element_type=jnp.float32) + b2_ref[...]

        # ---- residual + LayerNorm 2 (dropout2 = identity in eval) ----
        out_ref[0] = _layer_norm(x1n + y, g2_ref[...], be2_ref[...]).astype(out_ref.dtype)

    return kernel


def prepare_params(tp, nhead, matmul_dtype=jnp.bfloat16):
    """PyTorch-layout parameters -> kernel-friendly layouts (matmul operands in matmul_dtype)."""
    D = tp["out_proj_weight"].shape[0]
    hd = D // nhead
    scale = 1.0 / float(hd) ** 0.5
    W = tp["in_proj_weight"]              # (3D, D): rows = output features [q; k; v]
    b = tp["in_proj_bias"]                # (3D,)
    f32 = jnp.float32
    # one packed (D, 3D) in-projection matrix; 1/sqrt(hd) folded into the Q columns/bias.
    w_in = jnp.concatenate([W[:D].T * scale, W[D:2 * D].T, W[2 * D:].T], axis=1)
    b_in = jnp.concatenate([b[:D] * scale, b[D:2 * D], b[2 * D:]])
    return {
        "w_in": w_in.astype(matmul_dtype), "b_in": b_in.astype(f32),
        "wo": tp["out_proj_weight"].T.reshape(nhead, hd, D).astype(matmul_dtype),
        "bo": tp["out_proj_bias"].reshape(1, D).astype(f32),
        "w1": tp["linear1_weight"].T.astype(matmul_dtype),
        "b1": tp["linear1_bias"].reshape(1, -1).astype(f32),
        "w2": tp["linear2_weight"].T.astype(matmul_dtype),
        "b2": tp["linear2_bias"].reshape(1, -1).astype(f32),
        "g1": tp["norm1_weight"].reshape(1, D).astype(f32),
        "be1": tp["norm1_bias"].reshape(1, D).astype(f32),
        "g2": tp["norm2_weight"].reshape(1, D).astype(f32),
        "be2": tp["norm2_bias"].reshape(1, D).astype(f32),
    }


def _vmem_budget():
    try:
        cap = int(pltpu.get_tpu_info().vmem_capacity_bytes)
    except Exception:
        cap = 64 * 1024 * 1024            # conservative (v7x-sized) fallback
    return cap, int(min(0.85 * cap, 100 * 1024 * 1024))


def _pick_tq(L, cap_rows):
    if L <= cap_rows:
        return L
    t = (cap_rows // 8) * 8
    while t >= 8:                         # tq must divide L and be a multiple of 8 (sublane)
        if L % t == 0:
            return t
        t -= 8
    # TODO(synk): pad L (with key masking) instead of a single full-L tile for ragged L.
    return L


def transformer_encoder_layer(src, kp, nhead, *, tq=None, need_weights=True,
                              average_attn_weights=False):
    B, L, D = src.shape
    H = nhead
    hd = D // H
    mm_dtype = kp["w_in"].dtype
    dff = kp["w1"].shape[1]

    # ---- in-projection: ONE lane-dense (B*L, D)@(D, 3D) matmul, done once (not per q tile);
    #      heads are split here so the kernel never relayouts packed lanes. ----
    qkv = jnp.einsum('bld,de->ble', src.astype(mm_dtype), kp["w_in"],
                     preferred_element_type=jnp.float32,
                     precision=jax.lax.Precision.HIGHEST) + kp["b_in"]
    q, k, v = jnp.split(qkv, 3, axis=-1)
    to_heads = lambda t: t.reshape(B, L, H, hd).transpose(0, 2, 1, 3).astype(mm_dtype)
    q, k, v = to_heads(q), to_heads(k), to_heads(v)

    vmem_cap, vmem_limit = _vmem_budget()
    if tq is None:
        cap_rows = 256 if vmem_cap > 80 * 1024 * 1024 else 128   # v5e/v6e (128MiB) vs v7x (64MiB)
        if B == 1 and L >= 16:
            cap_rows = min(cap_rows, max(8, L // 2))             # keep >=2 steps for v7x's 2 TCs
        tq = _pick_tq(L, cap_rows)
    assert L % tq == 0 and (tq % 8 == 0 or tq == L)
    nq = L // tq

    c2 = lambda b, qi: (0, 0)
    c3 = lambda b, qi: (0, 0, 0)

    # TODO(synk): tile dff over a reduction grid axis when D*dff weights exceed ~16 MiB (v7x).
    in_specs = [
        pl.BlockSpec((1, tq, D), lambda b, qi: (b, qi, 0)),         # src rows (residual)
        pl.BlockSpec((1, H, tq, hd), lambda b, qi: (b, 0, qi, 0)),  # q tile (scale folded)
        pl.BlockSpec((1, H, L, hd), lambda b, qi: (b, 0, 0, 0)),    # k (constant over q axis)
        pl.BlockSpec((1, H, L, hd), lambda b, qi: (b, 0, 0, 0)),    # v (constant over q axis)
        pl.BlockSpec((H, hd, D), c3),                               # wo (head-major)
        pl.BlockSpec((1, D), c2),                                   # bo
        pl.BlockSpec((D, dff), c2),                                 # w1
        pl.BlockSpec((1, dff), c2),                                 # b1
        pl.BlockSpec((dff, D), c2),                                 # w2
        pl.BlockSpec((1, D), c2),                                   # b2
        pl.BlockSpec((1, D), c2), pl.BlockSpec((1, D), c2),         # ln1 gamma / beta
        pl.BlockSpec((1, D), c2), pl.BlockSpec((1, D), c2),         # ln2 gamma / beta
    ]
    out_specs = [pl.BlockSpec((1, tq, D), lambda b, qi: (b, qi, 0))]
    out_shape = [jax.ShapeDtypeStruct((B, L, D), jnp.float32)]
    if need_weights:
        if average_attn_weights:
            out_specs.append(pl.BlockSpec((1, tq, L), lambda b, qi: (b, qi, 0)))
            out_shape.append(jax.ShapeDtypeStruct((B, L, L), jnp.float32))
        else:
            out_specs.append(pl.BlockSpec((1, H, tq, L), lambda b, qi: (b, 0, qi, 0)))
            out_shape.append(jax.ShapeDtypeStruct((B, H, L, L), jnp.float32))

    results = pl.pallas_call(
        _make_kernel(H, need_weights, average_attn_weights),
        out_shape=tuple(out_shape),
        grid_spec=pltpu.PrefetchScalarGridSpec(
            num_scalar_prefetch=0,
            grid=(B, nq),
            in_specs=in_specs,
            out_specs=tuple(out_specs)),
        compiler_params=pltpu.CompilerParams(
            dimension_semantics=("parallel", "parallel"),
            vmem_limit_bytes=vmem_limit),
    )(src.astype(jnp.float32), q, k, v,
      kp["wo"], kp["bo"], kp["w1"], kp["b1"], kp["w2"], kp["b2"],
      kp["g1"], kp["be1"], kp["g2"], kp["be2"])

    if need_weights:
        out, attnw = results
        return out, attnw
    (out,) = results
    return out, None


# ---------------- pure-JAX reference (mirrors PyTorch eval-mode semantics) ----------------
def _ref_forward(src, tp, nhead):
    B, L, D = src.shape
    hd = D // nhead
    qkv = src @ tp["in_proj_weight"].T + tp["in_proj_bias"]
    q, k, v = jnp.split(qkv, 3, axis=-1)
    sh = lambda t: t.reshape(B, L, nhead, hd).transpose(0, 2, 1, 3)
    qh, kh, vh = sh(q), sh(k), sh(v)
    s = jnp.einsum("bhqd,bhkd->bhqk", qh / jnp.sqrt(float(hd)), kh)
    w = jax.nn.softmax(s, axis=-1)
    ctx = jnp.einsum("bhqk,bhkd->bhqd", w, vh).transpose(0, 2, 1, 3).reshape(B, L, D)
    attn_out = ctx @ tp["out_proj_weight"].T + tp["out_proj_bias"]
    x1 = src + attn_out
    x1n = _layer_norm(x1, tp["norm1_weight"], tp["norm1_bias"])
    h1 = jax.nn.relu(x1n @ tp["linear1_weight"].T + tp["linear1_bias"])
    y = h1 @ tp["linear2_weight"].T + tp["linear2_bias"]
    return _layer_norm(x1n + y, tp["norm2_weight"], tp["norm2_bias"]), w


if __name__ == "__main__":
    # Make the pure-JAX reference (and wrapper) use true-f32 matmuls so the f32-mode kernel
    # can be checked at tight tolerance (TPU's default matmul precision truncates f32 dots).
    jax.config.update("jax_default_matmul_precision", "highest")

    B, L, D, H, DFF = 2, 8, 32, 4, 64

    key = jax.random.PRNGKey(0)
    ks = jax.random.split(key, 13)

    # Deterministic synthetic parameters in PyTorch layout
    # (nn.MultiheadAttention / nn.Linear / nn.LayerNorm shapes).
    tp = {
        "in_proj_weight":  0.1 * jax.random.normal(ks[0], (3 * D, D), jnp.float32),
        "in_proj_bias":    0.1 * jax.random.normal(ks[1], (3 * D,), jnp.float32),
        "out_proj_weight": 0.1 * jax.random.normal(ks[2], (D, D), jnp.float32),
        "out_proj_bias":   0.1 * jax.random.normal(ks[3], (D,), jnp.float32),
        "linear1_weight":  0.1 * jax.random.normal(ks[4], (DFF, D), jnp.float32),
        "linear1_bias":    0.1 * jax.random.normal(ks[5], (DFF,), jnp.float32),
        "linear2_weight":  0.1 * jax.random.normal(ks[6], (D, DFF), jnp.float32),
        "linear2_bias":    0.1 * jax.random.normal(ks[7], (D,), jnp.float32),
        "norm1_weight": 1.0 + 0.1 * jax.random.normal(ks[8], (D,), jnp.float32),
        "norm1_bias":   0.1 * jax.random.normal(ks[9], (D,), jnp.float32),
        "norm2_weight": 1.0 + 0.1 * jax.random.normal(ks[10], (D,), jnp.float32),
        "norm2_bias":   0.1 * jax.random.normal(ks[11], (D,), jnp.float32),
    }
    src = jax.random.normal(ks[12], (B, L, D), jnp.float32)

    # TODO(synk): dropout layers are stochastic in train mode; implemented as identity (eval).
    # TODO(synk): attn_mask / src_key_padding_mask not implemented (module defaults are None).
    ref_out, ref_w = _ref_forward(src, tp, H)

    # 1) exact-semantics mode: f32 matmul operands, tight tolerance.
    kp32 = prepare_params(tp, H, matmul_dtype=jnp.float32)
    out32, w32 = transformer_encoder_layer(src, kp32, H)
    jax.block_until_ready((out32, w32))
    assert out32.shape == (B, L, D) and w32.shape == (B, H, L, L)
    assert jnp.allclose(out32, ref_out, atol=2e-4, rtol=2e-4)
    assert jnp.allclose(w32, ref_w, atol=2e-4, rtol=2e-4)

    # 2) fast path (default): bf16 matmul operands, f32 accumulation / softmax / LayerNorm.
    kp16 = prepare_params(tp, H)
    out16, w16 = transformer_encoder_layer(src, kp16, H)
    jax.block_until_ready((out16, w16))
    assert jnp.allclose(out16, ref_out, atol=5e-2, rtol=5e-2)
    assert jnp.allclose(w16, ref_w, atol=1e-2, rtol=1e-2)

    # 3) perf config from the review: skip the (B,H,L,L) attention-weights HBM store entirely.
    out_nw, w_nw = transformer_encoder_layer(src, kp16, H, need_weights=False)
    jax.block_until_ready(out_nw)
    assert w_nw is None
    assert jnp.allclose(out_nw, ref_out, atol=5e-2, rtol=5e-2)

    print("KERNEL_OK")
</pallas_src>

<mosaic_0001>
module attributes {stable_mosaic.version = 11 : i64} {
  func.func @kernel(%arg0: i32, %arg1: i32, %arg2: memref<1x8x32xf32, #tpu.memory_space<vmem>>, %arg3: memref<1x4x8x8xf32, #tpu.memory_space<vmem>>, %arg4: memref<1x4x8x8xf32, #tpu.memory_space<vmem>>, %arg5: memref<1x4x8x8xf32, #tpu.memory_space<vmem>>, %arg6: memref<4x8x32xf32, #tpu.memory_space<vmem>>, %arg7: memref<1x32xf32, #tpu.memory_space<vmem>>, %arg8: memref<32x64xf32, #tpu.memory_space<vmem>>, %arg9: memref<1x64xf32, #tpu.memory_space<vmem>>, %arg10: memref<64x32xf32, #tpu.memory_space<vmem>>, %arg11: memref<1x32xf32, #tpu.memory_space<vmem>>, %arg12: memref<1x32xf32, #tpu.memory_space<vmem>>, %arg13: memref<1x32xf32, #tpu.memory_space<vmem>>, %arg14: memref<1x32xf32, #tpu.memory_space<vmem>>, %arg15: memref<1x32xf32, #tpu.memory_space<vmem>>, %arg16: memref<1x8x32xf32, #tpu.memory_space<vmem>>, %arg17: memref<1x4x8x8xf32, #tpu.memory_space<vmem>>) attributes {dimension_semantics = [#tpu.dimension_semantics<parallel>, #tpu.dimension_semantics<parallel>], iteration_bounds = array<i64: 2, 1>, scalar_prefetch = 0 : i64, scratch_operands = 0 : i64, tpu.core_type = #tpu.core_type<tc>, window_params = [{transform_indices = @transform_0, window_bounds = array<i64: 1, 8, 32>}, {transform_indices = @transform_1, window_bounds = array<i64: 1, 4, 8, 8>}, {transform_indices = @transform_2, window_bounds = array<i64: 1, 4, 8, 8>}, {transform_indices = @transform_3, window_bounds = array<i64: 1, 4, 8, 8>}, {pipeline_mode = #tpu.pipeline_mode<synchronous>, transform_indices = @transform_4, window_bounds = array<i64: 4, 8, 32>}, {pipeline_mode = #tpu.pipeline_mode<synchronous>, transform_indices = @transform_5, window_bounds = array<i64: 1, 32>}, {pipeline_mode = #tpu.pipeline_mode<synchronous>, transform_indices = @transform_6, window_bounds = array<i64: 32, 64>}, {pipeline_mode = #tpu.pipeline_mode<synchronous>, transform_indices = @transform_7, window_bounds = array<i64: 1, 64>}, {pipeline_mode = #tpu.pipeline_mode<synchronous>, transform_indices = @transform_8, window_bounds = array<i64: 64, 32>}, {pipeline_mode = #tpu.pipeline_mode<synchronous>, transform_indices = @transform_9, window_bounds = array<i64: 1, 32>}, {pipeline_mode = #tpu.pipeline_mode<synchronous>, transform_indices = @transform_10, window_bounds = array<i64: 1, 32>}, {pipeline_mode = #tpu.pipeline_mode<synchronous>, transform_indices = @transform_11, window_bounds = array<i64: 1, 32>}, {pipeline_mode = #tpu.pipeline_mode<synchronous>, transform_indices = @transform_12, window_bounds = array<i64: 1, 32>}, {pipeline_mode = #tpu.pipeline_mode<synchronous>, transform_indices = @transform_13, window_bounds = array<i64: 1, 32>}, {transform_indices = @transform_14, window_bounds = array<i64: 1, 8, 32>}, {transform_indices = @transform_15, window_bounds = array<i64: 1, 4, 8, 8>}]} {
    %c0 = arith.constant 0 : index
    %c0_0 = arith.constant 0 : index
    %c0_1 = arith.constant 0 : index
    %0 = vector.load %arg2[%c0, %c0_0, %c0_1] : memref<1x8x32xf32, #tpu.memory_space<vmem>>, vector<1x8x32xf32>
    %1 = vector.shape_cast %0 : vector<1x8x32xf32> to vector<8x32xf32>
    %c0_2 = arith.constant 0 : index
    %c0_3 = arith.constant 0 : index
    %c0_4 = arith.constant 0 : index
    %c0_5 = arith.constant 0 : index
    %2 = vector.load %arg3[%c0_2, %c0_3, %c0_4, %c0_5] : memref<1x4x8x8xf32, #tpu.memory_space<vmem>>, vector<1x4x8x8xf32>
    %3 = vector.shape_cast %2 : vector<1x4x8x8xf32> to vector<4x8x8xf32>
    %c0_6 = arith.constant 0 : index
    %c0_7 = arith.constant 0 : index
    %c0_8 = arith.constant 0 : index
    %c0_9 = arith.constant 0 : index
    %4 = vector.load %arg4[%c0_6, %c0_7, %c0_8, %c0_9] : memref<1x4x8x8xf32, #tpu.memory_space<vmem>>, vector<1x4x8x8xf32>
    %5 = vector.shape_cast %4 : vector<1x4x8x8xf32> to vector<4x8x8xf32>
    %c0_10 = arith.constant 0 : index
    %c0_11 = arith.constant 0 : index
    %c0_12 = arith.constant 0 : index
    %c0_13 = arith.constant 0 : index
    %6 = vector.load %arg5[%c0_10, %c0_11, %c0_12, %c0_13] : memref<1x4x8x8xf32, #tpu.memory_space<vmem>>, vector<1x4x8x8xf32>
    %7 = vector.shape_cast %6 : vector<1x4x8x8xf32> to vector<4x8x8xf32>
    "tpu.trace_start"() <{level = 10 : i32, message = "hqe,hke->hqk"}> : () -> ()
    %cst = arith.constant dense<0.000000e+00> : vector<4x8x8xf32>
    %8 = tpu.matmul %3, %5, %cst {dimension_numbers = #tpu.dot_dimension_numbers<[2], [2], [1], [1], [0, 0, 0, 1, 1, 1], [0], [0]>, precision = #tpu.contract_precision<fp32>} : vector<4x8x8xf32>, vector<4x8x8xf32>, vector<4x8x8xf32> -> vector<4x8x8xf32>
    "tpu.trace_stop"() : () -> ()
    %cst_14 = arith.constant dense<0xFF800000> : vector<4x8xf32>
    %9 = vector.multi_reduction <maximumf>, %8, %cst_14 [2] : vector<4x8x8xf32> to vector<4x8xf32>
    %10 = vector.shape_cast %9 : vector<4x8xf32> to vector<4x8x1xf32>
    %11 = vector.broadcast %10 : vector<4x8x1xf32> to vector<4x8x8xf32>
    %12 = arith.subf %8, %11 : vector<4x8x8xf32>
    %13 = math.exp %12 : vector<4x8x8xf32>
    %cst_15 = arith.constant dense<0.000000e+00> : vector<4x8xf32>
    %14 = vector.multi_reduction <add>, %13, %cst_15 [2] : vector<4x8x8xf32> to vector<4x8xf32>
    %15 = vector.shape_cast %14 : vector<4x8xf32> to vector<4x8x1xf32>
    %16 = tpu.reciprocal %15 : vector<4x8x1xf32> -> vector<4x8x1xf32>
    %17 = vector.broadcast %16 : vector<4x8x1xf32> to vector<4x8x8xf32>
    %18 = arith.mulf %13, %17 : vector<4x8x8xf32>
    %c0_16 = arith.constant 0 : index
    %c0_17 = arith.constant 0 : index
    %c0_18 = arith.constant 0 : index
    %c0_19 = arith.constant 0 : index
    %19 = vector.load %arg17[%c0_16, %c0_17, %c0_18, %c0_19] : memref<1x4x8x8xf32, #tpu.memory_space<vmem>>, vector<1x4x8x8xf32>
    %20 = vector.shape_cast %19 : vector<1x4x8x8xf32> to vector<4x8x8xf32>
    %21 = vector.shape_cast %18 : vector<4x8x8xf32> to vector<1x4x8x8xf32>
    tpu.vector_store %arg17[%c0_16, %c0_17, %c0_18, %c0_19], %21 {strides = array<i32>} : memref<1x4x8x8xf32, #tpu.memory_space<vmem>>, vector<1x4x8x8xf32>,
    "tpu.trace_start"() <{level = 10 : i32, message = "hqk,hke->hqe"}> : () -> ()
    %cst_20 = arith.constant dense<0.000000e+00> : vector<4x8x8xf32>
    %22 = tpu.matmul %18, %7, %cst_20 {dimension_numbers = #tpu.dot_dimension_numbers<[2], [1], [1], [2], [0, 0, 0, 1, 1, 2], [0], [0]>, precision = #tpu.contract_precision<fp32>} : vector<4x8x8xf32>, vector<4x8x8xf32>, vector<4x8x8xf32> -> vector<4x8x8xf32>
    "tpu.trace_stop"() : () -> ()
    %c0_21 = arith.constant 0 : index
    %c0_22 = arith.constant 0 : index
    %c0_23 = arith.constant 0 : index
    %23 = vector.load %arg6[%c0_21, %c0_22, %c0_23] : memref<4x8x32xf32, #tpu.memory_space<vmem>>, vector<1x8x32xf32>
    %24 = vector.shape_cast %23 : vector<1x8x32xf32> to vector<8x32xf32>
    %25 = vector.extract_strided_slice %22 {offsets = [0, 0, 0], sizes = [1, 8, 8], strides = [1, 1, 1]} : vector<4x8x8xf32> to vector<1x8x8xf32>
    %26 = vector.shape_cast %25 : vector<1x8x8xf32> to vector<8x8xf32>
    %cst_24 = arith.constant dense<0.000000e+00> : vector<8x32xf32>
    %27 = tpu.matmul %26, %24, %cst_24 {dimension_numbers = #tpu.dot_dimension_numbers<[1], [0], [0], [1], [0, 0, 1, 1], [], []>, precision = #tpu.contract_precision<fp32>} : vector<8x8xf32>, vector<8x32xf32>, vector<8x32xf32> -> vector<8x32xf32>
    %c1 = arith.constant 1 : index
    %c0_25 = arith.constant 0 : index
    %c0_26 = arith.constant 0 : index
    %28 = vector.load %arg6[%c1, %c0_25, %c0_26] : memref<4x8x32xf32, #tpu.memory_space<vmem>>, vector<1x8x32xf32>
    %29 = vector.shape_cast %28 : vector<1x8x32xf32> to vector<8x32xf32>
    %30 = vector.extract_strided_slice %22 {offsets = [1, 0, 0], sizes = [1, 8, 8], strides = [1, 1, 1]} : vector<4x8x8xf32> to vector<1x8x8xf32>
    %31 = vector.shape_cast %30 : vector<1x8x8xf32> to vector<8x8xf32>
    %cst_27 = arith.constant dense<0.000000e+00> : vector<8x32xf32>
    %32 = tpu.matmul %31, %29, %cst_27 {dimension_numbers = #tpu.dot_dimension_numbers<[1], [0], [0], [1], [0, 0, 1, 1], [], []>, precision = #tpu.contract_precision<fp32>} : vector<8x8xf32>, vector<8x32xf32>, vector<8x32xf32> -> vector<8x32xf32>
    %33 = arith.addf %27, %32 : vector<8x32xf32>
    %c2 = arith.constant 2 : index
    %c0_28 = arith.constant 0 : index
    %c0_29 = arith.constant 0 : index
    %34 = vector.load %arg6[%c2, %c0_28, %c0_29] : memref<4x8x32xf32, #tpu.memory_space<vmem>>, vector<1x8x32xf32>
    %35 = vector.shape_cast %34 : vector<1x8x32xf32> to vector<8x32xf32>
    %36 = vector.extract_strided_slice %22 {offsets = [2, 0, 0], sizes = [1, 8, 8], strides = [1, 1, 1]} : vector<4x8x8xf32> to vector<1x8x8xf32>
    %37 = vector.shape_cast %36 : vector<1x8x8xf32> to vector<8x8xf32>
    %cst_30 = arith.constant dense<0.000000e+00> : vector<8x32xf32>
    %38 = tpu.matmul %37, %35, %cst_30 {dimension_numbers = #tpu.dot_dimension_numbers<[1], [0], [0], [1], [0, 0, 1, 1], [], []>, precision = #tpu.contract_precision<fp32>} : vector<8x8xf32>, vector<8x32xf32>, vector<8x32xf32> -> vector<8x32xf32>
    %39 = arith.addf %33, %38 : vector<8x32xf32>
    %c3 = arith.constant 3 : index
    %c0_31 = arith.constant 0 : index
    %c0_32 = arith.constant 0 : index
    %40 = vector.load %arg6[%c3, %c0_31, %c0_32] : memref<4x8x32xf32, #tpu.memory_space<vmem>>, vector<1x8x32xf32>
    %41 = vector.shape_cast %40 : vector<1x8x32xf32> to vector<8x32xf32>
    %42 = vector.extract_strided_slice %22 {offsets = [3, 0, 0], sizes = [1, 8, 8], strides = [1, 1, 1]} : vector<4x8x8xf32> to vector<1x8x8xf32>
    %43 = vector.shape_cast %42 : vector<1x8x8xf32> to vector<8x8xf32>
    %cst_33 = arith.constant dense<0.000000e+00> : vector<8x32xf32>
    %44 = tpu.matmul %43, %41, %cst_33 {dimension_numbers = #tpu.dot_dimension_numbers<[1], [0], [0], [1], [0, 0, 1, 1], [], []>, precision = #tpu.contract_precision<fp32>} : vector<8x8xf32>, vector<8x32xf32>, vector<8x32xf32> -> vector<8x32xf32>
    %45 = arith.addf %39, %44 : vector<8x32xf32>
    %c0_34 = arith.constant 0 : index
    %c0_35 = arith.constant 0 : index
    %46 = vector.load %arg7[%c0_34, %c0_35] : memref<1x32xf32, #tpu.memory_space<vmem>>, vector<1x32xf32>
    %47 = vector.broadcast %46 : vector<1x32xf32> to vector<8x32xf32>
    %48 = arith.addf %45, %47 : vector<8x32xf32>
    %49 = arith.addf %1, %48 : vector<8x32xf32>
    %c0_36 = arith.constant 0 : index
    %c0_37 = arith.constant 0 : index
    %50 = vector.load %arg12[%c0_36, %c0_37] : memref<1x32xf32, #tpu.memory_space<vmem>>, vector<1x32xf32>
    %c0_38 = arith.constant 0 : index
    %c0_39 = arith.constant 0 : index
    %51 = vector.load %arg13[%c0_38, %c0_39] : memref<1x32xf32, #tpu.memory_space<vmem>>, vector<1x32xf32>
    %cst_40 = arith.constant dense<0.000000e+00> : vector<8xf32>
    %52 = vector.multi_reduction <add>, %49, %cst_40 [1] : vector<8x32xf32> to vector<8xf32>
    %53 = vector.shape_cast %52 : vector<8xf32> to vector<8x1xf32>
    %cst_41 = arith.constant 3.200000e+01 : f32
    %54 = vector.broadcast %cst_41 : f32 to vector<8x1xf32>
    %55 = arith.divf %53, %54 : vector<8x1xf32>
    %56 = vector.broadcast %55 : vector<8x1xf32> to vector<8x32xf32>
    %57 = arith.subf %49, %56 : vector<8x32xf32>
    %58 = arith.mulf %57, %57 : vector<8x32xf32>
    %cst_42 = arith.constant dense<0.000000e+00> : vector<8xf32>
    %59 = vector.multi_reduction <add>, %58, %cst_42 [1] : vector<8x32xf32> to vector<8xf32>
    %60 = vector.shape_cast %59 : vector<8xf32> to vector<8x1xf32>
    %cst_43 = arith.constant 3.200000e+01 : f32
    %61 = vector.broadcast %cst_43 : f32 to vector<8x1xf32>
    %62 = arith.divf %60, %61 : vector<8x1xf32>
    %63 = vector.broadcast %55 : vector<8x1xf32> to vector<8x32xf32>
    %64 = arith.subf %49, %63 : vector<8x32xf32>
    %cst_44 = arith.constant 9.99999974E-6 : f32
    %65 = vector.broadcast %cst_44 : f32 to vector<8x1xf32>
    %66 = arith.addf %62, %65 : vector<8x1xf32>
    %67 = math.rsqrt %66 : vector<8x1xf32>
    %68 = vector.broadcast %67 : vector<8x1xf32> to vector<8x32xf32>
    %69 = arith.mulf %64, %68 : vector<8x32xf32>
    %70 = vector.broadcast %50 : vector<1x32xf32> to vector<8x32xf32>
    %71 = arith.mulf %69, %70 : vector<8x32xf32>
    %72 = vector.broadcast %51 : vector<1x32xf32> to vector<8x32xf32>
    %73 = arith.addf %71, %72 : vector<8x32xf32>
    %c0_45 = arith.constant 0 : index
    %c0_46 = arith.constant 0 : index
    %74 = vector.load %arg8[%c0_45, %c0_46] : memref<32x64xf32, #tpu.memory_space<vmem>>, vector<32x64xf32>
    %cst_47 = arith.constant dense<0.000000e+00> : vector<8x64xf32>
    %75 = tpu.matmul %73, %74, %cst_47 {dimension_numbers = #tpu.dot_dimension_numbers<[1], [0], [0], [1], [0, 0, 1, 1], [], []>, precision = #tpu.contract_precision<fp32>} : vector<8x32xf32>, vector<32x64xf32>, vector<8x64xf32> -> vector<8x64xf32>
    %c0_48 = arith.constant 0 : index
    %c0_49 = arith.constant 0 : index
    %76 = vector.load %arg9[%c0_48, %c0_49] : memref<1x64xf32, #tpu.memory_space<vmem>>, vector<1x64xf32>
    %77 = vector.broadcast %76 : vector<1x64xf32> to vector<8x64xf32>
    %78 = arith.addf %75, %77 : vector<8x64xf32>
    %cst_50 = arith.constant 0.000000e+00 : f32
    %79 = vector.broadcast %cst_50 : f32 to vector<8x64xf32>
    %80 = arith.maximumf %78, %79 : vector<8x64xf32>
    %c0_51 = arith.constant 0 : index
    %c0_52 = arith.constant 0 : index
    %81 = vector.load %arg10[%c0_51, %c0_52] : memref<64x32xf32, #tpu.memory_space<vmem>>, vector<64x32xf32>
    %cst_53 = arith.constant dense<0.000000e+00> : vector<8x32xf32>
    %82 = tpu.matmul %80, %81, %cst_53 {dimension_numbers = #tpu.dot_dimension_numbers<[1], [0], [0], [1], [0, 0, 1, 1], [], []>, precision = #tpu.contract_precision<fp32>} : vector<8x64xf32>, vector<64x32xf32>, vector<8x32xf32> -> vector<8x32xf32>
    %c0_54 = arith.constant 0 : index
    %c0_55 = arith.constant 0 : index
    %83 = vector.load %arg11[%c0_54, %c0_55] : memref<1x32xf32, #tpu.memory_space<vmem>>, vector<1x32xf32>
    %84 = vector.broadcast %83 : vector<1x32xf32> to vector<8x32xf32>
    %85 = arith.addf %82, %84 : vector<8x32xf32>
    %86 = arith.addf %73, %85 : vector<8x32xf32>
    %c0_56 = arith.constant 0 : index
    %c0_57 = arith.constant 0 : index
    %87 = vector.load %arg14[%c0_56, %c0_57] : memref<1x32xf32, #tpu.memory_space<vmem>>, vector<1x32xf32>
    %c0_58 = arith.constant 0 : index
    %c0_59 = arith.constant 0 : index
    %88 = vector.load %arg15[%c0_58, %c0_59] : memref<1x32xf32, #tpu.memory_space<vmem>>, vector<1x32xf32>
    %cst_60 = arith.constant dense<0.000000e+00> : vector<8xf32>
    %89 = vector.multi_reduction <add>, %86, %cst_60 [1] : vector<8x32xf32> to vector<8xf32>
    %90 = vector.shape_cast %89 : vector<8xf32> to vector<8x1xf32>
    %cst_61 = arith.constant 3.200000e+01 : f32
    %91 = vector.broadcast %cst_61 : f32 to vector<8x1xf32>
    %92 = arith.divf %90, %91 : vector<8x1xf32>
    %93 = vector.broadcast %92 : vector<8x1xf32> to vector<8x32xf32>
    %94 = arith.subf %86, %93 : vector<8x32xf32>
    %95 = arith.mulf %94, %94 : vector<8x32xf32>
    %cst_62 = arith.constant dense<0.000000e+00> : vector<8xf32>
    %96 = vector.multi_reduction <add>, %95, %cst_62 [1] : vector<8x32xf32> to vector<8xf32>
    %97 = vector.shape_cast %96 : vector<8xf32> to vector<8x1xf32>
    %cst_63 = arith.constant 3.200000e+01 : f32
    %98 = vector.broadcast %cst_63 : f32 to vector<8x1xf32>
    %99 = arith.divf %97, %98 : vector<8x1xf32>
    %100 = vector.broadcast %92 : vector<8x1xf32> to vector<8x32xf32>
    %101 = arith.subf %86, %100 : vector<8x32xf32>
    %cst_64 = arith.constant 9.99999974E-6 : f32
    %102 = vector.broadcast %cst_64 : f32 to vector<8x1xf32>
    %103 = arith.addf %99, %102 : vector<8x1xf32>
    %104 = math.rsqrt %103 : vector<8x1xf32>
    %105 = vector.broadcast %104 : vector<8x1xf32> to vector<8x32xf32>
    %106 = arith.mulf %101, %105 : vector<8x32xf32>
    %107 = vector.broadcast %87 : vector<1x32xf32> to vector<8x32xf32>
    %108 = arith.mulf %106, %107 : vector<8x32xf32>
    %109 = vector.broadcast %88 : vector<1x32xf32> to vector<8x32xf32>
    %110 = arith.addf %108, %109 : vector<8x32xf32>
    %c0_65 = arith.constant 0 : index
    %c0_66 = arith.constant 0 : index
    %c0_67 = arith.constant 0 : index
    %111 = vector.load %arg16[%c0_65, %c0_66, %c0_67] : memref<1x8x32xf32, #tpu.memory_space<vmem>>, vector<1x8x32xf32>
    %112 = vector.shape_cast %111 : vector<1x8x32xf32> to vector<8x32xf32>
    %113 = vector.shape_cast %110 : vector<8x32xf32> to vector<1x8x32xf32>
    tpu.vector_store %arg16[%c0_65, %c0_66, %c0_67], %113 {strides = array<i32>} : memref<1x8x32xf32, #tpu.memory_space<vmem>>, vector<1x8x32xf32>,
    return
  }
  func.func @transform_0(%arg0: i32, %arg1: i32) -> (i32, i32, i32) {
    %c0_i32 = arith.constant 0 : i32
    %c0_i32_0 = arith.constant 0 : i32
    return %arg0, %arg1, %c0_i32 : i32, i32, i32
  }
  func.func @transform_1(%arg0: i32, %arg1: i32) -> (i32, i32, i32, i32) {
    %c0_i32 = arith.constant 0 : i32
    %c0_i32_0 = arith.constant 0 : i32
    %c0_i32_1 = arith.constant 0 : i32
    return %arg0, %c0_i32, %arg1, %c0_i32_0 : i32, i32, i32, i32
  }
  func.func @transform_2(%arg0: i32, %arg1: i32) -> (i32, i32, i32, i32) {
    %c0_i32 = arith.constant 0 : i32
    %c0_i32_0 = arith.constant 0 : i32
    %c0_i32_1 = arith.constant 0 : i32
    %c0_i32_2 = arith.constant 0 : i32
    return %arg0, %c0_i32, %c0_i32_0, %c0_i32_1 : i32, i32, i32, i32
  }
  func.func @transform_3(%arg0: i32, %arg1: i32) -> (i32, i32, i32, i32) {
    %c0_i32 = arith.constant 0 : i32
    %c0_i32_0 = arith.constant 0 : i32
    %c0_i32_1 = arith.constant 0 : i32
    %c0_i32_2 = arith.constant 0 : i32
    return %arg0, %c0_i32, %c0_i32_0, %c0_i32_1 : i32, i32, i32, i32
  }
  func.func @transform_4(%arg0: i32, %arg1: i32) -> (i32, i32, i32) {
    %c0_i32 = arith.constant 0 : i32
    %c0_i32_0 = arith.constant 0 : i32
    %c0_i32_1 = arith.constant 0 : i32
    %c0_i32_2 = arith.constant 0 : i32
    return %c0_i32, %c0_i32_0, %c0_i32_1 : i32, i32, i32
  }
  func.func @transform_5(%arg0: i32, %arg1: i32) -> (i32, i32) {
    %c0_i32 = arith.constant 0 : i32
    %c0_i32_0 = arith.constant 0 : i32
    %c0_i32_1 = arith.constant 0 : i32
    return %c0_i32, %c0_i32_0 : i32, i32
  }
  func.func @transform_6(%arg0: i32, %arg1: i32) -> (i32, i32) {
    %c0_i32 = arith.constant 0 : i32
    %c0_i32_0 = arith.constant 0 : i32
    %c0_i32_1 = arith.constant 0 : i32
    return %c0_i32, %c0_i32_0 : i32, i32
  }
  func.func @transform_7(%arg0: i32, %arg1: i32) -> (i32, i32) {
    %c0_i32 = arith.constant 0 : i32
    %c0_i32_0 = arith.constant 0 : i32
    %c0_i32_1 = arith.constant 0 : i32
    return %c0_i32, %c0_i32_0 : i32, i32
  }
  func.func @transform_8(%arg0: i32, %arg1: i32) -> (i32, i32) {
    %c0_i32 = arith.constant 0 : i32
    %c0_i32_0 = arith.constant 0 : i32
    %c0_i32_1 = arith.constant 0 : i32
    return %c0_i32, %c0_i32_0 : i32, i32
  }
  func.func @transform_9(%arg0: i32, %arg1: i32) -> (i32, i32) {
    %c0_i32 = arith.constant 0 : i32
    %c0_i32_0 = arith.constant 0 : i32
    %c0_i32_1 = arith.constant 0 : i32
    return %c0_i32, %c0_i32_0 : i32, i32
  }
  func.func @transform_10(%arg0: i32, %arg1: i32) -> (i32, i32) {
    %c0_i32 = arith.constant 0 : i32
    %c0_i32_0 = arith.constant 0 : i32
    %c0_i32_1 = arith.constant 0 : i32
    return %c0_i32, %c0_i32_0 : i32, i32
  }
  func.func @transform_11(%arg0: i32, %arg1: i32) -> (i32, i32) {
    %c0_i32 = arith.constant 0 : i32
    %c0_i32_0 = arith.constant 0 : i32
    %c0_i32_1 = arith.constant 0 : i32
    return %c0_i32, %c0_i32_0 : i32, i32
  }
  func.func @transform_12(%arg0: i32, %arg1: i32) -> (i32, i32) {
    %c0_i32 = arith.constant 0 : i32
    %c0_i32_0 = arith.constant 0 : i32
    %c0_i32_1 = arith.constant 0 : i32
    return %c0_i32, %c0_i32_0 : i32, i32
  }
  func.func @transform_13(%arg0: i32, %arg1: i32) -> (i32, i32) {
    %c0_i32 = arith.constant 0 : i32
    %c0_i32_0 = arith.constant 0 : i32
    %c0_i32_1 = arith.constant 0 : i32
    return %c0_i32, %c0_i32_0 : i32, i32
  }
  func.func @transform_14(%arg0: i32, %arg1: i32) -> (i32, i32, i32) {
    %c0_i32 = arith.constant 0 : i32
    %c0_i32_0 = arith.constant 0 : i32
    return %arg0, %arg1, %c0_i32 : i32, i32, i32
  }
  func.func @transform_15(%arg0: i32, %arg1: i32) -> (i32, i32, i32, i32) {
    %c0_i32 = arith.constant 0 : i32
    %c0_i32_0 = arith.constant 0 : i32
    %c0_i32_1 = arith.constant 0 : i32
    return %arg0, %c0_i32, %arg1, %c0_i32_0 : i32, i32, i32, i32
  }
}

</mosaic_0001>

<llo_original>
// kernel: tpu_custom_call.1
$region0: #{tpu_custom_call.1}
  #allocation0 [shape = 'u32[]', space=smem, size = 0x4, offset = 0x4, fixed_abs, tag = 'smem constant byte address 0x4 - core index']
  #allocation1 [shape = 'u32[72,128]{1,0:T(1,128)}', space=vmem, size = 0x9000, scoped, tag = 'internal scratch']
  %s0 = inlined_call_operand.hbm [shape: f32[2,8,32], index: 0, kind: input, shape index: {}]
  %s1 = inlined_call_operand.vmem [shape: f32[2,4,8,8], index: 1, kind: input, shape index: {}]
  %s2 = inlined_call_operand.hbm [shape: f32[2,4,8,8], index: 2, kind: input, shape index: {}]
  %s3 = inlined_call_operand.hbm [shape: f32[2,4,8,8], index: 3, kind: input, shape index: {}]
  %s4 = inlined_call_operand.vmem [shape: f32[4,8,32], index: 4, kind: input, shape index: {}]
  %s5 = inlined_call_operand.vmem [shape: f32[1,32], index: 5, kind: input, shape index: {}]
  %s6 = inlined_call_operand.hbm [shape: f32[32,64], index: 6, kind: input, shape index: {}]
  %s7 = inlined_call_operand.vmem [shape: f32[1,64], index: 7, kind: input, shape index: {}]
  %s8 = inlined_call_operand.vmem [shape: f32[64,32], index: 8, kind: input, shape index: {}]
  %s9 = inlined_call_operand.vmem [shape: f32[1,32], index: 9, kind: input, shape index: {}]
  %s10 = inlined_call_operand.vmem [shape: f32[1,32], index: 10, kind: input, shape index: {}]
  %s11 = inlined_call_operand.vmem [shape: f32[1,32], index: 11, kind: input, shape index: {}]
  %s12 = inlined_call_operand.vmem [shape: f32[1,32], index: 12, kind: input, shape index: {}]
  %s13 = inlined_call_operand.vmem [shape: f32[1,32], index: 13, kind: input, shape index: {}]
  %s14 = inlined_call_operand.hbm [shape: f32[2,8,32], index: 14, kind: output, shape index: {0}]
  %s15 = inlined_call_operand.hbm [shape: f32[2,4,8,8], index: 15, kind: output, shape index: {1}]
  %16 = xla_tuple %s14, %s15
  %s17 = sld [smem:[#allocation0]]
  $region113: #{tpu_custom_call.1} parent=0
    _
  %s19 = ssub.s32 1, %s17
  %s20 = scalar_select 0, %s19, %s17
  $region1: #{tpu_custom_call.1} parent=0
    #allocation2 [shape = 'u8[8192]{0}', space=vmem, size = 0x2000, scoped, tag = 'input window, operand 0']
    #allocation3 [shape = 's32[2]{0}', space=sflag, size = 0x8, scoped, tag = 'scoped memory for tpu_custom_call.1']
    #allocation4 [shape = 's32[2]{0}', space=sflag, size = 0x8, scoped, tag = 'scoped memory for tpu_custom_call.1']
    #allocation5 [shape = 'u8[32768]{0}', space=vmem, size = 0x8000, scoped, tag = 'input window, operand 2']
    #allocation6 [shape = 's32[2]{0}', space=sflag, size = 0x8, scoped, tag = 'scoped memory for tpu_custom_call.1']
    #allocation7 [shape = 'u8[32768]{0}', space=vmem, size = 0x8000, scoped, tag = 'input window, operand 3']
    #allocation8 [shape = 'u8[16384]{0}', space=vmem, size = 0x4000, scoped, tag = 'input window, operand 6, single buffered']
    #allocation9 [shape = 's32[1]{0}', space=sflag, size = 0x4, scoped, tag = 'scoped memory for tpu_custom_call.1']
    #allocation10 [shape = 'u8[8192]{0}', space=vmem, size = 0x2000, scoped, tag = 'output window, operand 0']
    #allocation11 [shape = 'u8[32768]{0}', space=vmem, size = 0x8000, scoped, tag = 'output window, operand 1']
    #allocation12 [shape = 's32[2]{0}', space=sflag, size = 0x8, scoped, tag = 'scoped memory for tpu_custom_call.1']
    %21 = vsyncpa [#allocation3], 0
    %s22 = scalar_lea.sflag [#allocation3], 1
    %23 = vsyncpa %s22, 0
    %24 = vsyncpa [#allocation6], 0
    %s25 = scalar_lea.sflag [#allocation6], 1
    %26 = vsyncpa %s25, 0
    %27 = vsyncpa [#allocation9], 0
    %28 = vsyncpa [#allocation4], 0
    %s29 = scalar_lea.sflag [#allocation4], 1
    %30 = vsyncpa %s29, 0
    %31 = vsyncpa [#allocation12], 0
    %s32 = scalar_lea.sflag [#allocation12], 1
    %33 = vsyncpa %s32, 0
    loop: start=0, step=1, limit=4
    $region2: #{tpu_custom_call.1} parent=1 // loop_pre_header
      _
    $region3: #{tpu_custom_call.1} parent=1 // loop_header
      %s35 = sphi 0, %s39
      %p36 = scmp.ge.s32.totalorder %s35, 4
      %s42 = sphi 0, %s54
      %s43 = sphi 0, %s50
      %s44 = sphi 0, %s42
      %s45 = sphi 0, %s43
      %s46 = sphi 0, %s44
      %s47 = sphi 0, %s45
      %s59 = sphi 0, %s61
      %s62 = sphi 0, %s59
      %s63 = sphi 0, %s62
      %s79 = sphi 0, %s63
      %s87 = sphi 0, %s89
      %s90 = sphi 0, %s87
      %s91 = sphi 0, %s90
      %s107 = sphi 0, %s91
      %s113 = sphi 0, %s115
      %s116 = sphi 0, %s113
      %s117 = sphi 0, %s116
      %s133 = sphi 0, %s117
      %s139 = sphi 0, %s141
      %s142 = sphi 0, %s139
      %s143 = sphi 0, %s142
      %s159 = sphi 0, %s143
      %s163 = sphi 0, %s163
      %s165 = sphi 0, %s163
      %s166 = sphi 0, %s165
      %s180 = sphi 0, %s166
      %s184 = sphi 0, %s184
      %s186 = sphi 0, %s184
      %s187 = sphi 0, %s186
      %s201 = sphi 0, %s187
      %s205 = sphi 0, %s205
      %s207 = sphi 0, %s205
      %s208 = sphi 0, %s207
      %s222 = sphi 0, %s208
      %s226 = sphi 0, %s226
      %s228 = sphi 0, %s226
      %s229 = sphi 0, %s228
      %s243 = sphi 0, %s229
      %s247 = sphi 0, %s247
      %s249 = sphi 0, %s247
      %s250 = sphi 0, %s249
      %s264 = sphi 0, %s250
      %s268 = sphi 0, %s268
      %s270 = sphi 0, %s268
      %s271 = sphi 0, %s270
      %s285 = sphi 0, %s271
      %s289 = sphi 0, %s289
      %s291 = sphi 0, %s289
      %s292 = sphi 0, %s291
      %s306 = sphi 0, %s292
      %s310 = sphi 0, %s310
      %s312 = sphi 0, %s310
      %s313 = sphi 0, %s312
      %s327 = sphi 0, %s313
      %s331 = sphi 0, %s331
      %s333 = sphi 0, %s331
      %s334 = sphi 0, %s333
      %s348 = sphi 0, %s334
      %s352 = sphi 0, %s352
      %s354 = sphi 0, %s352
      %s355 = sphi 0, %s354
      %s369 = sphi 0, %s355
      %s377 = sphi 0, %s379
      %s380 = sphi 0, %s377
      %s381 = sphi 0, %s380
      %s397 = sphi 0, %s381
      %s405 = sphi 0, %s407
      %s408 = sphi 0, %s405
      %s409 = sphi 0, %s408
      %s425 = sphi 0, %s409
    $region4: #{tpu_custom_call.1} parent=1 // loop_header_branch
      %38 = sbr.rel (%p36) target = $region8
    $region5: #{tpu_custom_call.1} parent=1 // loop_body
      %s40 = ssub.s32 %s35, 1
      %s41 = ssub.s32 %s35, 2
      %s48 = sadd.s32 1, %s43
      %p49 = scmp.ge.s32.totalorder %s48, 1
      %s50 = scalar_select %p49, 0, %s48
      %s51 = sadd.s32 1, %s42
      %s52 = scalar_select %p49, %s51, %s42
      %p53 = scmp.ge.s32.totalorder %s52, 2
      %s54 = scalar_select %p53, 0, %s52
      %s55 = ssub.s32 %s42, %s54
      %s56 = ssub.s32 %s43, %s50
      %s57 = sor.u32 %s55, %s56
      %p58 = scmp.eq.s32.totalorder %s57, 0
      %s60 = sadd.s32 %s59, 1
      %s61 = scalar_select %p58, %s59, %s60
      %p64 = pneg %p58
      %p65 = scmp.eq.s32.totalorder %s35, 1
      %p66 = por %p64, %p65
      %p67 = scmp.ne.s32.totalorder %s59, %s62
      %p68 = scmp.eq.s32.totalorder %s35, 0
      %p69 = por %p67, %p68
      %p70 = scmp.ne.s32.totalorder %s59, %s62
      %p71 = scmp.eq.s32.totalorder %s40, 1
      %p72 = por %p70, %p71
      %p73 = scmp.ne.s32.totalorder %s62, %s63
      %p74 = scmp.eq.s32.totalorder %s40, 0
      %p75 = por %p73, %p74
      %p76 = scmp.ne.s32.totalorder %s62, %s63
      %p77 = scmp.eq.s32.totalorder %s41, 1
      %p78 = por %p76, %p77
      %p80 = scmp.ne.s32.totalorder %s63, %s79
      %p81 = scmp.eq.s32.totalorder %s41, 0
      %p82 = por %p80, %p81
      %s83 = ssub.s32 %s42, %s54
      %s84 = ssub.s32 %s43, %s50
      %s85 = sor.u32 %s83, %s84
      %p86 = scmp.eq.s32.totalorder %s85, 0
      %s88 = sadd.s32 %s87, 1
      %s89 = scalar_select %p86, %s87, %s88
      %p92 = pneg %p86
      %p93 = scmp.eq.s32.totalorder %s35, 1
      %p94 = por %p92, %p93
      %p95 = scmp.ne.s32.totalorder %s87, %s90
      %p96 = scmp.eq.s32.totalorder %s35, 0
      %p97 = por %p95, %p96
      %p98 = scmp.ne.s32.totalorder %s87, %s90
      %p99 = scmp.eq.s32.totalorder %s40, 1
      %p100 = por %p98, %p99
      %p101 = scmp.ne.s32.totalorder %s90, %s91
      %p102 = scmp.eq.s32.totalorder %s40, 0
      %p103 = por %p101, %p102
      %p104 = scmp.ne.s32.totalorder %s90, %s91
      %p105 = scmp.eq.s32.totalorder %s41, 1
      %p106 = por %p104, %p105
      %p108 = scmp.ne.s32.totalorder %s91, %s107
      %p109 = scmp.eq.s32.totalorder %s41, 0
      %p110 = por %p108, %p109
      %s111 = ssub.s32 %s42, %s54
      %p112 = scmp.eq.s32.totalorder %s111, 0
      %s114 = sadd.s32 %s113, 1
      %s115 = scalar_select %p112, %s113, %s114
      %p118 = pneg %p112
      %p119 = scmp.eq.s32.totalorder %s35, 1
      %p120 = por %p118, %p119
      %p121 = scmp.ne.s32.totalorder %s113, %s116
      %p122 = scmp.eq.s32.totalorder %s35, 0
      %p123 = por %p121, %p122
      %p124 = scmp.ne.s32.totalorder %s113, %s116
      %p125 = scmp.eq.s32.totalorder %s40, 1
      %p126 = por %p124, %p125
      %p127 = scmp.ne.s32.totalorder %s116, %s117
      %p128 = scmp.eq.s32.totalorder %s40, 0
      %p129 = por %p127, %p128
      %p130 = scmp.ne.s32.totalorder %s116, %s117
      %p131 = scmp.eq.s32.totalorder %s41, 1
      %p132 = por %p130, %p131
      %p134 = scmp.ne.s32.totalorder %s117, %s133
      %p135 = scmp.eq.s32.totalorder %s41, 0
      %p136 = por %p134, %p135
      %s137 = ssub.s32 %s42, %s54
      %p138 = scmp.eq.s32.totalorder %s137, 0
      %s140 = sadd.s32 %s139, 1
      %s141 = scalar_select %p138, %s139, %s140
      %p144 = pneg %p138
      %p145 = scmp.eq.s32.totalorder %s35, 1
      %p146 = por %p144, %p145
      %p147 = scmp.ne.s32.totalorder %s139, %s142
      %p148 = scmp.eq.s32.totalorder %s35, 0
      %p149 = por %p147, %p148
      %p150 = scmp.ne.s32.totalorder %s139, %s142
      %p151 = scmp.eq.s32.totalorder %s40, 1
      %p152 = por %p150, %p151
      %p153 = scmp.ne.s32.totalorder %s142, %s143
      %p154 = scmp.eq.s32.totalorder %s40, 0
      %p155 = por %p153, %p154
      %p156 = scmp.ne.s32.totalorder %s142, %s143
      %p157 = scmp.eq.s32.totalorder %s41, 1
      %p158 = por %p156, %p157
      %p160 = scmp.ne.s32.totalorder %s143, %s159
      %p161 = scmp.eq.s32.totalorder %s41, 0
      %p162 = por %p160, %p161
      %s164 = sadd.s32 %s163, 1
      %p167 = scmp.eq.s32.totalorder %s35, 1
      %p168 = scmp.ne.s32.totalorder %s163, %s165
      %p169 = scmp.eq.s32.totalorder %s35, 0
      %p170 = por %p168, %p169
      %p171 = scmp.ne.s32.totalorder %s163, %s165
      %p172 = scmp.eq.s32.totalorder %s40, 1
      %p173 = por %p171, %p172
      %p174 = scmp.ne.s32.totalorder %s165, %s166
      %p175 = scmp.eq.s32.totalorder %s40, 0
      %p176 = por %p174, %p175
      %p177 = scmp.ne.s32.totalorder %s165, %s166
      %p178 = scmp.eq.s32.totalorder %s41, 1
      %p179 = por %p177, %p178
      %p181 = scmp.ne.s32.totalorder %s166, %s180
      %p182 = scmp.eq.s32.totalorder %s41, 0
      %p183 = por %p181, %p182
      %s185 = sadd.s32 %s184, 1
      %p188 = scmp.eq.s32.totalorder %s35, 1
      %p189 = scmp.ne.s32.totalorder %s184, %s186
      %p190 = scmp.eq.s32.totalorder %s35, 0
      %p191 = por %p189, %p190
      %p192 = scmp.ne.s32.totalorder %s184, %s186
      %p193 = scmp.eq.s32.totalorder %s40, 1
      %p194 = por %p192, %p193
      %p195 = scmp.ne.s32.totalorder %s186, %s187
      %p196 = scmp.eq.s32.totalorder %s40, 0
      %p197 = por %p195, %p196
      %p198 = scmp.ne.s32.totalorder %s186, %s187
      %p199 = scmp.eq.s32.totalorder %s41, 1
      %p200 = por %p198, %p199
      %p202 = scmp.ne.s32.totalorder %s187, %s201
      %p203 = scmp.eq.s32.totalorder %s41, 0
      %p204 = por %p202, %p203
      %s206 = sadd.s32 %s205, 1
      %p209 = scmp.eq.s32.totalorder %s35, 1
      %p210 = scmp.ne.s32.totalorder %s205, %s207
      %p211 = scmp.eq.s32.totalorder %s35, 0
      %p212 = por %p210, %p211
      %p213 = scmp.ne.s32.totalorder %s205, %s207
      %p214 = scmp.eq.s32.totalorder %s40, 1
      %p215 = por %p213, %p214
      %p216 = scmp.ne.s32.totalorder %s207, %s208
      %p217 = scmp.eq.s32.totalorder %s40, 0
      %p218 = por %p216, %p217
      %p219 = scmp.ne.s32.totalorder %s207, %s208
      %p220 = scmp.eq.s32.totalorder %s41, 1
      %p221 = por %p219, %p220
      %p223 = scmp.ne.s32.totalorder %s208, %s222
      %p224 = scmp.eq.s32.totalorder %s41, 0
      %p225 = por %p223, %p224
      %s227 = sadd.s32 %s226, 1
      %p230 = scmp.eq.s32.totalorder %s35, 1
      %p231 = scmp.ne.s32.totalorder %s226, %s228
      %p232 = scmp.eq.s32.totalorder %s35, 0
      %p233 = por %p231, %p232
      %p234 = scmp.ne.s32.totalorder %s226, %s228
      %p235 = scmp.eq.s32.totalorder %s40, 1
      %p236 = por %p234, %p235
      %p237 = scmp.ne.s32.totalorder %s228, %s229
      %p238 = scmp.eq.s32.totalorder %s40, 0
      %p239 = por %p237, %p238
      %p240 = scmp.ne.s32.totalorder %s228, %s229
      %p241 = scmp.eq.s32.totalorder %s41, 1
      %p242 = por %p240, %p241
      %p244 = scmp.ne.s32.totalorder %s229, %s243
      %p245 = scmp.eq.s32.totalorder %s41, 0
      %p246 = por %p244, %p245
      %s248 = sadd.s32 %s247, 1
      %p251 = scmp.eq.s32.totalorder %s35, 1
      %p252 = scmp.ne.s32.totalorder %s247, %s249
      %p253 = scmp.eq.s32.totalorder %s35, 0
      %p254 = por %p252, %p253
      %p255 = scmp.ne.s32.totalorder %s247, %s249
      %p256 = scmp.eq.s32.totalorder %s40, 1
      %p257 = por %p255, %p256
      %p258 = scmp.ne.s32.totalorder %s249, %s250
      %p259 = scmp.eq.s32.totalorder %s40, 0
      %p260 = por %p258, %p259
      %p261 = scmp.ne.s32.totalorder %s249, %s250
      %p262 = scmp.eq.s32.totalorder %s41, 1
      %p263 = por %p261, %p262
      %p265 = scmp.ne.s32.totalorder %s250, %s264
      %p266 = scmp.eq.s32.totalorder %s41, 0
      %p267 = por %p265, %p266
      %s269 = sadd.s32 %s268, 1
      %p272 = scmp.eq.s32.totalorder %s35, 1
      %p273 = scmp.ne.s32.totalorder %s268, %s270
      %p274 = scmp.eq.s32.totalorder %s35, 0
      %p275 = por %p273, %p274
      %p276 = scmp.ne.s32.totalorder %s268, %s270
      %p277 = scmp.eq.s32.totalorder %s40, 1
      %p278 = por %p276, %p277
      %p279 = scmp.ne.s32.totalorder %s270, %s271
      %p280 = scmp.eq.s32.totalorder %s40, 0
      %p281 = por %p279, %p280
      %p282 = scmp.ne.s32.totalorder %s270, %s271
      %p283 = scmp.eq.s32.totalorder %s41, 1
      %p284 = por %p282, %p283
      %p286 = scmp.ne.s32.totalorder %s271, %s285
      %p287 = scmp.eq.s32.totalorder %s41, 0
      %p288 = por %p286, %p287
      %s290 = sadd.s32 %s289, 1
      %p293 = scmp.eq.s32.totalorder %s35, 1
      %p294 = scmp.ne.s32.totalorder %s289, %s291
      %p295 = scmp.eq.s32.totalorder %s35, 0
      %p296 = por %p294, %p295
      %p297 = scmp.ne.s32.totalorder %s289, %s291
      %p298 = scmp.eq.s32.totalorder %s40, 1
      %p299 = por %p297, %p298
      %p300 = scmp.ne.s32.totalorder %s291, %s292
      %p301 = scmp.eq.s32.totalorder %s40, 0
      %p302 = por %p300, %p301
      %p303 = scmp.ne.s32.totalorder %s291, %s292
      %p304 = scmp.eq.s32.totalorder %s41, 1
      %p305 = por %p303, %p304
      %p307 = scmp.ne.s32.totalorder %s292, %s306
      %p308 = scmp.eq.s32.totalorder %s41, 0
      %p309 = por %p307, %p308
      %s311 = sadd.s32 %s310, 1
      %p314 = scmp.eq.s32.totalorder %s35, 1
      %p315 = scmp.ne.s32.totalorder %s310, %s312
      %p316 = scmp.eq.s32.totalorder %s35, 0
      %p317 = por %p315, %p316
      %p318 = scmp.ne.s32.totalorder %s310, %s312
      %p319 = scmp.eq.s32.totalorder %s40, 1
      %p320 = por %p318, %p319
      %p321 = scmp.ne.s32.totalorder %s312, %s313
      %p322 = scmp.eq.s32.totalorder %s40, 0
      %p323 = por %p321, %p322
      %p324 = scmp.ne.s32.totalorder %s312, %s313
      %p325 = scmp.eq.s32.totalorder %s41, 1
      %p326 = por %p324, %p325
      %p328 = scmp.ne.s32.totalorder %s313, %s327
      %p329 = scmp.eq.s32.totalorder %s41, 0
      %p330 = por %p328, %p329
      %s332 = sadd.s32 %s331, 1
      %p335 = scmp.eq.s32.totalorder %s35, 1
      %p336 = scmp.ne.s32.totalorder %s331, %s333
      %p337 = scmp.eq.s32.totalorder %s35, 0
      %p338 = por %p336, %p337
      %p339 = scmp.ne.s32.totalorder %s331, %s333
      %p340 = scmp.eq.s32.totalorder %s40, 1
      %p341 = por %p339, %p340
      %p342 = scmp.ne.s32.totalorder %s333, %s334
      %p343 = scmp.eq.s32.totalorder %s40, 0
      %p344 = por %p342, %p343
      %p345 = scmp.ne.s32.totalorder %s333, %s334
      %p346 = scmp.eq.s32.totalorder %s41, 1
      %p347 = por %p345, %p346
      %p349 = scmp.ne.s32.totalorder %s334, %s348
      %p350 = scmp.eq.s32.totalorder %s41, 0
      %p351 = por %p349, %p350
      %s353 = sadd.s32 %s352, 1
      %p356 = scmp.eq.s32.totalorder %s35, 1
      %p357 = scmp.ne.s32.totalorder %s352, %s354
      %p358 = scmp.eq.s32.totalorder %s35, 0
      %p359 = por %p357, %p358
      %p360 = scmp.ne.s32.totalorder %s352, %s354
      %p361 = scmp.eq.s32.totalorder %s40, 1
      %p362 = por %p360, %p361
      %p363 = scmp.ne.s32.totalorder %s354, %s355
      %p364 = scmp.eq.s32.totalorder %s40, 0
      %p365 = por %p363, %p364
      %p366 = scmp.ne.s32.totalorder %s354, %s355
      %p367 = scmp.eq.s32.totalorder %s41, 1
      %p368 = por %p366, %p367
      %p370 = scmp.ne.s32.totalorder %s355, %s369
      %p371 = scmp.eq.s32.totalorder %s41, 0
      %p372 = por %p370, %p371
      %s373 = ssub.s32 %s42, %s54
      %s374 = ssub.s32 %s43, %s50
      %s375 = sor.u32 %s373, %s374
      %p376 = scmp.eq.s32.totalorder %s375, 0
      %s378 = sadd.s32 %s377, 1
      %s379 = scalar_select %p376, %s377, %s378
      %p382 = pneg %p376
      %p383 = scmp.eq.s32.totalorder %s35, 1
      %p384 = por %p382, %p383
      %p385 = scmp.ne.s32.totalorder %s377, %s380
      %p386 = scmp.eq.s32.totalorder %s35, 0
      %p387 = por %p385, %p386
      %p388 = scmp.ne.s32.totalorder %s377, %s380
      %p389 = scmp.eq.s32.totalorder %s40, 1
      %p390 = por %p388, %p389
      %p391 = scmp.ne.s32.totalorder %s380, %s381
      %p392 = scmp.eq.s32.totalorder %s40, 0
      %p393 = por %p391, %p392
      %p394 = scmp.ne.s32.totalorder %s380, %s381
      %p395 = scmp.eq.s32.totalorder %s41, 1
      %p396 = por %p394, %p395
      %p398 = scmp.ne.s32.totalorder %s381, %s397
      %p399 = scmp.eq.s32.totalorder %s41, 0
      %p400 = por %p398, %p399
      %s401 = ssub.s32 %s42, %s54
      %s402 = ssub.s32 %s43, %s50
      %s403 = sor.u32 %s401, %s402
      %p404 = scmp.eq.s32.totalorder %s403, 0
      %s406 = sadd.s32 %s405, 1
      %s407 = scalar_select %p404, %s405, %s406
      %p410 = pneg %p404
      %p411 = scmp.eq.s32.totalorder %s35, 1
      %p412 = por %p410, %p411
      %p413 = scmp.ne.s32.totalorder %s405, %s408
      %p414 = scmp.eq.s32.totalorder %s35, 0
      %p415 = por %p413, %p414
      %p416 = scmp.ne.s32.totalorder %s405, %s408
      %p417 = scmp.eq.s32.totalorder %s40, 1
      %p418 = por %p416, %p417
      %p419 = scmp.ne.s32.totalorder %s408, %s409
      %p420 = scmp.eq.s32.totalorder %s40, 0
      %p421 = por %p419, %p420
      %p422 = scmp.ne.s32.totalorder %s408, %s409
      %p423 = scmp.eq.s32.totalorder %s41, 1
      %p424 = por %p422, %p423
      %p426 = scmp.ne.s32.totalorder %s409, %s425
      %p427 = scmp.eq.s32.totalorder %s41, 0
      %p428 = por %p426, %p427
      %p429 = scmp.le.s32.totalorder 1, %s35
      %p430 = scmp.lt.s32.totalorder %s35, 3
      %p431 = pnand %p429, %p430
      %p432 = pneg %p431
      // Predicated region
      $region9: #{tpu_custom_call.1} parent=5 // pred_check
        _
      $region10: #{tpu_custom_call.1} parent=5 // pred_check_branch
        %434 = sbr.rel (%p431) target = $region12
      $region11: #{tpu_custom_call.1} parent=5 // pred_region
        %s435 = ssub.s32 %s35, 1
        // Predicated region
        $region13: #{tpu_custom_call.1} parent=11 // pred_check
          %p436 = pneg %p176
        $region14: #{tpu_custom_call.1} parent=11 // pred_check_branch
          %438 = sbr.rel (%p436) target = $region16
        $region15: #{tpu_custom_call.1} parent=11 // pred_region
          _
        $region16: #{tpu_custom_call.1} parent=11 // pred_fallthru
          _
        // Predicated region
        $region17: #{tpu_custom_call.1} parent=11 // pred_check
          %p439 = pneg %p197
        $region18: #{tpu_custom_call.1} parent=11 // pred_check_branch
          %441 = sbr.rel (%p439) target = $region20
        $region19: #{tpu_custom_call.1} parent=11 // pred_region
          _
        $region20: #{tpu_custom_call.1} parent=11 // pred_fallthru
          _
        // Predicated region
        $region21: #{tpu_custom_call.1} parent=11 // pred_check
          %p442 = pneg %p218
        $region22: #{tpu_custom_call.1} parent=11 // pred_check_branch
          %444 = sbr.rel (%p442) target = $region24
        $region23: #{tpu_custom_call.1} parent=11 // pred_region
          %446 = vsyncadd [#allocation9], 0
          %s447 = sshll.u32 %s6, 4
          %s448 = int_to_ptr.hbm [resolvable:$true] %s447
          %s449 = sshll.u32 [#allocation8], 4
          %s450 = int_to_ptr.vmem [resolvable:$true] %s449
          %455 = dma.hbm_to_vmem [thread:$0]  %s448, 512, %s450, [#allocation9], 128, 128, 8
        $region24: #{tpu_custom_call.1} parent=11 // pred_fallthru
          _
        // Predicated region
        $region25: #{tpu_custom_call.1} parent=11 // pred_check
          %p456 = pneg %p239
        $region26: #{tpu_custom_call.1} parent=11 // pred_check_branch
          %458 = sbr.rel (%p456) target = $region28
        $region27: #{tpu_custom_call.1} parent=11 // pred_region
          _
        $region28: #{tpu_custom_call.1} parent=11 // pred_fallthru
          _
        // Predicated region
        $region29: #{tpu_custom_call.1} parent=11 // pred_check
          %p459 = pneg %p260
        $region30: #{tpu_custom_call.1} parent=11 // pred_check_branch
          %461 = sbr.rel (%p459) target = $region32
        $region31: #{tpu_custom_call.1} parent=11 // pred_region
          _
        $region32: #{tpu_custom_call.1} parent=11 // pred_fallthru
          _
        // Predicated region
        $region33: #{tpu_custom_call.1} parent=11 // pred_check
          %p462 = pneg %p281
        $region34: #{tpu_custom_call.1} parent=11 // pred_check_branch
          %464 = sbr.rel (%p462) target = $region36
        $region35: #{tpu_custom_call.1} parent=11 // pred_region
          _
        $region36: #{tpu_custom_call.1} parent=11 // pred_fallthru
          _
        // Predicated region
        $region37: #{tpu_custom_call.1} parent=11 // pred_check
          %p465 = pneg %p302
        $region38: #{tpu_custom_call.1} parent=11 // pred_check_branch
          %467 = sbr.rel (%p465) target = $region40
        $region39: #{tpu_custom_call.1} parent=11 // pred_region
          _
        $region40: #{tpu_custom_call.1} parent=11 // pred_fallthru
          _
        // Predicated region
        $region41: #{tpu_custom_call.1} parent=11 // pred_check
          %p468 = pneg %p323
        $region42: #{tpu_custom_call.1} parent=11 // pred_check_branch
          %470 = sbr.rel (%p468) target = $region44
        $region43: #{tpu_custom_call.1} parent=11 // pred_region
          _
        $region44: #{tpu_custom_call.1} parent=11 // pred_fallthru
          _
        // Predicated region
        $region45: #{tpu_custom_call.1} parent=11 // pred_check
          %p471 = pneg %p344
        $region46: #{tpu_custom_call.1} parent=11 // pred_check_branch
          %473 = sbr.rel (%p471) target = $region48
        $region47: #{tpu_custom_call.1} parent=11 // pred_region
          _
        $region48: #{tpu_custom_call.1} parent=11 // pred_fallthru
          _
        // Predicated region
        $region49: #{tpu_custom_call.1} parent=11 // pred_check
          %p474 = pneg %p365
        $region50: #{tpu_custom_call.1} parent=11 // pred_check_branch
          %476 = sbr.rel (%p474) target = $region52
        $region51: #{tpu_custom_call.1} parent=11 // pred_region
          _
        $region52: #{tpu_custom_call.1} parent=11 // pred_fallthru
          _
      $region12: #{tpu_custom_call.1} parent=5 // pred_fallthru
        _
      %p477 = scmp.lt.s32.totalorder %s35, 2
      // Predicated region
      $region53: #{tpu_custom_call.1} parent=5 // pred_check
        %p478 = pneg %p477
      $region54: #{tpu_custom_call.1} parent=5 // pred_check_branch
        %480 = sbr.rel (%p478) target = $region56
      $region55: #{tpu_custom_call.1} parent=5 // pred_region
        // Predicated region
        $region57: #{tpu_custom_call.1} parent=55 // pred_check
          %p481 = pneg %p69
        $region58: #{tpu_custom_call.1} parent=55 // pred_check_branch
          %483 = sbr.rel (%p481) target = $region60
        $region59: #{tpu_custom_call.1} parent=55 // pred_region
          %s484 = sand.u32 %s59, 1
          %s485 = scalar_lea.sflag [#allocation3], %s484
          %s486 = sand.u32 %s59, 1
          %s487 = smul.addr %s486, 8
          %s488 = scalar_lea.vmem [#allocation2], %s487
          %490 = vsyncadd %s485, 0
          %s491 = sadd.s32 %s43, %s42
          %s492 = smul.addr %s491, 8
          %s493 = scalar_lea.hbm %s0, %s492
          %s495 = sshll.u32 %s493, 4
          %s496 = int_to_ptr.hbm [resolvable:$true] %s495
          %s497 = sshll.u32 %s488, 4
          %s498 = int_to_ptr.vmem [resolvable:$true] %s497
          %500 = dma.hbm_to_vmem [thread:$0]  %s496, 128, %s498, %s485
        $region60: #{tpu_custom_call.1} parent=55 // pred_fallthru
          _
        // Predicated region
        $region61: #{tpu_custom_call.1} parent=55 // pred_check
          %p501 = pneg %p97
        $region62: #{tpu_custom_call.1} parent=55 // pred_check_branch
          %503 = sbr.rel (%p501) target = $region64
        $region63: #{tpu_custom_call.1} parent=55 // pred_region
          %p504 = scmp.lt.s32.totalorder %s42, 1
          %s505 = scalar_select %p504, %s42, 1
          %p506 = scmp.lt.s32.totalorder %s43, 0
          %s507 = scalar_select %p506, %s43, 0
          %s508 = smul.addr %s505, 4
          %s509 = sadd.s32 %s507, %s508
          %s510 = smul.addr %s509, 8
          %s511 = scalar_lea.vmem %s1, %s510
        $region64: #{tpu_custom_call.1} parent=55 // pred_fallthru
          _
        // Predicated region
        $region65: #{tpu_custom_call.1} parent=55 // pred_check
          %p512 = pneg %p123
        $region66: #{tpu_custom_call.1} parent=55 // pred_check_branch
          %514 = sbr.rel (%p512) target = $region68
        $region67: #{tpu_custom_call.1} parent=55 // pred_region
          %s515 = sand.u32 %s35, 1
          %s516 = scalar_lea.sflag [#allocation6], %s515
          %s517 = sand.u32 %s113, 1
          %s518 = smul.addr %s517, 32
          %s519 = scalar_lea.vmem [#allocation5], %s518
          %521 = vsyncadd %s516, 0
          %s522 = smul.addr %s42, 4
          %s523 = smul.addr %s522, 8
          %s524 = scalar_lea.hbm %s2, %s523
          %s525 = sshll.u32 %s524, 4
          %s526 = int_to_ptr.hbm [resolvable:$true] %s525
          %s527 = sshll.u32 %s519, 4
          %s528 = int_to_ptr.vmem [resolvable:$true] %s527
          %533 = dma.hbm_to_vmem [thread:$0]  %s526, 512, %s528, %s516, 128, 128, 8
        $region68: #{tpu_custom_call.1} parent=55 // pred_fallthru
          _
        // Predicated region
        $region69: #{tpu_custom_call.1} parent=55 // pred_check
          %p534 = pneg %p149
        $region70: #{tpu_custom_call.1} parent=55 // pred_check_branch
          %536 = sbr.rel (%p534) target = $region72
        $region71: #{tpu_custom_call.1} parent=55 // pred_region
          %s537 = sand.u32 %s35, 1
          %s538 = scalar_lea.sflag [#allocation6], %s537
          %s539 = sand.u32 %s139, 1
          %s540 = smul.addr %s539, 32
          %s541 = scalar_lea.vmem [#allocation7], %s540
          %543 = vsyncadd %s538, 0
          %s544 = smul.addr %s42, 4
          %s545 = smul.addr %s544, 8
          %s546 = scalar_lea.hbm %s3, %s545
          %s547 = sshll.u32 %s546, 4
          %s548 = int_to_ptr.hbm [resolvable:$true] %s547
          %s549 = sshll.u32 %s541, 4
          %s550 = int_to_ptr.vmem [resolvable:$true] %s549
          %555 = dma.hbm_to_vmem [thread:$0]  %s548, 512, %s550, %s538, 128, 128, 8
        $region72: #{tpu_custom_call.1} parent=55 // pred_fallthru
          _
      $region56: #{tpu_custom_call.1} parent=5 // pred_fallthru
        _
      %p556 = scmp.le.s32.totalorder 1, %s35
      %p557 = scmp.lt.s32.totalorder %s35, 3
      %p558 = pnand %p556, %p557
      %p559 = pneg %p558
      // Predicated region
      $region73: #{tpu_custom_call.1} parent=5 // pred_check
        _
      $region74: #{tpu_custom_call.1} parent=5 // pred_check_branch
        %561 = sbr.rel (%p558) target = $region76
      $region75: #{tpu_custom_call.1} parent=5 // pred_region
        %s562 = ssub.s32 %s35, 1
        %s563 = sand.u32 %s62, 1
        %s564 = scalar_lea.sflag [#allocation3], %s563
        %s565 = sand.u32 %s62, 1
        %s566 = smul.addr %s565, 8
        %s567 = scalar_lea.vmem [#allocation2], %s566
        // Predicated region
        $region77: #{tpu_custom_call.1} parent=75 // pred_check
          %p568 = pneg %p75
        $region78: #{tpu_custom_call.1} parent=75 // pred_check_branch
          %570 = sbr.rel (%p568) target = $region80
        $region79: #{tpu_custom_call.1} parent=75 // pred_region
          %572 = dma.done %s564, 128
        $region80: #{tpu_custom_call.1} parent=75 // pred_fallthru
          _
        %s573 = sand.u32 %s40, 1
        %s574 = scalar_lea.sflag [#allocation6], %s573
        %s575 = sand.u32 %s116, 1
        %s576 = smul.addr %s575, 32
        %s577 = scalar_lea.vmem [#allocation5], %s576
        // Predicated region
        $region81: #{tpu_custom_call.1} parent=75 // pred_check
          %p578 = pneg %p129
        $region82: #{tpu_custom_call.1} parent=75 // pred_check_branch
          %580 = sbr.rel (%p578) target = $region84
        $region83: #{tpu_custom_call.1} parent=75 // pred_region
          %582 = dma.done %s574, 512
        $region84: #{tpu_custom_call.1} parent=75 // pred_fallthru
          _
        %s583 = sand.u32 %s40, 1
        %s584 = scalar_lea.sflag [#allocation6], %s583
        %s585 = sand.u32 %s142, 1
        %s586 = smul.addr %s585, 32
        %s587 = scalar_lea.vmem [#allocation7], %s586
        // Predicated region
        $region85: #{tpu_custom_call.1} parent=75 // pred_check
          %p588 = pneg %p155
        $region86: #{tpu_custom_call.1} parent=75 // pred_check_branch
          %590 = sbr.rel (%p588) target = $region88
        $region87: #{tpu_custom_call.1} parent=75 // pred_region
          %592 = dma.done %s584, 512
        $region88: #{tpu_custom_call.1} parent=75 // pred_fallthru
          _
        // Predicated region
        $region89: #{tpu_custom_call.1} parent=75 // pred_check
          %p593 = pneg %p218
        $region90: #{tpu_custom_call.1} parent=75 // pred_check_branch
          %595 = sbr.rel (%p593) target = $region92
        $region91: #{tpu_custom_call.1} parent=75 // pred_region
          %597 = dma.done [#allocation9], 512
        $region92: #{tpu_custom_call.1} parent=75 // pred_fallthru
          _
        %s598 = sand.u32 %s62, 1
        %s599 = scalar_lea.sflag [#allocation3], %s598
        %s600 = sand.u32 %s62, 1
        %s601 = smul.addr %s600, 8
        %s602 = scalar_lea.vmem [#allocation2], %s601
        %p603 = pneg %p75
        %p604 = pneg %p72
        %p605 = scmp.lt.s32.totalorder %s44, 1
        %s606 = scalar_select %p605, %s44, 1
        %p607 = scmp.lt.s32.totalorder %s45, 0
        %s608 = scalar_select %p607, %s45, 0
        %s609 = smul.addr %s606, 4
        %s610 = sadd.s32 %s608, %s609
        %s611 = smul.addr %s610, 8
        %s612 = scalar_lea.vmem %s1, %s611
        %p613 = pneg %p103
        %p614 = pneg %p100
        %s615 = sand.u32 %s40, 1
        %s616 = scalar_lea.sflag [#allocation6], %s615
        %s617 = sand.u32 %s116, 1
        %s618 = smul.addr %s617, 32
        %s619 = scalar_lea.vmem [#allocation5], %s618
        %p620 = pneg %p129
        %p621 = pneg %p126
        %s622 = sand.u32 %s40, 1
        %s623 = scalar_lea.sflag [#allocation6], %s622
        %s624 = sand.u32 %s142, 1
        %s625 = smul.addr %s624, 32
        %s626 = scalar_lea.vmem [#allocation7], %s625
        %p627 = pneg %p155
        %p628 = pneg %p152
        %p629 = pneg %p176
        %p630 = pneg %p173
        %p631 = pneg %p197
        %p632 = pneg %p194
        %p633 = pneg %p218
        %p634 = pneg %p215
        %p635 = pneg %p239
        %p636 = pneg %p236
        %p637 = pneg %p260
        %p638 = pneg %p257
        %p639 = pneg %p281
        %p640 = pneg %p278
        %p641 = pneg %p302
        %p642 = pneg %p299
        %p643 = pneg %p323
        %p644 = pneg %p320
        %p645 = pneg %p344
        %p646 = pneg %p341
        %p647 = pneg %p365
        %p648 = pneg %p362
        %p649 = pneg %p393
        %p650 = pneg %p390
        %s651 = sand.u32 %s380, 1
        %s652 = scalar_lea.sflag [#allocation4], %s651
        %s653 = sand.u32 %s380, 1
        %s654 = smul.addr %s653, 8
        %s655 = scalar_lea.vmem [#allocation10], %s654
        %p656 = pneg %p421
        %p657 = pneg %p418
        %s658 = sand.u32 %s408, 1
        %s659 = scalar_lea.sflag [#allocation12], %s658
        %s660 = sand.u32 %s408, 1
        %s661 = smul.addr %s660, 32
        %s662 = scalar_lea.vmem [#allocation11], %s661
        %p663 = scmp.lt.s32.totalorder %s44, 1
        %s664 = scalar_select %p663, %s44, 1
        %p665 = scmp.lt.s32.totalorder %s45, 0
        %s666 = scalar_select %p665, %s45, 0
        %s667 = smul.addr %s664, 4
        %s668 = sadd.s32 %s666, %s667
        %s669 = smul.addr %s668, 8
        %s670 = scalar_lea.vmem %s1, %s669
        %v671 = vld [vmem:[%s567] sm:$0xff]
        %v672 = vld [vmem:[%s670] sm:$0xff]
        %v673 = vld [vmem:[%s670 + $0x8] sm:$0xff]
        %v674 = vld [vmem:[%s670 + $0x10] sm:$0xff]
        %v675 = vld [vmem:[%s670 + $0x18] sm:$0xff]
        %v676 = vld [vmem:[%s577] sm:$0xff]
        %v677 = vld [vmem:[%s577 + $0x8] sm:$0xff]
        %v678 = vld [vmem:[%s577 + $0x10] sm:$0xff]
        %v679 = vld [vmem:[%s577 + $0x18] sm:$0xff]
        %v680 = vld [vmem:[%s587] sm:$0xff]
        %v681 = vld [vmem:[%s587 + $0x8] sm:$0xff]
        %v682 = vld [vmem:[%s587 + $0x10] sm:$0xff]
        %v683 = vld [vmem:[%s587 + $0x18] sm:$0xff]
        %vm684 = vcmask 64512
        %v686 = vsel %vm684, %v672, 0
        %v689 = vsel %vm684, %v676, 0
        %691 = vmatpush.xpose.msra.mxu0 0.0
        %692 = vmatpush.xpose.msra.mxu0 0.0
        %693 = vmatpush.xpose.msra.mxu0 0.0
        %694 = vmatpush.xpose.msra.mxu0 0.0
        %695 = vmatpush.xpose.msra.mxu0 0.0
        %696 = vmatpush.xpose.msra.mxu0 0.0
        %697 = vmatpush.xpose.msra.mxu0 0.0
        %698 = vmatpush.xpose.msra.mxu0 0.0
        %699 = vmatpush.xpose.msra.mxu0 0.0
        %700 = vmatpush.xpose.msra.mxu0 0.0
        %701 = vmatpush.xpose.msra.mxu0 0.0
        %702 = vmatpush.xpose.msra.mxu0 0.0
        %703 = vmatpush.xpose.msra.mxu0 0.0
        %704 = vmatpush.xpose.msra.mxu0 0.0
        %705 = vmatpush.xpose.msra.mxu0 0.0
        %v706 = vand.u32 %v689, 4294901760
        %707 = vmatpush.xpose.msra.mxu0 %v706
        %v708 = vand.u32 %v686, 4294901760
        %v709 = vsub.f32 %v686, %v708
        %v710 = vand.u32 %v709, 4294901760
        %v711 = vsub.f32 %v709, %v710
        %v712 = vand.u32 %v711, 4294901760
        %713 = vmatmul.f32.gmra.mxu0 %v712
        %v714 = vpop.f32.mrf.mxu0
        %v715 = vadd.f32 0.0, %v714
        %716 = vdwg.mxu0
        %717 = vmatpush.xpose.msra.mxu0 0.0
        %718 = vmatpush.xpose.msra.mxu0 0.0
        %719 = vmatpush.xpose.msra.mxu0 0.0
        %720 = vmatpush.xpose.msra.mxu0 0.0
        %721 = vmatpush.xpose.msra.mxu0 0.0
        %722 = vmatpush.xpose.msra.mxu0 0.0
        %723 = vmatpush.xpose.msra.mxu0 0.0
        %724 = vmatpush.xpose.msra.mxu0 0.0
        %725 = vmatpush.xpose.msra.mxu0 0.0
        %726 = vmatpush.xpose.msra.mxu0 0.0
        %727 = vmatpush.xpose.msra.mxu0 0.0
        %728 = vmatpush.xpose.msra.mxu0 0.0
        %729 = vmatpush.xpose.msra.mxu0 0.0
        %730 = vmatpush.xpose.msra.mxu0 0.0
        %731 = vmatpush.xpose.msra.mxu0 0.0
        %v732 = vand.u32 %v689, 4294901760
        %v733 = vsub.f32 %v689, %v732
        %v734 = vand.u32 %v733, 4294901760
        %v735 = vsub.f32 %v733, %v734
        %v736 = vand.u32 %v735, 4294901760
        %737 = vmatpush.xpose.msra.mxu0 %v736
        %v738 = vand.u32 %v686, 4294901760
        %739 = vmatmul.f32.gmra.mxu0 %v738
        %v740 = vpop.f32.mrf.mxu0
        %v741 = vadd.f32 %v715, %v740
        %742 = vdwg.mxu0
        %743 = vmatpush.xpose.msra.mxu0 0.0
        %744 = vmatpush.xpose.msra.mxu0 0.0
        %745 = vmatpush.xpose.msra.mxu0 0.0
        %746 = vmatpush.xpose.msra.mxu0 0.0
        %747 = vmatpush.xpose.msra.mxu0 0.0
        %748 = vmatpush.xpose.msra.mxu0 0.0
        %749 = vmatpush.xpose.msra.mxu0 0.0
        %750 = vmatpush.xpose.msra.mxu0 0.0
        %751 = vmatpush.xpose.msra.mxu0 0.0
        %752 = vmatpush.xpose.msra.mxu0 0.0
        %753 = vmatpush.xpose.msra.mxu0 0.0
        %754 = vmatpush.xpose.msra.mxu0 0.0
        %755 = vmatpush.xpose.msra.mxu0 0.0
        %756 = vmatpush.xpose.msra.mxu0 0.0
        %757 = vmatpush.xpose.msra.mxu0 0.0
        %v758 = vand.u32 %v689, 4294901760
        %v759 = vsub.f32 %v689, %v758
        %760 = vmatpush.xpose.msra.mxu0 %v759
        %v761 = vand.u32 %v686, 4294901760
        %v762 = vsub.f32 %v686, %v761
        %763 = vmatmul.f32.gmra.mxu0 %v762
        %v764 = vpop.f32.mrf.mxu0
        %v765 = vadd.f32 %v741, %v764
        %766 = vdwg.mxu0
        %767 = vmatpush.xpose.msra.mxu0 0.0
        %768 = vmatpush.xpose.msra.mxu0 0.0
        %769 = vmatpush.xpose.msra.mxu0 0.0
        %770 = vmatpush.xpose.msra.mxu0 0.0
        %771 = vmatpush.xpose.msra.mxu0 0.0
        %772 = vmatpush.xpose.msra.mxu0 0.0
        %773 = vmatpush.xpose.msra.mxu0 0.0
        %774 = vmatpush.xpose.msra.mxu0 0.0
        %775 = vmatpush.xpose.msra.mxu0 0.0
        %776 = vmatpush.xpose.msra.mxu0 0.0
        %777 = vmatpush.xpose.msra.mxu0 0.0
        %778 = vmatpush.xpose.msra.mxu0 0.0
        %779 = vmatpush.xpose.msra.mxu0 0.0
        %780 = vmatpush.xpose.msra.mxu0 0.0
        %781 = vmatpush.xpose.msra.mxu0 0.0
        %v782 = vand.u32 %v689, 4294901760
        %783 = vmatpush.xpose.msra.mxu0 %v782
        %v784 = vand.u32 %v686, 4294901760
        %v785 = vsub.f32 %v686, %v784
        %v786 = vand.u32 %v785, 4294901760
        %787 = vmatmul.f32.gmra.mxu0 %v786
        %v788 = vpop.f32.mrf.mxu0
        %v789 = vadd.f32 %v765, %v788
        %790 = vdwg.mxu0
        %791 = vmatpush.xpose.msra.mxu0 0.0
        %792 = vmatpush.xpose.msra.mxu0 0.0
        %793 = vmatpush.xpose.msra.mxu0 0.0
        %794 = vmatpush.xpose.msra.mxu0 0.0
        %795 = vmatpush.xpose.msra.mxu0 0.0
        %796 = vmatpush.xpose.msra.mxu0 0.0
        %797 = vmatpush.xpose.msra.mxu0 0.0
        %798 = vmatpush.xpose.msra.mxu0 0.0
        %799 = vmatpush.xpose.msra.mxu0 0.0
        %800 = vmatpush.xpose.msra.mxu0 0.0
        %801 = vmatpush.xpose.msra.mxu0 0.0
        %802 = vmatpush.xpose.msra.mxu0 0.0
        %803 = vmatpush.xpose.msra.mxu0 0.0
        %804 = vmatpush.xpose.msra.mxu0 0.0
        %805 = vmatpush.xpose.msra.mxu0 0.0
        %v806 = vand.u32 %v689, 4294901760
        %v807 = vsub.f32 %v689, %v806
        %v808 = vand.u32 %v807, 4294901760
        %809 = vmatpush.xpose.msra.mxu0 %v808
        %v810 = vand.u32 %v686, 4294901760
        %811 = vmatmul.f32.gmra.mxu0 %v810
        %v812 = vpop.f32.mrf.mxu0
        %v813 = vadd.f32 %v789, %v812
        %814 = vdwg.mxu0
        %815 = vmatpush.xpose.msra.mxu0 0.0
        %816 = vmatpush.xpose.msra.mxu0 0.0
        %817 = vmatpush.xpose.msra.mxu0 0.0
        %818 = vmatpush.xpose.msra.mxu0 0.0
        %819 = vmatpush.xpose.msra.mxu0 0.0
        %820 = vmatpush.xpose.msra.mxu0 0.0
        %821 = vmatpush.xpose.msra.mxu0 0.0
        %822 = vmatpush.xpose.msra.mxu0 0.0
        %823 = vmatpush.xpose.msra.mxu0 0.0
        %824 = vmatpush.xpose.msra.mxu0 0.0
        %825 = vmatpush.xpose.msra.mxu0 0.0
        %826 = vmatpush.xpose.msra.mxu0 0.0
        %827 = vmatpush.xpose.msra.mxu0 0.0
        %828 = vmatpush.xpose.msra.mxu0 0.0
        %829 = vmatpush.xpose.msra.mxu0 0.0
        %v830 = vand.u32 %v689, 4294901760
        %831 = vmatpush.xpose.msra.mxu0 %v830
        %v832 = vand.u32 %v686, 4294901760
        %833 = vmatmul.f32.gmra.mxu0 %v832
        %v834 = vpop.f32.mrf.mxu0
        %v835 = vadd.f32 %v813, %v834
        %836 = vdwg.mxu0
        %v838 = vsel %vm684, %v673, 0
        %v841 = vsel %vm684, %v677, 0
        %843 = vmatpush.xpose.msra.mxu0 0.0
        %844 = vmatpush.xpose.msra.mxu0 0.0
        %845 = vmatpush.xpose.msra.mxu0 0.0
        %846 = vmatpush.xpose.msra.mxu0 0.0
        %847 = vmatpush.xpose.msra.mxu0 0.0
        %848 = vmatpush.xpose.msra.mxu0 0.0
        %849 = vmatpush.xpose.msra.mxu0 0.0
        %850 = vmatpush.xpose.msra.mxu0 0.0
        %851 = vmatpush.xpose.msra.mxu0 0.0
        %852 = vmatpush.xpose.msra.mxu0 0.0
        %853 = vmatpush.xpose.msra.mxu0 0.0
        %854 = vmatpush.xpose.msra.mxu0 0.0
        %855 = vmatpush.xpose.msra.mxu0 0.0
        %856 = vmatpush.xpose.msra.mxu0 0.0
        %857 = vmatpush.xpose.msra.mxu0 0.0
        %v858 = vand.u32 %v841, 4294901760
        %859 = vmatpush.xpose.msra.mxu0 %v858
        %v860 = vand.u32 %v838, 4294901760
        %v861 = vsub.f32 %v838, %v860
        %v862 = vand.u32 %v861, 4294901760
        %v863 = vsub.f32 %v861, %v862
        %v864 = vand.u32 %v863, 4294901760
        %865 = vmatmul.f32.gmra.mxu0 %v864
        %v866 = vpop.f32.mrf.mxu0
        %v867 = vadd.f32 0.0, %v866
        %868 = vdwg.mxu0
        %869 = vmatpush.xpose.msra.mxu0 0.0
        %870 = vmatpush.xpose.msra.mxu0 0.0
        %871 = vmatpush.xpose.msra.mxu0 0.0
        %872 = vmatpush.xpose.msra.mxu0 0.0
        %873 = vmatpush.xpose.msra.mxu0 0.0
        %874 = vmatpush.xpose.msra.mxu0 0.0
        %875 = vmatpush.xpose.msra.mxu0 0.0
        %876 = vmatpush.xpose.msra.mxu0 0.0
        %877 = vmatpush.xpose.msra.mxu0 0.0
        %878 = vmatpush.xpose.msra.mxu0 0.0
        %879 = vmatpush.xpose.msra.mxu0 0.0
        %880 = vmatpush.xpose.msra.mxu0 0.0
        %881 = vmatpush.xpose.msra.mxu0 0.0
        %882 = vmatpush.xpose.msra.mxu0 0.0
        %883 = vmatpush.xpose.msra.mxu0 0.0
        %v884 = vand.u32 %v841, 4294901760
        %v885 = vsub.f32 %v841, %v884
        %v886 = vand.u32 %v885, 4294901760
        %v887 = vsub.f32 %v885, %v886
        %v888 = vand.u32 %v887, 4294901760
        %889 = vmatpush.xpose.msra.mxu0 %v888
        %v890 = vand.u32 %v838, 4294901760
        %891 = vmatmul.f32.gmra.mxu0 %v890
        %v892 = vpop.f32.mrf.mxu0
        %v893 = vadd.f32 %v867, %v892
        %894 = vdwg.mxu0
        %895 = vmatpush.xpose.msra.mxu0 0.0
        %896 = vmatpush.xpose.msra.mxu0 0.0
        %897 = vmatpush.xpose.msra.mxu0 0.0
        %898 = vmatpush.xpose.msra.mxu0 0.0
        %899 = vmatpush.xpose.msra.mxu0 0.0
        %900 = vmatpush.xpose.msra.mxu0 0.0
        %901 = vmatpush.xpose.msra.mxu0 0.0
        %902 = vmatpush.xpose.msra.mxu0 0.0
        %903 = vmatpush.xpose.msra.mxu0 0.0
        %904 = vmatpush.xpose.msra.mxu0 0.0
        %905 = vmatpush.xpose.msra.mxu0 0.0
        %906 = vmatpush.xpose.msra.mxu0 0.0
        %907 = vmatpush.xpose.msra.mxu0 0.0
        %908 = vmatpush.xpose.msra.mxu0 0.0
        %909 = vmatpush.xpose.msra.mxu0 0.0
        %v910 = vand.u32 %v841, 4294901760
        %v911 = vsub.f32 %v841, %v910
        %912 = vmatpush.xpose.msra.mxu0 %v911
        %v913 = vand.u32 %v838, 4294901760
        %v914 = vsub.f32 %v838, %v913
        %915 = vmatmul.f32.gmra.mxu0 %v914
        %v916 = vpop.f32.mrf.mxu0
        %v917 = vadd.f32 %v893, %v916
        %918 = vdwg.mxu0
        %919 = vmatpush.xpose.msra.mxu0 0.0
        %920 = vmatpush.xpose.msra.mxu0 0.0
        %921 = vmatpush.xpose.msra.mxu0 0.0
        %922 = vmatpush.xpose.msra.mxu0 0.0
        %923 = vmatpush.xpose.msra.mxu0 0.0
        %924 = vmatpush.xpose.msra.mxu0 0.0
        %925 = vmatpush.xpose.msra.mxu0 0.0
        %926 = vmatpush.xpose.msra.mxu0 0.0
        %927 = vmatpush.xpose.msra.mxu0 0.0
        %928 = vmatpush.xpose.msra.mxu0 0.0
        %929 = vmatpush.xpose.msra.mxu0 0.0
        %930 = vmatpush.xpose.msra.mxu0 0.0
        %931 = vmatpush.xpose.msra.mxu0 0.0
        %932 = vmatpush.xpose.msra.mxu0 0.0
        %933 = vmatpush.xpose.msra.mxu0 0.0
        %v934 = vand.u32 %v841, 4294901760
        %935 = vmatpush.xpose.msra.mxu0 %v934
        %v936 = vand.u32 %v838, 4294901760
        %v937 = vsub.f32 %v838, %v936
        %v938 = vand.u32 %v937, 4294901760
        %939 = vmatmul.f32.gmra.mxu0 %v938
        %v940 = vpop.f32.mrf.mxu0
        %v941 = vadd.f32 %v917, %v940
        %942 = vdwg.mxu0
        %943 = vmatpush.xpose.msra.mxu0 0.0
        %944 = vmatpush.xpose.msra.mxu0 0.0
        %945 = vmatpush.xpose.msra.mxu0 0.0
        %946 = vmatpush.xpose.msra.mxu0 0.0
        %947 = vmatpush.xpose.msra.mxu0 0.0
        %948 = vmatpush.xpose.msra.mxu0 0.0
        %949 = vmatpush.xpose.msra.mxu0 0.0
        %950 = vmatpush.xpose.msra.mxu0 0.0
        %951 = vmatpush.xpose.msra.mxu0 0.0
        %952 = vmatpush.xpose.msra.mxu0 0.0
        %953 = vmatpush.xpose.msra.mxu0 0.0
        %954 = vmatpush.xpose.msra.mxu0 0.0
        %955 = vmatpush.xpose.msra.mxu0 0.0
        %956 = vmatpush.xpose.msra.mxu0 0.0
        %957 = vmatpush.xpose.msra.mxu0 0.0
        %v958 = vand.u32 %v841, 4294901760
        %v959 = vsub.f32 %v841, %v958
        %v960 = vand.u32 %v959, 4294901760
        %961 = vmatpush.xpose.msra.mxu0 %v960
        %v962 = vand.u32 %v838, 4294901760
        %963 = vmatmul.f32.gmra.mxu0 %v962
        %v964 = vpop.f32.mrf.mxu0
        %v965 = vadd.f32 %v941, %v964
        %966 = vdwg.mxu0
        %967 = vmatpush.xpose.msra.mxu0 0.0
        %968 = vmatpush.xpose.msra.mxu0 0.0
        %969 = vmatpush.xpose.msra.mxu0 0.0
        %970 = vmatpush.xpose.msra.mxu0 0.0
        %971 = vmatpush.xpose.msra.mxu0 0.0
        %972 = vmatpush.xpose.msra.mxu0 0.0
        %973 = vmatpush.xpose.msra.mxu0 0.0
        %974 = vmatpush.xpose.msra.mxu0 0.0
        %975 = vmatpush.xpose.msra.mxu0 0.0
        %976 = vmatpush.xpose.msra.mxu0 0.0
        %977 = vmatpush.xpose.msra.mxu0 0.0
        %978 = vmatpush.xpose.msra.mxu0 0.0
        %979 = vmatpush.xpose.msra.mxu0 0.0
        %980 = vmatpush.xpose.msra.mxu0 0.0
        %981 = vmatpush.xpose.msra.mxu0 0.0
        %v982 = vand.u32 %v841, 4294901760
        %983 = vmatpush.xpose.msra.mxu0 %v982
        %v984 = vand.u32 %v838, 4294901760
        %985 = vmatmul.f32.gmra.mxu0 %v984
        %v986 = vpop.f32.mrf.mxu0
        %v987 = vadd.f32 %v965, %v986
        %988 = vdwg.mxu0
        %v990 = vsel %vm684, %v674, 0
        %v993 = vsel %vm684, %v678, 0
        %995 = vmatpush.xpose.msra.mxu0 0.0
        %996 = vmatpush.xpose.msra.mxu0 0.0
        %997 = vmatpush.xpose.msra.mxu0 0.0
        %998 = vmatpush.xpose.msra.mxu0 0.0
        %999 = vmatpush.xpose.msra.mxu0 0.0
        %1000 = vmatpush.xpose.msra.mxu0 0.0
        %1001 = vmatpush.xpose.msra.mxu0 0.0
        %1002 = vmatpush.xpose.msra.mxu0 0.0
        %1003 = vmatpush.xpose.msra.mxu0 0.0
        %1004 = vmatpush.xpose.msra.mxu0 0.0
        %1005 = vmatpush.xpose.msra.mxu0 0.0
        %1006 = vmatpush.xpose.msra.mxu0 0.0
        %1007 = vmatpush.xpose.msra.mxu0 0.0
        %1008 = vmatpush.xpose.msra.mxu0 0.0
        %1009 = vmatpush.xpose.msra.mxu0 0.0
        %v1010 = vand.u32 %v993, 4294901760
        %1011 = vmatpush.xpose.msra.mxu0 %v1010
        %v1012 = vand.u32 %v990, 4294901760
        %v1013 = vsub.f32 %v990, %v1012
        %v1014 = vand.u32 %v1013, 4294901760
        %v1015 = vsub.f32 %v1013, %v1014
        %v1016 = vand.u32 %v1015, 4294901760
        %1017 = vmatmul.f32.gmra.mxu0 %v1016
        %v1018 = vpop.f32.mrf.mxu0
        %v1019 = vadd.f32 0.0, %v1018
        %1020 = vdwg.mxu0
        %1021 = vmatpush.xpose.msra.mxu0 0.0
        %1022 = vmatpush.xpose.msra.mxu0 0.0
        %1023 = vmatpush.xpose.msra.mxu0 0.0
        %1024 = vmatpush.xpose.msra.mxu0 0.0
        %1025 = vmatpush.xpose.msra.mxu0 0.0
        %1026 = vmatpush.xpose.msra.mxu0 0.0
        %1027 = vmatpush.xpose.msra.mxu0 0.0
        %1028 = vmatpush.xpose.msra.mxu0 0.0
        %1029 = vmatpush.xpose.msra.mxu0 0.0
        %1030 = vmatpush.xpose.msra.mxu0 0.0
        %1031 = vmatpush.xpose.msra.mxu0 0.0
        %1032 = vmatpush.xpose.msra.mxu0 0.0
        %1033 = vmatpush.xpose.msra.mxu0 0.0
        %1034 = vmatpush.xpose.msra.mxu0 0.0
        %1035 = vmatpush.xpose.msra.mxu0 0.0
        %v1036 = vand.u32 %v993, 4294901760
        %v1037 = vsub.f32 %v993, %v1036
        %v1038 = vand.u32 %v1037, 4294901760
        %v1039 = vsub.f32 %v1037, %v1038
        %v1040 = vand.u32 %v1039, 4294901760
        %1041 = vmatpush.xpose.msra.mxu0 %v1040
        %v1042 = vand.u32 %v990, 4294901760
        %1043 = vmatmul.f32.gmra.mxu0 %v1042
        %v1044 = vpop.f32.mrf.mxu0
        %v1045 = vadd.f32 %v1019, %v1044
        %1046 = vdwg.mxu0
        %1047 = vmatpush.xpose.msra.mxu0 0.0
        %1048 = vmatpush.xpose.msra.mxu0 0.0
        %1049 = vmatpush.xpose.msra.mxu0 0.0
        %1050 = vmatpush.xpose.msra.mxu0 0.0
        %1051 = vmatpush.xpose.msra.mxu0 0.0
        %1052 = vmatpush.xpose.msra.mxu0 0.0
        %1053 = vmatpush.xpose.msra.mxu0 0.0
        %1054 = vmatpush.xpose.msra.mxu0 0.0
        %1055 = vmatpush.xpose.msra.mxu0 0.0
        %1056 = vmatpush.xpose.msra.mxu0 0.0
        %1057 = vmatpush.xpose.msra.mxu0 0.0
        %1058 = vmatpush.xpose.msra.mxu0 0.0
        %1059 = vmatpush.xpose.msra.mxu0 0.0
        %1060 = vmatpush.xpose.msra.mxu0 0.0
        %1061 = vmatpush.xpose.msra.mxu0 0.0
        %v1062 = vand.u32 %v993, 4294901760
        %v1063 = vsub.f32 %v993, %v1062
        %1064 = vmatpush.xpose.msra.mxu0 %v1063
        %v1065 = vand.u32 %v990, 4294901760
        %v1066 = vsub.f32 %v990, %v1065
        %1067 = vmatmul.f32.gmra.mxu0 %v1066
        %v1068 = vpop.f32.mrf.mxu0
        %v1069 = vadd.f32 %v1045, %v1068
        %1070 = vdwg.mxu0
        %1071 = vmatpush.xpose.msra.mxu0 0.0
        %1072 = vmatpush.xpose.msra.mxu0 0.0
        %1073 = vmatpush.xpose.msra.mxu0 0.0
        %1074 = vmatpush.xpose.msra.mxu0 0.0
        %1075 = vmatpush.xpose.msra.mxu0 0.0
        %1076 = vmatpush.xpose.msra.mxu0 0.0
        %1077 = vmatpush.xpose.msra.mxu0 0.0
        %1078 = vmatpush.xpose.msra.mxu0 0.0
        %1079 = vmatpush.xpose.msra.mxu0 0.0
        %1080 = vmatpush.xpose.msra.mxu0 0.0
        %1081 = vmatpush.xpose.msra.mxu0 0.0
        %1082 = vmatpush.xpose.msra.mxu0 0.0
        %1083 = vmatpush.xpose.msra.mxu0 0.0
        %1084 = vmatpush.xpose.msra.mxu0 0.0
        %1085 = vmatpush.xpose.msra.mxu0 0.0
        %v1086 = vand.u32 %v993, 4294901760
        %1087 = vmatpush.xpose.msra.mxu0 %v1086
        %v1088 = vand.u32 %v990, 4294901760
        %v1089 = vsub.f32 %v990, %v1088
        %v1090 = vand.u32 %v1089, 4294901760
        %1091 = vmatmul.f32.gmra.mxu0 %v1090
        %v1092 = vpop.f32.mrf.mxu0
        %v1093 = vadd.f32 %v1069, %v1092
        %1094 = vdwg.mxu0
        %1095 = vmatpush.xpose.msra.mxu0 0.0
        %1096 = vmatpush.xpose.msra.mxu0 0.0
        %1097 = vmatpush.xpose.msra.mxu0 0.0
        %1098 = vmatpush.xpose.msra.mxu0 0.0
        %1099 = vmatpush.xpose.msra.mxu0 0.0
        %1100 = vmatpush.xpose.msra.mxu0 0.0
        %1101 = vmatpush.xpose.msra.mxu0 0.0
        %1102 = vmatpush.xpose.msra.mxu0 0.0
        %1103 = vmatpush.xpose.msra.mxu0 0.0
        %1104 = vmatpush.xpose.msra.mxu0 0.0
        %1105 = vmatpush.xpose.msra.mxu0 0.0
        %1106 = vmatpush.xpose.msra.mxu0 0.0
        %1107 = vmatpush.xpose.msra.mxu0 0.0
        %1108 = vmatpush.xpose.msra.mxu0 0.0
        %1109 = vmatpush.xpose.msra.mxu0 0.0
        %v1110 = vand.u32 %v993, 4294901760
        %v1111 = vsub.f32 %v993, %v1110
        %v1112 = vand.u32 %v1111, 4294901760
        %1113 = vmatpush.xpose.msra.mxu0 %v1112
        %v1114 = vand.u32 %v990, 4294901760
        %1115 = vmatmul.f32.gmra.mxu0 %v1114
        %v1116 = vpop.f32.mrf.mxu0
        %v1117 = vadd.f32 %v1093, %v1116
        %1118 = vdwg.mxu0
        %1119 = vmatpush.xpose.msra.mxu0 0.0
        %1120 = vmatpush.xpose.msra.mxu0 0.0
        %1121 = vmatpush.xpose.msra.mxu0 0.0
        %1122 = vmatpush.xpose.msra.mxu0 0.0
        %1123 = vmatpush.xpose.msra.mxu0 0.0
        %1124 = vmatpush.xpose.msra.mxu0 0.0
        %1125 = vmatpush.xpose.msra.mxu0 0.0
        %1126 = vmatpush.xpose.msra.mxu0 0.0
        %1127 = vmatpush.xpose.msra.mxu0 0.0
        %1128 = vmatpush.xpose.msra.mxu0 0.0
        %1129 = vmatpush.xpose.msra.mxu0 0.0
        %1130 = vmatpush.xpose.msra.mxu0 0.0
        %1131 = vmatpush.xpose.msra.mxu0 0.0
        %1132 = vmatpush.xpose.msra.mxu0 0.0
        %1133 = vmatpush.xpose.msra.mxu0 0.0
        %v1134 = vand.u32 %v993, 4294901760
        %1135 = vmatpush.xpose.msra.mxu0 %v1134
        %v1136 = vand.u32 %v990, 4294901760
        %1137 = vmatmul.f32.gmra.mxu0 %v1136
        %v1138 = vpop.f32.mrf.mxu0
        %v1139 = vadd.f32 %v1117, %v1138
        %1140 = vdwg.mxu0
        %v1142 = vsel %vm684, %v675, 0
        %v1145 = vsel %vm684, %v679, 0
        %1147 = vmatpush.xpose.msra.mxu0 0.0
        %1148 = vmatpush.xpose.msra.mxu0 0.0
        %1149 = vmatpush.xpose.msra.mxu0 0.0
        %1150 = vmatpush.xpose.msra.mxu0 0.0
        %1151 = vmatpush.xpose.msra.mxu0 0.0
        %1152 = vmatpush.xpose.msra.mxu0 0.0
        %1153 = vmatpush.xpose.msra.mxu0 0.0
        %1154 = vmatpush.xpose.msra.mxu0 0.0
        %1155 = vmatpush.xpose.msra.mxu0 0.0
        %1156 = vmatpush.xpose.msra.mxu0 0.0
        %1157 = vmatpush.xpose.msra.mxu0 0.0
        %1158 = vmatpush.xpose.msra.mxu0 0.0
        %1159 = vmatpush.xpose.msra.mxu0 0.0
        %1160 = vmatpush.xpose.msra.mxu0 0.0
        %1161 = vmatpush.xpose.msra.mxu0 0.0
        %v1162 = vand.u32 %v1145, 4294901760
        %1163 = vmatpush.xpose.msra.mxu0 %v1162
        %v1164 = vand.u32 %v1142, 4294901760
        %v1165 = vsub.f32 %v1142, %v1164
        %v1166 = vand.u32 %v1165, 4294901760
        %v1167 = vsub.f32 %v1165, %v1166
        %v1168 = vand.u32 %v1167, 4294901760
        %1169 = vmatmul.f32.gmra.mxu0 %v1168
        %v1170 = vpop.f32.mrf.mxu0
        %v1171 = vadd.f32 0.0, %v1170
        %1172 = vdwg.mxu0
        %1173 = vmatpush.xpose.msra.mxu0 0.0
        %1174 = vmatpush.xpose.msra.mxu0 0.0
        %1175 = vmatpush.xpose.msra.mxu0 0.0
        %1176 = vmatpush.xpose.msra.mxu0 0.0
        %1177 = vmatpush.xpose.msra.mxu0 0.0
        %1178 = vmatpush.xpose.msra.mxu0 0.0
        %1179 = vmatpush.xpose.msra.mxu0 0.0
        %1180 = vmatpush.xpose.msra.mxu0 0.0
        %1181 = vmatpush.xpose.msra.mxu0 0.0
        %1182 = vmatpush.xpose.msra.mxu0 0.0
        %1183 = vmatpush.xpose.msra.mxu0 0.0
        %1184 = vmatpush.xpose.msra.mxu0 0.0
        %1185 = vmatpush.xpose.msra.mxu0 0.0
        %1186 = vmatpush.xpose.msra.mxu0 0.0
        %1187 = vmatpush.xpose.msra.mxu0 0.0
        %v1188 = vand.u32 %v1145, 4294901760
        %v1189 = vsub.f32 %v1145, %v1188
        %v1190 = vand.u32 %v1189, 4294901760
        %v1191 = vsub.f32 %v1189, %v1190
        %v1192 = vand.u32 %v1191, 4294901760
        %1193 = vmatpush.xpose.msra.mxu0 %v1192
        %v1194 = vand.u32 %v1142, 4294901760
        %1195 = vmatmul.f32.gmra.mxu0 %v1194
        %v1196 = vpop.f32.mrf.mxu0
        %v1197 = vadd.f32 %v1171, %v1196
        %1198 = vdwg.mxu0
        %1199 = vmatpush.xpose.msra.mxu0 0.0
        %1200 = vmatpush.xpose.msra.mxu0 0.0
        %1201 = vmatpush.xpose.msra.mxu0 0.0
        %1202 = vmatpush.xpose.msra.mxu0 0.0
        %1203 = vmatpush.xpose.msra.mxu0 0.0
        %1204 = vmatpush.xpose.msra.mxu0 0.0
        %1205 = vmatpush.xpose.msra.mxu0 0.0
        %1206 = vmatpush.xpose.msra.mxu0 0.0
        %1207 = vmatpush.xpose.msra.mxu0 0.0
        %1208 = vmatpush.xpose.msra.mxu0 0.0
        %1209 = vmatpush.xpose.msra.mxu0 0.0
        %1210 = vmatpush.xpose.msra.mxu0 0.0
        %1211 = vmatpush.xpose.msra.mxu0 0.0
        %1212 = vmatpush.xpose.msra.mxu0 0.0
        %1213 = vmatpush.xpose.msra.mxu0 0.0
        %v1214 = vand.u32 %v1145, 4294901760
        %v1215 = vsub.f32 %v1145, %v1214
        %1216 = vmatpush.xpose.msra.mxu0 %v1215
        %v1217 = vand.u32 %v1142, 4294901760
        %v1218 = vsub.f32 %v1142, %v1217
        %1219 = vmatmul.f32.gmra.mxu0 %v1218
        %v1220 = vpop.f32.mrf.mxu0
        %v1221 = vadd.f32 %v1197, %v1220
        %1222 = vdwg.mxu0
        %1223 = vmatpush.xpose.msra.mxu0 0.0
        %1224 = vmatpush.xpose.msra.mxu0 0.0
        %1225 = vmatpush.xpose.msra.mxu0 0.0
        %1226 = vmatpush.xpose.msra.mxu0 0.0
        %1227 = vmatpush.xpose.msra.mxu0 0.0
        %1228 = vmatpush.xpose.msra.mxu0 0.0
        %1229 = vmatpush.xpose.msra.mxu0 0.0
        %1230 = vmatpush.xpose.msra.mxu0 0.0
        %1231 = vmatpush.xpose.msra.mxu0 0.0
        %1232 = vmatpush.xpose.msra.mxu0 0.0
        %1233 = vmatpush.xpose.msra.mxu0 0.0
        %1234 = vmatpush.xpose.msra.mxu0 0.0
        %1235 = vmatpush.xpose.msra.mxu0 0.0
        %1236 = vmatpush.xpose.msra.mxu0 0.0
        %1237 = vmatpush.xpose.msra.mxu0 0.0
        %v1238 = vand.u32 %v1145, 4294901760
        %1239 = vmatpush.xpose.msra.mxu0 %v1238
        %v1240 = vand.u32 %v1142, 4294901760
        %v1241 = vsub.f32 %v1142, %v1240
        %v1242 = vand.u32 %v1241, 4294901760
        %1243 = vmatmul.f32.gmra.mxu0 %v1242
        %v1244 = vpop.f32.mrf.mxu0
        %v1245 = vadd.f32 %v1221, %v1244
        %1246 = vdwg.mxu0
        %1247 = vmatpush.xpose.msra.mxu0 0.0
        %1248 = vmatpush.xpose.msra.mxu0 0.0
        %1249 = vmatpush.xpose.msra.mxu0 0.0
        %1250 = vmatpush.xpose.msra.mxu0 0.0
        %1251 = vmatpush.xpose.msra.mxu0 0.0
        %1252 = vmatpush.xpose.msra.mxu0 0.0
        %1253 = vmatpush.xpose.msra.mxu0 0.0
        %1254 = vmatpush.xpose.msra.mxu0 0.0
        %1255 = vmatpush.xpose.msra.mxu0 0.0
        %1256 = vmatpush.xpose.msra.mxu0 0.0
        %1257 = vmatpush.xpose.msra.mxu0 0.0
        %1258 = vmatpush.xpose.msra.mxu0 0.0
        %1259 = vmatpush.xpose.msra.mxu0 0.0
        %1260 = vmatpush.xpose.msra.mxu0 0.0
        %1261 = vmatpush.xpose.msra.mxu0 0.0
        %v1262 = vand.u32 %v1145, 4294901760
        %v1263 = vsub.f32 %v1145, %v1262
        %v1264 = vand.u32 %v1263, 4294901760
        %1265 = vmatpush.xpose.msra.mxu0 %v1264
        %v1266 = vand.u32 %v1142, 4294901760
        %1267 = vmatmul.f32.gmra.mxu0 %v1266
        %v1268 = vpop.f32.mrf.mxu0
        %v1269 = vadd.f32 %v1245, %v1268
        %1270 = vdwg.mxu0
        %1271 = vmatpush.xpose.msra.mxu0 0.0
        %1272 = vmatpush.xpose.msra.mxu0 0.0
        %1273 = vmatpush.xpose.msra.mxu0 0.0
        %1274 = vmatpush.xpose.msra.mxu0 0.0
        %1275 = vmatpush.xpose.msra.mxu0 0.0
        %1276 = vmatpush.xpose.msra.mxu0 0.0
        %1277 = vmatpush.xpose.msra.mxu0 0.0
        %1278 = vmatpush.xpose.msra.mxu0 0.0
        %1279 = vmatpush.xpose.msra.mxu0 0.0
        %1280 = vmatpush.xpose.msra.mxu0 0.0
        %1281 = vmatpush.xpose.msra.mxu0 0.0
        %1282 = vmatpush.xpose.msra.mxu0 0.0
        %1283 = vmatpush.xpose.msra.mxu0 0.0
        %1284 = vmatpush.xpose.msra.mxu0 0.0
        %1285 = vmatpush.xpose.msra.mxu0 0.0
        %v1286 = vand.u32 %v1145, 4294901760
        %1287 = vmatpush.xpose.msra.mxu0 %v1286
        %v1288 = vand.u32 %v1142, 4294901760
        %1289 = vmatmul.f32.gmra.mxu0 %v1288
        %v1290 = vpop.f32.mrf.mxu0
        %v1291 = vadd.f32 %v1269, %v1290
        %1292 = vdwg.mxu0
        %v1293 = vsel %vm684, %v835, -inf
        %1294 = vmax.xlane.f32.xlu0 %v1293
        %v1295 = vpop.xlane.xlu0 %1294
        %v1296 = vsel %vm684, %v987, -inf
        %1297 = vmax.xlane.f32.xlu0 %v1296
        %v1298 = vpop.xlane.xlu0 %1297
        %v1299 = vsel %vm684, %v1139, -inf
        %1300 = vmax.xlane.f32.xlu0 %v1299
        %v1301 = vpop.xlane.xlu0 %1300
        %v1302 = vsel %vm684, %v1291, -inf
        %1303 = vmax.xlane.f32.xlu0 %v1302
        %v1304 = vpop.xlane.xlu0 %1303
        %v1305 = vsub.f32 %v835, %v1295
        %v1306 = vsub.f32 %v987, %v1298
        %v1307 = vsub.f32 %v1139, %v1301
        %v1308 = vsub.f32 %v1291, %v1304
        %v1309 = vmul.f32 %v1305, 1.442695
        %v1310 = vpow.pop %v1309
        %v1311 = vmul.f32 %v1306, 1.442695
        %v1312 = vpow.pop %v1311
        %v1313 = vmul.f32 %v1307, 1.442695
        %v1314 = vpow.pop %v1313
        %v1315 = vmul.f32 %v1308, 1.442695
        %v1316 = vpow.pop %v1315
        %v1317 = vsel %vm684, %v1310, 0.0
        %1318 = vadd.xlane.f32.xlu0 %v1317
        %v1319 = vpop.xlane.xlu0 %1318
        %v1320 = vsel %vm684, %v1312, 0.0
        %1321 = vadd.xlane.f32.xlu0 %v1320
        %v1322 = vpop.xlane.xlu0 %1321
        %v1323 = vsel %vm684, %v1314, 0.0
        %1324 = vadd.xlane.f32.xlu0 %v1323
        %v1325 = vpop.xlane.xlu0 %1324
        %v1326 = vsel %vm684, %v1316, 0.0
        %1327 = vadd.xlane.f32.xlu0 %v1326
        %v1328 = vpop.xlane.xlu0 %1327
        %v1329 = vrcp.pop %v1319
        %v1330 = vmul.f32 %v1319, %v1329
        %v1331 = vsub.f32 1.0, %v1330
        %v1332 = vmul.f32 %v1329, %v1331
        %v1333 = vadd.f32 %v1329, %v1332
        %vm1334 = vweird.f32 %v1319
        %vm1335 = vweird.f32 %v1329
        %vm1336 = vmor %vm1334, %vm1335
        %v1337 = vsel %vm1336, %v1329, %v1333
        %v1338 = vand.u32 2147483647, %v1319
        %vm1339 = vcmp.eq.f32.partialorder %v1338, 8.507059e+37
        %v1340 = vand.u32 %v1319, 2147483648
        %v1341 = vor.u32 1.1754944e-38, %v1340
        %v1342 = vsel %vm1339, %v1341, %v1337
        %v1343 = vrcp.pop %v1322
        %v1344 = vmul.f32 %v1322, %v1343
        %v1345 = vsub.f32 1.0, %v1344
        %v1346 = vmul.f32 %v1343, %v1345
        %v1347 = vadd.f32 %v1343, %v1346
        %vm1348 = vweird.f32 %v1322
        %vm1349 = vweird.f32 %v1343
        %vm1350 = vmor %vm1348, %vm1349
        %v1351 = vsel %vm1350, %v1343, %v1347
        %v1352 = vand.u32 2147483647, %v1322
        %vm1353 = vcmp.eq.f32.partialorder %v1352, 8.507059e+37
        %v1354 = vand.u32 %v1322, 2147483648
        %v1355 = vor.u32 1.1754944e-38, %v1354
        %v1356 = vsel %vm1353, %v1355, %v1351
        %v1357 = vrcp.pop %v1325
        %v1358 = vmul.f32 %v1325, %v1357
        %v1359 = vsub.f32 1.0, %v1358
        %v1360 = vmul.f32 %v1357, %v1359
        %v1361 = vadd.f32 %v1357, %v1360
        %vm1362 = vweird.f32 %v1325
        %vm1363 = vweird.f32 %v1357
        %vm1364 = vmor %vm1362, %vm1363
        %v1365 = vsel %vm1364, %v1357, %v1361
        %v1366 = vand.u32 2147483647, %v1325
        %vm1367 = vcmp.eq.f32.partialorder %v1366, 8.507059e+37
        %v1368 = vand.u32 %v1325, 2147483648
        %v1369 = vor.u32 1.1754944e-38, %v1368
        %v1370 = vsel %vm1367, %v1369, %v1365
        %v1371 = vrcp.pop %v1328
        %v1372 = vmul.f32 %v1328, %v1371
        %v1373 = vsub.f32 1.0, %v1372
        %v1374 = vmul.f32 %v1371, %v1373
        %v1375 = vadd.f32 %v1371, %v1374
        %vm1376 = vweird.f32 %v1328
        %vm1377 = vweird.f32 %v1371
        %vm1378 = vmor %vm1376, %vm1377
        %v1379 = vsel %vm1378, %v1371, %v1375
        %v1380 = vand.u32 2147483647, %v1328
        %vm1381 = vcmp.eq.f32.partialorder %v1380, 8.507059e+37
        %v1382 = vand.u32 %v1328, 2147483648
        %v1383 = vor.u32 1.1754944e-38, %v1382
        %v1384 = vsel %vm1381, %v1383, %v1379
        %v1385 = vmul.f32 %v1310, %v1342
        %v1386 = vmul.f32 %v1312, %v1356
        %v1387 = vmul.f32 %v1314, %v1370
        %v1388 = vmul.f32 %v1316, %v1384
        %1389 = vst.msk [vmem:[%s662] sm:$0xff] %vm684, %v1385
        %1390 = vst.msk [vmem:[%s662 + $0x8] sm:$0xff] %vm684, %v1386
        %1391 = vst.msk [vmem:[%s662 + $0x10] sm:$0xff] %vm684, %v1387
        %1392 = vst.msk [vmem:[%s662 + $0x18] sm:$0xff] %vm684, %v1388
        %v1394 = vsel %vm684, %v1385, 0
        %1396 = vmatpush.msra.mxu0 0.0
        %1397 = vmatpush.msra.mxu0 0.0
        %1398 = vmatpush.msra.mxu0 0.0
        %1399 = vmatpush.msra.mxu0 0.0
        %1400 = vmatpush.msra.mxu0 0.0
        %1401 = vmatpush.msra.mxu0 0.0
        %1402 = vmatpush.msra.mxu0 0.0
        %1403 = vmatpush.msra.mxu0 0.0
        %1404 = vmatpush.msra.mxu0 0.0
        %1405 = vmatpush.msra.mxu0 0.0
        %1406 = vmatpush.msra.mxu0 0.0
        %1407 = vmatpush.msra.mxu0 0.0
        %1408 = vmatpush.msra.mxu0 0.0
        %1409 = vmatpush.msra.mxu0 0.0
        %1410 = vmatpush.msra.mxu0 0.0
        %v1411 = vand.u32 %v680, 4294901760
        %1412 = vmatpush.msra.mxu0 %v1411
        %v1413 = vand.u32 %v1394, 4294901760
        %v1414 = vsub.f32 %v1394, %v1413
        %v1415 = vand.u32 %v1414, 4294901760
        %v1416 = vsub.f32 %v1414, %v1415
        %v1417 = vand.u32 %v1416, 4294901760
        %1418 = vmatmul.f32.gmra.mxu0 %v1417
        %v1419 = vpop.f32.mrf.mxu0
        %v1420 = vadd.f32 0.0, %v1419
        %1421 = vdwg.mxu0
        %1422 = vmatpush.msra.mxu0 0.0
        %1423 = vmatpush.msra.mxu0 0.0
        %1424 = vmatpush.msra.mxu0 0.0
        %1425 = vmatpush.msra.mxu0 0.0
        %1426 = vmatpush.msra.mxu0 0.0
        %1427 = vmatpush.msra.mxu0 0.0
        %1428 = vmatpush.msra.mxu0 0.0
        %1429 = vmatpush.msra.mxu0 0.0
        %1430 = vmatpush.msra.mxu0 0.0
        %1431 = vmatpush.msra.mxu0 0.0
        %1432 = vmatpush.msra.mxu0 0.0
        %1433 = vmatpush.msra.mxu0 0.0
        %1434 = vmatpush.msra.mxu0 0.0
        %1435 = vmatpush.msra.mxu0 0.0
        %1436 = vmatpush.msra.mxu0 0.0
        %v1437 = vand.u32 %v680, 4294901760
        %v1438 = vsub.f32 %v680, %v1437
        %v1439 = vand.u32 %v1438, 4294901760
        %v1440 = vsub.f32 %v1438, %v1439
        %v1441 = vand.u32 %v1440, 4294901760
        %1442 = vmatpush.msra.mxu0 %v1441
        %v1443 = vand.u32 %v1394, 4294901760
        %1444 = vmatmul.f32.gmra.mxu0 %v1443
        %v1445 = vpop.f32.mrf.mxu0
        %v1446 = vadd.f32 %v1420, %v1445
        %1447 = vdwg.mxu0
        %1448 = vmatpush.msra.mxu0 0.0
        %1449 = vmatpush.msra.mxu0 0.0
        %1450 = vmatpush.msra.mxu0 0.0
        %1451 = vmatpush.msra.mxu0 0.0
        %1452 = vmatpush.msra.mxu0 0.0
        %1453 = vmatpush.msra.mxu0 0.0
        %1454 = vmatpush.msra.mxu0 0.0
        %1455 = vmatpush.msra.mxu0 0.0
        %1456 = vmatpush.msra.mxu0 0.0
        %1457 = vmatpush.msra.mxu0 0.0
        %1458 = vmatpush.msra.mxu0 0.0
        %1459 = vmatpush.msra.mxu0 0.0
        %1460 = vmatpush.msra.mxu0 0.0
        %1461 = vmatpush.msra.mxu0 0.0
        %1462 = vmatpush.msra.mxu0 0.0
        %v1463 = vand.u32 %v680, 4294901760
        %v1464 = vsub.f32 %v680, %v1463
        %1465 = vmatpush.msra.mxu0 %v1464
        %v1466 = vand.u32 %v1394, 4294901760
        %v1467 = vsub.f32 %v1394, %v1466
        %1468 = vmatmul.f32.gmra.mxu0 %v1467
        %v1469 = vpop.f32.mrf.mxu0
        %v1470 = vadd.f32 %v1446, %v1469
        %1471 = vdwg.mxu0
        %1472 = vmatpush.msra.mxu0 0.0
        %1473 = vmatpush.msra.mxu0 0.0
        %1474 = vmatpush.msra.mxu0 0.0
        %1475 = vmatpush.msra.mxu0 0.0
        %1476 = vmatpush.msra.mxu0 0.0
        %1477 = vmatpush.msra.mxu0 0.0
        %1478 = vmatpush.msra.mxu0 0.0
        %1479 = vmatpush.msra.mxu0 0.0
        %1480 = vmatpush.msra.mxu0 0.0
        %1481 = vmatpush.msra.mxu0 0.0
        %1482 = vmatpush.msra.mxu0 0.0
        %1483 = vmatpush.msra.mxu0 0.0
        %1484 = vmatpush.msra.mxu0 0.0
        %1485 = vmatpush.msra.mxu0 0.0
        %1486 = vmatpush.msra.mxu0 0.0
        %v1487 = vand.u32 %v680, 4294901760
        %1488 = vmatpush.msra.mxu0 %v1487
        %v1489 = vand.u32 %v1394, 4294901760
        %v1490 = vsub.f32 %v1394, %v1489
        %v1491 = vand.u32 %v1490, 4294901760
        %1492 = vmatmul.f32.gmra.mxu0 %v1491
        %v1493 = vpop.f32.mrf.mxu0
        %v1494 = vadd.f32 %v1470, %v1493
        %1495 = vdwg.mxu0
        %1496 = vmatpush.msra.mxu0 0.0
        %1497 = vmatpush.msra.mxu0 0.0
        %1498 = vmatpush.msra.mxu0 0.0
        %1499 = vmatpush.msra.mxu0 0.0
        %1500 = vmatpush.msra.mxu0 0.0
        %1501 = vmatpush.msra.mxu0 0.0
        %1502 = vmatpush.msra.mxu0 0.0
        %1503 = vmatpush.msra.mxu0 0.0
        %1504 = vmatpush.msra.mxu0 0.0
        %1505 = vmatpush.msra.mxu0 0.0
        %1506 = vmatpush.msra.mxu0 0.0
        %1507 = vmatpush.msra.mxu0 0.0
        %1508 = vmatpush.msra.mxu0 0.0
        %1509 = vmatpush.msra.mxu0 0.0
        %1510 = vmatpush.msra.mxu0 0.0
        %v1511 = vand.u32 %v680, 4294901760
        %v1512 = vsub.f32 %v680, %v1511
        %v1513 = vand.u32 %v1512, 4294901760
        %1514 = vmatpush.msra.mxu0 %v1513
        %v1515 = vand.u32 %v1394, 4294901760
        %1516 = vmatmul.f32.gmra.mxu0 %v1515
        %v1517 = vpop.f32.mrf.mxu0
        %v1518 = vadd.f32 %v1494, %v1517
        %1519 = vdwg.mxu0
        %1520 = vmatpush.msra.mxu0 0.0
        %1521 = vmatpush.msra.mxu0 0.0
        %1522 = vmatpush.msra.mxu0 0.0
        %1523 = vmatpush.msra.mxu0 0.0
        %1524 = vmatpush.msra.mxu0 0.0
        %1525 = vmatpush.msra.mxu0 0.0
        %1526 = vmatpush.msra.mxu0 0.0
        %1527 = vmatpush.msra.mxu0 0.0
        %1528 = vmatpush.msra.mxu0 0.0
        %1529 = vmatpush.msra.mxu0 0.0
        %1530 = vmatpush.msra.mxu0 0.0
        %1531 = vmatpush.msra.mxu0 0.0
        %1532 = vmatpush.msra.mxu0 0.0
        %1533 = vmatpush.msra.mxu0 0.0
        %1534 = vmatpush.msra.mxu0 0.0
        %v1535 = vand.u32 %v680, 4294901760
        %1536 = vmatpush.msra.mxu0 %v1535
        %v1537 = vand.u32 %v1394, 4294901760
        %1538 = vmatmul.f32.gmra.mxu0 %v1537
        %v1539 = vpop.f32.mrf.mxu0
        %v1540 = vadd.f32 %v1518, %v1539
        %1541 = vdwg.mxu0
        %v1543 = vsel %vm684, %v1386, 0
        %1545 = vmatpush.msra.mxu0 0.0
        %1546 = vmatpush.msra.mxu0 0.0
        %1547 = vmatpush.msra.mxu0 0.0
        %1548 = vmatpush.msra.mxu0 0.0
        %1549 = vmatpush.msra.mxu0 0.0
        %1550 = vmatpush.msra.mxu0 0.0
        %1551 = vmatpush.msra.mxu0 0.0
        %1552 = vmatpush.msra.mxu0 0.0
        %1553 = vmatpush.msra.mxu0 0.0
        %1554 = vmatpush.msra.mxu0 0.0
        %1555 = vmatpush.msra.mxu0 0.0
        %1556 = vmatpush.msra.mxu0 0.0
        %1557 = vmatpush.msra.mxu0 0.0
        %1558 = vmatpush.msra.mxu0 0.0
        %1559 = vmatpush.msra.mxu0 0.0
        %v1560 = vand.u32 %v681, 4294901760
        %1561 = vmatpush.msra.mxu0 %v1560
        %v1562 = vand.u32 %v1543, 4294901760
        %v1563 = vsub.f32 %v1543, %v1562
        %v1564 = vand.u32 %v1563, 4294901760
        %v1565 = vsub.f32 %v1563, %v1564
        %v1566 = vand.u32 %v1565, 4294901760
        %1567 = vmatmul.f32.gmra.mxu0 %v1566
        %v1568 = vpop.f32.mrf.mxu0
        %v1569 = vadd.f32 0.0, %v1568
        %1570 = vdwg.mxu0
        %1571 = vmatpush.msra.mxu0 0.0
        %1572 = vmatpush.msra.mxu0 0.0
        %1573 = vmatpush.msra.mxu0 0.0
        %1574 = vmatpush.msra.mxu0 0.0
        %1575 = vmatpush.msra.mxu0 0.0
        %1576 = vmatpush.msra.mxu0 0.0
        %1577 = vmatpush.msra.mxu0 0.0
        %1578 = vmatpush.msra.mxu0 0.0
        %1579 = vmatpush.msra.mxu0 0.0
        %1580 = vmatpush.msra.mxu0 0.0
        %1581 = vmatpush.msra.mxu0 0.0
        %1582 = vmatpush.msra.mxu0 0.0
        %1583 = vmatpush.msra.mxu0 0.0
        %1584 = vmatpush.msra.mxu0 0.0
        %1585 = vmatpush.msra.mxu0 0.0
        %v1586 = vand.u32 %v681, 4294901760
        %v1587 = vsub.f32 %v681, %v1586
        %v1588 = vand.u32 %v1587, 4294901760
        %v1589 = vsub.f32 %v1587, %v1588
        %v1590 = vand.u32 %v1589, 4294901760
        %1591 = vmatpush.msra.mxu0 %v1590
        %v1592 = vand.u32 %v1543, 4294901760
        %1593 = vmatmul.f32.gmra.mxu0 %v1592
        %v1594 = vpop.f32.mrf.mxu0
        %v1595 = vadd.f32 %v1569, %v1594
        %1596 = vdwg.mxu0
        %1597 = vmatpush.msra.mxu0 0.0
        %1598 = vmatpush.msra.mxu0 0.0
        %1599 = vmatpush.msra.mxu0 0.0
        %1600 = vmatpush.msra.mxu0 0.0
        %1601 = vmatpush.msra.mxu0 0.0
        %1602 = vmatpush.msra.mxu0 0.0
        %1603 = vmatpush.msra.mxu0 0.0
        %1604 = vmatpush.msra.mxu0 0.0
        %1605 = vmatpush.msra.mxu0 0.0
        %1606 = vmatpush.msra.mxu0 0.0
        %1607 = vmatpush.msra.mxu0 0.0
        %1608 = vmatpush.msra.mxu0 0.0
        %1609 = vmatpush.msra.mxu0 0.0
        %1610 = vmatpush.msra.mxu0 0.0
        %1611 = vmatpush.msra.mxu0 0.0
        %v1612 = vand.u32 %v681, 4294901760
        %v1613 = vsub.f32 %v681, %v1612
        %1614 = vmatpush.msra.mxu0 %v1613
        %v1615 = vand.u32 %v1543, 4294901760
        %v1616 = vsub.f32 %v1543, %v1615
        %1617 = vmatmul.f32.gmra.mxu0 %v1616
        %v1618 = vpop.f32.mrf.mxu0
        %v1619 = vadd.f32 %v1595, %v1618
        %1620 = vdwg.mxu0
        %1621 = vmatpush.msra.mxu0 0.0
        %1622 = vmatpush.msra.mxu0 0.0
        %1623 = vmatpush.msra.mxu0 0.0
        %1624 = vmatpush.msra.mxu0 0.0
        %1625 = vmatpush.msra.mxu0 0.0
        %1626 = vmatpush.msra.mxu0 0.0
        %1627 = vmatpush.msra.mxu0 0.0
        %1628 = vmatpush.msra.mxu0 0.0
        %1629 = vmatpush.msra.mxu0 0.0
        %1630 = vmatpush.msra.mxu0 0.0
        %1631 = vmatpush.msra.mxu0 0.0
        %1632 = vmatpush.msra.mxu0 0.0
        %1633 = vmatpush.msra.mxu0 0.0
        %1634 = vmatpush.msra.mxu0 0.0
        %1635 = vmatpush.msra.mxu0 0.0
        %v1636 = vand.u32 %v681, 4294901760
        %1637 = vmatpush.msra.mxu0 %v1636
        %v1638 = vand.u32 %v1543, 4294901760
        %v1639 = vsub.f32 %v1543, %v1638
        %v1640 = vand.u32 %v1639, 4294901760
        %1641 = vmatmul.f32.gmra.mxu0 %v1640
        %v1642 = vpop.f32.mrf.mxu0
        %v1643 = vadd.f32 %v1619, %v1642
        %1644 = vdwg.mxu0
        %1645 = vmatpush.msra.mxu0 0.0
        %1646 = vmatpush.msra.mxu0 0.0
        %1647 = vmatpush.msra.mxu0 0.0
        %1648 = vmatpush.msra.mxu0 0.0
        %1649 = vmatpush.msra.mxu0 0.0
        %1650 = vmatpush.msra.mxu0 0.0
        %1651 = vmatpush.msra.mxu0 0.0
        %1652 = vmatpush.msra.mxu0 0.0
        %1653 = vmatpush.msra.mxu0 0.0
        %1654 = vmatpush.msra.mxu0 0.0
        %1655 = vmatpush.msra.mxu0 0.0
        %1656 = vmatpush.msra.mxu0 0.0
        %1657 = vmatpush.msra.mxu0 0.0
        %1658 = vmatpush.msra.mxu0 0.0
        %1659 = vmatpush.msra.mxu0 0.0
        %v1660 = vand.u32 %v681, 4294901760
        %v1661 = vsub.f32 %v681, %v1660
        %v1662 = vand.u32 %v1661, 4294901760
        %1663 = vmatpush.msra.mxu0 %v1662
        %v1664 = vand.u32 %v1543, 4294901760
        %1665 = vmatmul.f32.gmra.mxu0 %v1664
        %v1666 = vpop.f32.mrf.mxu0
        %v1667 = vadd.f32 %v1643, %v1666
        %1668 = vdwg.mxu0
        %1669 = vmatpush.msra.mxu0 0.0
        %1670 = vmatpush.msra.mxu0 0.0
        %1671 = vmatpush.msra.mxu0 0.0
        %1672 = vmatpush.msra.mxu0 0.0
        %1673 = vmatpush.msra.mxu0 0.0
        %1674 = vmatpush.msra.mxu0 0.0
        %1675 = vmatpush.msra.mxu0 0.0
        %1676 = vmatpush.msra.mxu0 0.0
        %1677 = vmatpush.msra.mxu0 0.0
        %1678 = vmatpush.msra.mxu0 0.0
        %1679 = vmatpush.msra.mxu0 0.0
        %1680 = vmatpush.msra.mxu0 0.0
        %1681 = vmatpush.msra.mxu0 0.0
        %1682 = vmatpush.msra.mxu0 0.0
        %1683 = vmatpush.msra.mxu0 0.0
        %v1684 = vand.u32 %v681, 4294901760
        %1685 = vmatpush.msra.mxu0 %v1684
        %v1686 = vand.u32 %v1543, 4294901760
        %1687 = vmatmul.f32.gmra.mxu0 %v1686
        %v1688 = vpop.f32.mrf.mxu0
        %v1689 = vadd.f32 %v1667, %v1688
        %1690 = vdwg.mxu0
        %v1692 = vsel %vm684, %v1387, 0
        %1694 = vmatpush.msra.mxu0 0.0
        %1695 = vmatpush.msra.mxu0 0.0
        %1696 = vmatpush.msra.mxu0 0.0
        %1697 = vmatpush.msra.mxu0 0.0
        %1698 = vmatpush.msra.mxu0 0.0
        %1699 = vmatpush.msra.mxu0 0.0
        %1700 = vmatpush.msra.mxu0 0.0
        %1701 = vmatpush.msra.mxu0 0.0
        %1702 = vmatpush.msra.mxu0 0.0
        %1703 = vmatpush.msra.mxu0 0.0
        %1704 = vmatpush.msra.mxu0 0.0
        %1705 = vmatpush.msra.mxu0 0.0
        %1706 = vmatpush.msra.mxu0 0.0
        %1707 = vmatpush.msra.mxu0 0.0
        %1708 = vmatpush.msra.mxu0 0.0
        %v1709 = vand.u32 %v682, 4294901760
        %1710 = vmatpush.msra.mxu0 %v1709
        %v1711 = vand.u32 %v1692, 4294901760
        %v1712 = vsub.f32 %v1692, %v1711
        %v1713 = vand.u32 %v1712, 4294901760
        %v1714 = vsub.f32 %v1712, %v1713
        %v1715 = vand.u32 %v1714, 4294901760
        %1716 = vmatmul.f32.gmra.mxu0 %v1715
        %v1717 = vpop.f32.mrf.mxu0
        %v1718 = vadd.f32 0.0, %v1717
        %1719 = vdwg.mxu0
        %1720 = vmatpush.msra.mxu0 0.0
        %1721 = vmatpush.msra.mxu0 0.0
        %1722 = vmatpush.msra.mxu0 0.0
        %1723 = vmatpush.msra.mxu0 0.0
        %1724 = vmatpush.msra.mxu0 0.0
        %1725 = vmatpush.msra.mxu0 0.0
        %1726 = vmatpush.msra.mxu0 0.0
        %1727 = vmatpush.msra.mxu0 0.0
        %1728 = vmatpush.msra.mxu0 0.0
        %1729 = vmatpush.msra.mxu0 0.0
        %1730 = vmatpush.msra.mxu0 0.0
        %1731 = vmatpush.msra.mxu0 0.0
        %1732 = vmatpush.msra.mxu0 0.0
        %1733 = vmatpush.msra.mxu0 0.0
        %1734 = vmatpush.msra.mxu0 0.0
        %v1735 = vand.u32 %v682, 4294901760
        %v1736 = vsub.f32 %v682, %v1735
        %v1737 = vand.u32 %v1736, 4294901760
        %v1738 = vsub.f32 %v1736, %v1737
        %v1739 = vand.u32 %v1738, 4294901760
        %1740 = vmatpush.msra.mxu0 %v1739
        %v1741 = vand.u32 %v1692, 4294901760
        %1742 = vmatmul.f32.gmra.mxu0 %v1741
        %v1743 = vpop.f32.mrf.mxu0
        %v1744 = vadd.f32 %v1718, %v1743
        %1745 = vdwg.mxu0
        %1746 = vmatpush.msra.mxu0 0.0
        %1747 = vmatpush.msra.mxu0 0.0
        %1748 = vmatpush.msra.mxu0 0.0
        %1749 = vmatpush.msra.mxu0 0.0
        %1750 = vmatpush.msra.mxu0 0.0
        %1751 = vmatpush.msra.mxu0 0.0
        %1752 = vmatpush.msra.mxu0 0.0
        %1753 = vmatpush.msra.mxu0 0.0
        %1754 = vmatpush.msra.mxu0 0.0
        %1755 = vmatpush.msra.mxu0 0.0
        %1756 = vmatpush.msra.mxu0 0.0
        %1757 = vmatpush.msra.mxu0 0.0
        %1758 = vmatpush.msra.mxu0 0.0
        %1759 = vmatpush.msra.mxu0 0.0
        %1760 = vmatpush.msra.mxu0 0.0
        %v1761 = vand.u32 %v682, 4294901760
        %v1762 = vsub.f32 %v682, %v1761
        %1763 = vmatpush.msra.mxu0 %v1762
        %v1764 = vand.u32 %v1692, 4294901760
        %v1765 = vsub.f32 %v1692, %v1764
        %1766 = vmatmul.f32.gmra.mxu0 %v1765
        %v1767 = vpop.f32.mrf.mxu0
        %v1768 = vadd.f32 %v1744, %v1767
        %1769 = vdwg.mxu0
        %1770 = vmatpush.msra.mxu0 0.0
        %1771 = vmatpush.msra.mxu0 0.0
        %1772 = vmatpush.msra.mxu0 0.0
        %1773 = vmatpush.msra.mxu0 0.0
        %1774 = vmatpush.msra.mxu0 0.0
        %1775 = vmatpush.msra.mxu0 0.0
        %1776 = vmatpush.msra.mxu0 0.0
        %1777 = vmatpush.msra.mxu0 0.0
        %1778 = vmatpush.msra.mxu0 0.0
        %1779 = vmatpush.msra.mxu0 0.0
        %1780 = vmatpush.msra.mxu0 0.0
        %1781 = vmatpush.msra.mxu0 0.0
        %1782 = vmatpush.msra.mxu0 0.0
        %1783 = vmatpush.msra.mxu0 0.0
        %1784 = vmatpush.msra.mxu0 0.0
        %v1785 = vand.u32 %v682, 4294901760
        %1786 = vmatpush.msra.mxu0 %v1785
        %v1787 = vand.u32 %v1692, 4294901760
        %v1788 = vsub.f32 %v1692, %v1787
        %v1789 = vand.u32 %v1788, 4294901760
        %1790 = vmatmul.f32.gmra.mxu0 %v1789
        %v1791 = vpop.f32.mrf.mxu0
        %v1792 = vadd.f32 %v1768, %v1791
        %1793 = vdwg.mxu0
        %1794 = vmatpush.msra.mxu0 0.0
        %1795 = vmatpush.msra.mxu0 0.0
        %1796 = vmatpush.msra.mxu0 0.0
        %1797 = vmatpush.msra.mxu0 0.0
        %1798 = vmatpush.msra.mxu0 0.0
        %1799 = vmatpush.msra.mxu0 0.0
        %1800 = vmatpush.msra.mxu0 0.0
        %1801 = vmatpush.msra.mxu0 0.0
        %1802 = vmatpush.msra.mxu0 0.0
        %1803 = vmatpush.msra.mxu0 0.0
        %1804 = vmatpush.msra.mxu0 0.0
        %1805 = vmatpush.msra.mxu0 0.0
        %1806 = vmatpush.msra.mxu0 0.0
        %1807 = vmatpush.msra.mxu0 0.0
        %1808 = vmatpush.msra.mxu0 0.0
        %v1809 = vand.u32 %v682, 4294901760
        %v1810 = vsub.f32 %v682, %v1809
        %v1811 = vand.u32 %v1810, 4294901760
        %1812 = vmatpush.msra.mxu0 %v1811
        %v1813 = vand.u32 %v1692, 4294901760
        %1814 = vmatmul.f32.gmra.mxu0 %v1813
        %v1815 = vpop.f32.mrf.mxu0
        %v1816 = vadd.f32 %v1792, %v1815
        %1817 = vdwg.mxu0
        %1818 = vmatpush.msra.mxu0 0.0
        %1819 = vmatpush.msra.mxu0 0.0
        %1820 = vmatpush.msra.mxu0 0.0
        %1821 = vmatpush.msra.mxu0 0.0
        %1822 = vmatpush.msra.mxu0 0.0
        %1823 = vmatpush.msra.mxu0 0.0
        %1824 = vmatpush.msra.mxu0 0.0
        %1825 = vmatpush.msra.mxu0 0.0
        %1826 = vmatpush.msra.mxu0 0.0
        %1827 = vmatpush.msra.mxu0 0.0
        %1828 = vmatpush.msra.mxu0 0.0
        %1829 = vmatpush.msra.mxu0 0.0
        %1830 = vmatpush.msra.mxu0 0.0
        %1831 = vmatpush.msra.mxu0 0.0
        %1832 = vmatpush.msra.mxu0 0.0
        %v1833 = vand.u32 %v682, 4294901760
        %1834 = vmatpush.msra.mxu0 %v1833
        %v1835 = vand.u32 %v1692, 4294901760
        %1836 = vmatmul.f32.gmra.mxu0 %v1835
        %v1837 = vpop.f32.mrf.mxu0
        %v1838 = vadd.f32 %v1816, %v1837
        %1839 = vdwg.mxu0
        %v1841 = vsel %vm684, %v1388, 0
        %1843 = vmatpush.msra.mxu0 0.0
        %1844 = vmatpush.msra.mxu0 0.0
        %1845 = vmatpush.msra.mxu0 0.0
        %1846 = vmatpush.msra.mxu0 0.0
        %1847 = vmatpush.msra.mxu0 0.0
        %1848 = vmatpush.msra.mxu0 0.0
        %1849 = vmatpush.msra.mxu0 0.0
        %1850 = vmatpush.msra.mxu0 0.0
        %1851 = vmatpush.msra.mxu0 0.0
        %1852 = vmatpush.msra.mxu0 0.0
        %1853 = vmatpush.msra.mxu0 0.0
        %1854 = vmatpush.msra.mxu0 0.0
        %1855 = vmatpush.msra.mxu0 0.0
        %1856 = vmatpush.msra.mxu0 0.0
        %1857 = vmatpush.msra.mxu0 0.0
        %v1858 = vand.u32 %v683, 4294901760
        %1859 = vmatpush.msra.mxu0 %v1858
        %v1860 = vand.u32 %v1841, 4294901760
        %v1861 = vsub.f32 %v1841, %v1860
        %v1862 = vand.u32 %v1861, 4294901760
        %v1863 = vsub.f32 %v1861, %v1862
        %v1864 = vand.u32 %v1863, 4294901760
        %1865 = vmatmul.f32.gmra.mxu0 %v1864
        %v1866 = vpop.f32.mrf.mxu0
        %v1867 = vadd.f32 0.0, %v1866
        %1868 = vdwg.mxu0
        %1869 = vmatpush.msra.mxu0 0.0
        %1870 = vmatpush.msra.mxu0 0.0
        %1871 = vmatpush.msra.mxu0 0.0
        %1872 = vmatpush.msra.mxu0 0.0
        %1873 = vmatpush.msra.mxu0 0.0
        %1874 = vmatpush.msra.mxu0 0.0
        %1875 = vmatpush.msra.mxu0 0.0
        %1876 = vmatpush.msra.mxu0 0.0
        %1877 = vmatpush.msra.mxu0 0.0
        %1878 = vmatpush.msra.mxu0 0.0
        %1879 = vmatpush.msra.mxu0 0.0
        %1880 = vmatpush.msra.mxu0 0.0
        %1881 = vmatpush.msra.mxu0 0.0
        %1882 = vmatpush.msra.mxu0 0.0
        %1883 = vmatpush.msra.mxu0 0.0
        %v1884 = vand.u32 %v683, 4294901760
        %v1885 = vsub.f32 %v683, %v1884
        %v1886 = vand.u32 %v1885, 4294901760
        %v1887 = vsub.f32 %v1885, %v1886
        %v1888 = vand.u32 %v1887, 4294901760
        %1889 = vmatpush.msra.mxu0 %v1888
        %v1890 = vand.u32 %v1841, 4294901760
        %1891 = vmatmul.f32.gmra.mxu0 %v1890
        %v1892 = vpop.f32.mrf.mxu0
        %v1893 = vadd.f32 %v1867, %v1892
        %1894 = vdwg.mxu0
        %1895 = vmatpush.msra.mxu0 0.0
        %1896 = vmatpush.msra.mxu0 0.0
        %1897 = vmatpush.msra.mxu0 0.0
        %1898 = vmatpush.msra.mxu0 0.0
        %1899 = vmatpush.msra.mxu0 0.0
        %1900 = vmatpush.msra.mxu0 0.0
        %1901 = vmatpush.msra.mxu0 0.0
        %1902 = vmatpush.msra.mxu0 0.0
        %1903 = vmatpush.msra.mxu0 0.0
        %1904 = vmatpush.msra.mxu0 0.0
        %1905 = vmatpush.msra.mxu0 0.0
        %1906 = vmatpush.msra.mxu0 0.0
        %1907 = vmatpush.msra.mxu0 0.0
        %1908 = vmatpush.msra.mxu0 0.0
        %1909 = vmatpush.msra.mxu0 0.0
        %v1910 = vand.u32 %v683, 4294901760
        %v1911 = vsub.f32 %v683, %v1910
        %1912 = vmatpush.msra.mxu0 %v1911
        %v1913 = vand.u32 %v1841, 4294901760
        %v1914 = vsub.f32 %v1841, %v1913
        %1915 = vmatmul.f32.gmra.mxu0 %v1914
        %v1916 = vpop.f32.mrf.mxu0
        %v1917 = vadd.f32 %v1893, %v1916
        %1918 = vdwg.mxu0
        %1919 = vmatpush.msra.mxu0 0.0
        %1920 = vmatpush.msra.mxu0 0.0
        %1921 = vmatpush.msra.mxu0 0.0
        %1922 = vmatpush.msra.mxu0 0.0
        %1923 = vmatpush.msra.mxu0 0.0
        %1924 = vmatpush.msra.mxu0 0.0
        %1925 = vmatpush.msra.mxu0 0.0
        %1926 = vmatpush.msra.mxu0 0.0
        %1927 = vmatpush.msra.mxu0 0.0
        %1928 = vmatpush.msra.mxu0 0.0
        %1929 = vmatpush.msra.mxu0 0.0
        %1930 = vmatpush.msra.mxu0 0.0
        %1931 = vmatpush.msra.mxu0 0.0
        %1932 = vmatpush.msra.mxu0 0.0
        %1933 = vmatpush.msra.mxu0 0.0
        %v1934 = vand.u32 %v683, 4294901760
        %1935 = vmatpush.msra.mxu0 %v1934
        %v1936 = vand.u32 %v1841, 4294901760
        %v1937 = vsub.f32 %v1841, %v1936
        %v1938 = vand.u32 %v1937, 4294901760
        %1939 = vmatmul.f32.gmra.mxu0 %v1938
        %v1940 = vpop.f32.mrf.mxu0
        %v1941 = vadd.f32 %v1917, %v1940
        %1942 = vdwg.mxu0
        %1943 = vmatpush.msra.mxu0 0.0
        %1944 = vmatpush.msra.mxu0 0.0
        %1945 = vmatpush.msra.mxu0 0.0
        %1946 = vmatpush.msra.mxu0 0.0
        %1947 = vmatpush.msra.mxu0 0.0
        %1948 = vmatpush.msra.mxu0 0.0
        %1949 = vmatpush.msra.mxu0 0.0
        %1950 = vmatpush.msra.mxu0 0.0
        %1951 = vmatpush.msra.mxu0 0.0
        %1952 = vmatpush.msra.mxu0 0.0
        %1953 = vmatpush.msra.mxu0 0.0
        %1954 = vmatpush.msra.mxu0 0.0
        %1955 = vmatpush.msra.mxu0 0.0
        %1956 = vmatpush.msra.mxu0 0.0
        %1957 = vmatpush.msra.mxu0 0.0
        %v1958 = vand.u32 %v683, 4294901760
        %v1959 = vsub.f32 %v683, %v1958
        %v1960 = vand.u32 %v1959, 4294901760
        %1961 = vmatpush.msra.mxu0 %v1960
        %v1962 = vand.u32 %v1841, 4294901760
        %1963 = vmatmul.f32.gmra.mxu0 %v1962
        %v1964 = vpop.f32.mrf.mxu0
        %v1965 = vadd.f32 %v1941, %v1964
        %1966 = vdwg.mxu0
        %1967 = vmatpush.msra.mxu0 0.0
        %1968 = vmatpush.msra.mxu0 0.0
        %1969 = vmatpush.msra.mxu0 0.0
        %1970 = vmatpush.msra.mxu0 0.0
        %1971 = vmatpush.msra.mxu0 0.0
        %1972 = vmatpush.msra.mxu0 0.0
        %1973 = vmatpush.msra.mxu0 0.0
        %1974 = vmatpush.msra.mxu0 0.0
        %1975 = vmatpush.msra.mxu0 0.0
        %1976 = vmatpush.msra.mxu0 0.0
        %1977 = vmatpush.msra.mxu0 0.0
        %1978 = vmatpush.msra.mxu0 0.0
        %1979 = vmatpush.msra.mxu0 0.0
        %1980 = vmatpush.msra.mxu0 0.0
        %1981 = vmatpush.msra.mxu0 0.0
        %v1982 = vand.u32 %v683, 4294901760
        %1983 = vmatpush.msra.mxu0 %v1982
        %v1984 = vand.u32 %v1841, 4294901760
        %1985 = vmatmul.f32.gmra.mxu0 %v1984
        %v1986 = vpop.f32.mrf.mxu0
        %v1987 = vadd.f32 %v1965, %v1986
        %1988 = vdwg.mxu0
        %v1989 = vld [vmem:[%s4] sm:$0xff]
        %s1990 = scalar_lea.vmem %s4, 8
        %v1991 = vld [vmem:[%s1990] sm:$0xff]
        %v1993 = vsel %vm684, %v1689, 0
        %1995 = vmatpush.msra.mxu0 0.0
        %1996 = vmatpush.msra.mxu0 0.0
        %1997 = vmatpush.msra.mxu0 0.0
        %1998 = vmatpush.msra.mxu0 0.0
        %1999 = vmatpush.msra.mxu0 0.0
        %2000 = vmatpush.msra.mxu0 0.0
        %2001 = vmatpush.msra.mxu0 0.0
        %2002 = vmatpush.msra.mxu0 0.0
        %2003 = vmatpush.msra.mxu0 0.0
        %2004 = vmatpush.msra.mxu0 0.0
        %2005 = vmatpush.msra.mxu0 0.0
        %2006 = vmatpush.msra.mxu0 0.0
        %2007 = vmatpush.msra.mxu0 0.0
        %2008 = vmatpush.msra.mxu0 0.0
        %2009 = vmatpush.msra.mxu0 0.0
        %v2010 = vand.u32 %v1991, 4294901760
        %2011 = vmatpush.msra.mxu0 %v2010
        %v2012 = vand.u32 %v1993, 4294901760
        %v2013 = vsub.f32 %v1993, %v2012
        %v2014 = vand.u32 %v2013, 4294901760
        %v2015 = vsub.f32 %v2013, %v2014
        %v2016 = vand.u32 %v2015, 4294901760
        %2017 = vmatmul.f32.gmra.mxu0 %v2016
        %v2018 = vpop.f32.mrf.mxu0
        %v2019 = vadd.f32 0.0, %v2018
        %2020 = vdwg.mxu0
        %2021 = vmatpush.msra.mxu0 0.0
        %2022 = vmatpush.msra.mxu0 0.0
        %2023 = vmatpush.msra.mxu0 0.0
        %2024 = vmatpush.msra.mxu0 0.0
        %2025 = vmatpush.msra.mxu0 0.0
        %2026 = vmatpush.msra.mxu0 0.0
        %2027 = vmatpush.msra.mxu0 0.0
        %2028 = vmatpush.msra.mxu0 0.0
        %2029 = vmatpush.msra.mxu0 0.0
        %2030 = vmatpush.msra.mxu0 0.0
        %2031 = vmatpush.msra.mxu0 0.0
        %2032 = vmatpush.msra.mxu0 0.0
        %2033 = vmatpush.msra.mxu0 0.0
        %2034 = vmatpush.msra.mxu0 0.0
        %2035 = vmatpush.msra.mxu0 0.0
        %v2036 = vand.u32 %v1991, 4294901760
        %v2037 = vsub.f32 %v1991, %v2036
        %v2038 = vand.u32 %v2037, 4294901760
        %v2039 = vsub.f32 %v2037, %v2038
        %v2040 = vand.u32 %v2039, 4294901760
        %2041 = vmatpush.msra.mxu0 %v2040
        %v2042 = vand.u32 %v1993, 4294901760
        %2043 = vmatmul.f32.gmra.mxu0 %v2042
        %v2044 = vpop.f32.mrf.mxu0
        %v2045 = vadd.f32 %v2019, %v2044
        %2046 = vdwg.mxu0
        %2047 = vmatpush.msra.mxu0 0.0
        %2048 = vmatpush.msra.mxu0 0.0
        %2049 = vmatpush.msra.mxu0 0.0
        %2050 = vmatpush.msra.mxu0 0.0
        %2051 = vmatpush.msra.mxu0 0.0
        %2052 = vmatpush.msra.mxu0 0.0
        %2053 = vmatpush.msra.mxu0 0.0
        %2054 = vmatpush.msra.mxu0 0.0
        %2055 = vmatpush.msra.mxu0 0.0
        %2056 = vmatpush.msra.mxu0 0.0
        %2057 = vmatpush.msra.mxu0 0.0
        %2058 = vmatpush.msra.mxu0 0.0
        %2059 = vmatpush.msra.mxu0 0.0
        %2060 = vmatpush.msra.mxu0 0.0
        %2061 = vmatpush.msra.mxu0 0.0
        %v2062 = vand.u32 %v1991, 4294901760
        %v2063 = vsub.f32 %v1991, %v2062
        %2064 = vmatpush.msra.mxu0 %v2063
        %v2065 = vand.u32 %v1993, 4294901760
        %v2066 = vsub.f32 %v1993, %v2065
        %2067 = vmatmul.f32.gmra.mxu0 %v2066
        %v2068 = vpop.f32.mrf.mxu0
        %v2069 = vadd.f32 %v2045, %v2068
        %2070 = vdwg.mxu0
        %2071 = vmatpush.msra.mxu0 0.0
        %2072 = vmatpush.msra.mxu0 0.0
        %2073 = vmatpush.msra.mxu0 0.0
        %2074 = vmatpush.msra.mxu0 0.0
        %2075 = vmatpush.msra.mxu0 0.0
        %2076 = vmatpush.msra.mxu0 0.0
        %2077 = vmatpush.msra.mxu0 0.0
        %2078 = vmatpush.msra.mxu0 0.0
        %2079 = vmatpush.msra.mxu0 0.0
        %2080 = vmatpush.msra.mxu0 0.0
        %2081 = vmatpush.msra.mxu0 0.0
        %2082 = vmatpush.msra.mxu0 0.0
        %2083 = vmatpush.msra.mxu0 0.0
        %2084 = vmatpush.msra.mxu0 0.0
        %2085 = vmatpush.msra.mxu0 0.0
        %v2086 = vand.u32 %v1991, 4294901760
        %2087 = vmatpush.msra.mxu0 %v2086
        %v2088 = vand.u32 %v1993, 4294901760
        %v2089 = vsub.f32 %v1993, %v2088
        %v2090 = vand.u32 %v2089, 4294901760
        %2091 = vmatmul.f32.gmra.mxu0 %v2090
        %v2092 = vpop.f32.mrf.mxu0
        %v2093 = vadd.f32 %v2069, %v2092
        %2094 = vdwg.mxu0
        %2095 = vmatpush.msra.mxu0 0.0
        %2096 = vmatpush.msra.mxu0 0.0
        %2097 = vmatpush.msra.mxu0 0.0
        %2098 = vmatpush.msra.mxu0 0.0
        %2099 = vmatpush.msra.mxu0 0.0
        %2100 = vmatpush.msra.mxu0 0.0
        %2101 = vmatpush.msra.mxu0 0.0
        %2102 = vmatpush.msra.mxu0 0.0
        %2103 = vmatpush.msra.mxu0 0.0
        %2104 = vmatpush.msra.mxu0 0.0
        %2105 = vmatpush.msra.mxu0 0.0
        %2106 = vmatpush.msra.mxu0 0.0
        %2107 = vmatpush.msra.mxu0 0.0
        %2108 = vmatpush.msra.mxu0 0.0
        %2109 = vmatpush.msra.mxu0 0.0
        %v2110 = vand.u32 %v1991, 4294901760
        %v2111 = vsub.f32 %v1991, %v2110
        %v2112 = vand.u32 %v2111, 4294901760
        %2113 = vmatpush.msra.mxu0 %v2112
        %v2114 = vand.u32 %v1993, 4294901760
        %2115 = vmatmul.f32.gmra.mxu0 %v2114
        %v2116 = vpop.f32.mrf.mxu0
        %v2117 = vadd.f32 %v2093, %v2116
        %2118 = vdwg.mxu0
        %2119 = vmatpush.msra.mxu0 0.0
        %2120 = vmatpush.msra.mxu0 0.0
        %2121 = vmatpush.msra.mxu0 0.0
        %2122 = vmatpush.msra.mxu0 0.0
        %2123 = vmatpush.msra.mxu0 0.0
        %2124 = vmatpush.msra.mxu0 0.0
        %2125 = vmatpush.msra.mxu0 0.0
        %2126 = vmatpush.msra.mxu0 0.0
        %2127 = vmatpush.msra.mxu0 0.0
        %2128 = vmatpush.msra.mxu0 0.0
        %2129 = vmatpush.msra.mxu0 0.0
        %2130 = vmatpush.msra.mxu0 0.0
        %2131 = vmatpush.msra.mxu0 0.0
        %2132 = vmatpush.msra.mxu0 0.0
        %2133 = vmatpush.msra.mxu0 0.0
        %v2134 = vand.u32 %v1991, 4294901760
        %2135 = vmatpush.msra.mxu0 %v2134
        %v2136 = vand.u32 %v1993, 4294901760
        %2137 = vmatmul.f32.gmra.mxu0 %v2136
        %v2138 = vpop.f32.mrf.mxu0
        %v2139 = vadd.f32 %v2117, %v2138
        %2140 = vdwg.mxu0
        %v2142 = vsel %vm684, %v1540, 0
        %2144 = vmatpush.msra.mxu0 0.0
        %2145 = vmatpush.msra.mxu0 0.0
        %2146 = vmatpush.msra.mxu0 0.0
        %2147 = vmatpush.msra.mxu0 0.0
        %2148 = vmatpush.msra.mxu0 0.0
        %2149 = vmatpush.msra.mxu0 0.0
        %2150 = vmatpush.msra.mxu0 0.0
        %2151 = vmatpush.msra.mxu0 0.0
        %2152 = vmatpush.msra.mxu0 0.0
        %2153 = vmatpush.msra.mxu0 0.0
        %2154 = vmatpush.msra.mxu0 0.0
        %2155 = vmatpush.msra.mxu0 0.0
        %2156 = vmatpush.msra.mxu0 0.0
        %2157 = vmatpush.msra.mxu0 0.0
        %2158 = vmatpush.msra.mxu0 0.0
        %v2159 = vand.u32 %v1989, 4294901760
        %2160 = vmatpush.msra.mxu0 %v2159
        %v2161 = vand.u32 %v2142, 4294901760
        %v2162 = vsub.f32 %v2142, %v2161
        %v2163 = vand.u32 %v2162, 4294901760
        %v2164 = vsub.f32 %v2162, %v2163
        %v2165 = vand.u32 %v2164, 4294901760
        %2166 = vmatmul.f32.gmra.mxu0 %v2165
        %v2167 = vpop.f32.mrf.mxu0
        %v2168 = vadd.f32 %v2139, %v2167
        %2169 = vdwg.mxu0
        %2170 = vmatpush.msra.mxu0 0.0
        %2171 = vmatpush.msra.mxu0 0.0
        %2172 = vmatpush.msra.mxu0 0.0
        %2173 = vmatpush.msra.mxu0 0.0
        %2174 = vmatpush.msra.mxu0 0.0
        %2175 = vmatpush.msra.mxu0 0.0
        %2176 = vmatpush.msra.mxu0 0.0
        %2177 = vmatpush.msra.mxu0 0.0
        %2178 = vmatpush.msra.mxu0 0.0
        %2179 = vmatpush.msra.mxu0 0.0
        %2180 = vmatpush.msra.mxu0 0.0
        %2181 = vmatpush.msra.mxu0 0.0
        %2182 = vmatpush.msra.mxu0 0.0
        %2183 = vmatpush.msra.mxu0 0.0
        %2184 = vmatpush.msra.mxu0 0.0
        %v2185 = vand.u32 %v1989, 4294901760
        %v2186 = vsub.f32 %v1989, %v2185
        %v2187 = vand.u32 %v2186, 4294901760
        %v2188 = vsub.f32 %v2186, %v2187
        %v2189 = vand.u32 %v2188, 4294901760
        %2190 = vmatpush.msra.mxu0 %v2189
        %v2191 = vand.u32 %v2142, 4294901760
        %2192 = vmatmul.f32.gmra.mxu0 %v2191
        %v2193 = vpop.f32.mrf.mxu0
        %v2194 = vadd.f32 %v2168, %v2193
        %2195 = vdwg.mxu0
        %2196 = vmatpush.msra.mxu0 0.0
        %2197 = vmatpush.msra.mxu0 0.0
        %2198 = vmatpush.msra.mxu0 0.0
        %2199 = vmatpush.msra.mxu0 0.0
        %2200 = vmatpush.msra.mxu0 0.0
        %2201 = vmatpush.msra.mxu0 0.0
        %2202 = vmatpush.msra.mxu0 0.0
        %2203 = vmatpush.msra.mxu0 0.0
        %2204 = vmatpush.msra.mxu0 0.0
        %2205 = vmatpush.msra.mxu0 0.0
        %2206 = vmatpush.msra.mxu0 0.0
        %2207 = vmatpush.msra.mxu0 0.0
        %2208 = vmatpush.msra.mxu0 0.0
        %2209 = vmatpush.msra.mxu0 0.0
        %2210 = vmatpush.msra.mxu0 0.0
        %v2211 = vand.u32 %v1989, 4294901760
        %v2212 = vsub.f32 %v1989, %v2211
        %2213 = vmatpush.msra.mxu0 %v2212
        %v2214 = vand.u32 %v2142, 4294901760
        %v2215 = vsub.f32 %v2142, %v2214
        %2216 = vmatmul.f32.gmra.mxu0 %v2215
        %v2217 = vpop.f32.mrf.mxu0
        %v2218 = vadd.f32 %v2194, %v2217
        %2219 = vdwg.mxu0
        %2220 = vmatpush.msra.mxu0 0.0
        %2221 = vmatpush.msra.mxu0 0.0
        %2222 = vmatpush.msra.mxu0 0.0
        %2223 = vmatpush.msra.mxu0 0.0
        %2224 = vmatpush.msra.mxu0 0.0
        %2225 = vmatpush.msra.mxu0 0.0
        %2226 = vmatpush.msra.mxu0 0.0
        %2227 = vmatpush.msra.mxu0 0.0
        %2228 = vmatpush.msra.mxu0 0.0
        %2229 = vmatpush.msra.mxu0 0.0
        %2230 = vmatpush.msra.mxu0 0.0
        %2231 = vmatpush.msra.mxu0 0.0
        %2232 = vmatpush.msra.mxu0 0.0
        %2233 = vmatpush.msra.mxu0 0.0
        %2234 = vmatpush.msra.mxu0 0.0
        %v2235 = vand.u32 %v1989, 4294901760
        %2236 = vmatpush.msra.mxu0 %v2235
        %v2237 = vand.u32 %v2142, 4294901760
        %v2238 = vsub.f32 %v2142, %v2237
        %v2239 = vand.u32 %v2238, 4294901760
        %2240 = vmatmul.f32.gmra.mxu0 %v2239
        %v2241 = vpop.f32.mrf.mxu0
        %v2242 = vadd.f32 %v2218, %v2241
        %2243 = vdwg.mxu0
        %2244 = vmatpush.msra.mxu0 0.0
        %2245 = vmatpush.msra.mxu0 0.0
        %2246 = vmatpush.msra.mxu0 0.0
        %2247 = vmatpush.msra.mxu0 0.0
        %2248 = vmatpush.msra.mxu0 0.0
        %2249 = vmatpush.msra.mxu0 0.0
        %2250 = vmatpush.msra.mxu0 0.0
        %2251 = vmatpush.msra.mxu0 0.0
        %2252 = vmatpush.msra.mxu0 0.0
        %2253 = vmatpush.msra.mxu0 0.0
        %2254 = vmatpush.msra.mxu0 0.0
        %2255 = vmatpush.msra.mxu0 0.0
        %2256 = vmatpush.msra.mxu0 0.0
        %2257 = vmatpush.msra.mxu0 0.0
        %2258 = vmatpush.msra.mxu0 0.0
        %v2259 = vand.u32 %v1989, 4294901760
        %v2260 = vsub.f32 %v1989, %v2259
        %v2261 = vand.u32 %v2260, 4294901760
        %2262 = vmatpush.msra.mxu0 %v2261
        %v2263 = vand.u32 %v2142, 4294901760
        %2264 = vmatmul.f32.gmra.mxu0 %v2263
        %v2265 = vpop.f32.mrf.mxu0
        %v2266 = vadd.f32 %v2242, %v2265
        %2267 = vdwg.mxu0
        %2268 = vmatpush.msra.mxu0 0.0
        %2269 = vmatpush.msra.mxu0 0.0
        %2270 = vmatpush.msra.mxu0 0.0
        %2271 = vmatpush.msra.mxu0 0.0
        %2272 = vmatpush.msra.mxu0 0.0
        %2273 = vmatpush.msra.mxu0 0.0
        %2274 = vmatpush.msra.mxu0 0.0
        %2275 = vmatpush.msra.mxu0 0.0
        %2276 = vmatpush.msra.mxu0 0.0
        %2277 = vmatpush.msra.mxu0 0.0
        %2278 = vmatpush.msra.mxu0 0.0
        %2279 = vmatpush.msra.mxu0 0.0
        %2280 = vmatpush.msra.mxu0 0.0
        %2281 = vmatpush.msra.mxu0 0.0
        %2282 = vmatpush.msra.mxu0 0.0
        %v2283 = vand.u32 %v1989, 4294901760
        %2284 = vmatpush.msra.mxu0 %v2283
        %v2285 = vand.u32 %v2142, 4294901760
        %2286 = vmatmul.f32.gmra.mxu0 %v2285
        %v2287 = vpop.f32.mrf.mxu0
        %v2288 = vadd.f32 %v2266, %v2287
        %2289 = vdwg.mxu0
        %s2290 = scalar_lea.vmem %s4, 16
        %v2291 = vld [vmem:[%s2290] sm:$0xff]
        %v2293 = vsel %vm684, %v1838, 0
        %2295 = vmatpush.msra.mxu0 0.0
        %2296 = vmatpush.msra.mxu0 0.0
        %2297 = vmatpush.msra.mxu0 0.0
        %2298 = vmatpush.msra.mxu0 0.0
        %2299 = vmatpush.msra.mxu0 0.0
        %2300 = vmatpush.msra.mxu0 0.0
        %2301 = vmatpush.msra.mxu0 0.0
        %2302 = vmatpush.msra.mxu0 0.0
        %2303 = vmatpush.msra.mxu0 0.0
        %2304 = vmatpush.msra.mxu0 0.0
        %2305 = vmatpush.msra.mxu0 0.0
        %2306 = vmatpush.msra.mxu0 0.0
        %2307 = vmatpush.msra.mxu0 0.0
        %2308 = vmatpush.msra.mxu0 0.0
        %2309 = vmatpush.msra.mxu0 0.0
        %v2310 = vand.u32 %v2291, 4294901760
        %2311 = vmatpush.msra.mxu0 %v2310
        %v2312 = vand.u32 %v2293, 4294901760
        %v2313 = vsub.f32 %v2293, %v2312
        %v2314 = vand.u32 %v2313, 4294901760
        %v2315 = vsub.f32 %v2313, %v2314
        %v2316 = vand.u32 %v2315, 4294901760
        %2317 = vmatmul.f32.gmra.mxu0 %v2316
        %v2318 = vpop.f32.mrf.mxu0
        %v2319 = vadd.f32 0.0, %v2318
        %2320 = vdwg.mxu0
        %2321 = vmatpush.msra.mxu0 0.0
        %2322 = vmatpush.msra.mxu0 0.0
        %2323 = vmatpush.msra.mxu0 0.0
        %2324 = vmatpush.msra.mxu0 0.0
        %2325 = vmatpush.msra.mxu0 0.0
        %2326 = vmatpush.msra.mxu0 0.0
        %2327 = vmatpush.msra.mxu0 0.0
        %2328 = vmatpush.msra.mxu0 0.0
        %2329 = vmatpush.msra.mxu0 0.0
        %2330 = vmatpush.msra.mxu0 0.0
        %2331 = vmatpush.msra.mxu0 0.0
        %2332 = vmatpush.msra.mxu0 0.0
        %2333 = vmatpush.msra.mxu0 0.0
        %2334 = vmatpush.msra.mxu0 0.0
        %2335 = vmatpush.msra.mxu0 0.0
        %v2336 = vand.u32 %v2291, 4294901760
        %v2337 = vsub.f32 %v2291, %v2336
        %v2338 = vand.u32 %v2337, 4294901760
        %v2339 = vsub.f32 %v2337, %v2338
        %v2340 = vand.u32 %v2339, 4294901760
        %2341 = vmatpush.msra.mxu0 %v2340
        %v2342 = vand.u32 %v2293, 4294901760
        %2343 = vmatmul.f32.gmra.mxu0 %v2342
        %v2344 = vpop.f32.mrf.mxu0
        %v2345 = vadd.f32 %v2319, %v2344
        %2346 = vdwg.mxu0
        %2347 = vmatpush.msra.mxu0 0.0
        %2348 = vmatpush.msra.mxu0 0.0
        %2349 = vmatpush.msra.mxu0 0.0
        %2350 = vmatpush.msra.mxu0 0.0
        %2351 = vmatpush.msra.mxu0 0.0
        %2352 = vmatpush.msra.mxu0 0.0
        %2353 = vmatpush.msra.mxu0 0.0
        %2354 = vmatpush.msra.mxu0 0.0
        %2355 = vmatpush.msra.mxu0 0.0
        %2356 = vmatpush.msra.mxu0 0.0
        %2357 = vmatpush.msra.mxu0 0.0
        %2358 = vmatpush.msra.mxu0 0.0
        %2359 = vmatpush.msra.mxu0 0.0
        %2360 = vmatpush.msra.mxu0 0.0
        %2361 = vmatpush.msra.mxu0 0.0
        %v2362 = vand.u32 %v2291, 4294901760
        %v2363 = vsub.f32 %v2291, %v2362
        %2364 = vmatpush.msra.mxu0 %v2363
        %v2365 = vand.u32 %v2293, 4294901760
        %v2366 = vsub.f32 %v2293, %v2365
        %2367 = vmatmul.f32.gmra.mxu0 %v2366
        %v2368 = vpop.f32.mrf.mxu0
        %v2369 = vadd.f32 %v2345, %v2368
        %2370 = vdwg.mxu0
        %2371 = vmatpush.msra.mxu0 0.0
        %2372 = vmatpush.msra.mxu0 0.0
        %2373 = vmatpush.msra.mxu0 0.0
        %2374 = vmatpush.msra.mxu0 0.0
        %2375 = vmatpush.msra.mxu0 0.0
        %2376 = vmatpush.msra.mxu0 0.0
        %2377 = vmatpush.msra.mxu0 0.0
        %2378 = vmatpush.msra.mxu0 0.0
        %2379 = vmatpush.msra.mxu0 0.0
        %2380 = vmatpush.msra.mxu0 0.0
        %2381 = vmatpush.msra.mxu0 0.0
        %2382 = vmatpush.msra.mxu0 0.0
        %2383 = vmatpush.msra.mxu0 0.0
        %2384 = vmatpush.msra.mxu0 0.0
        %2385 = vmatpush.msra.mxu0 0.0
        %v2386 = vand.u32 %v2291, 4294901760
        %2387 = vmatpush.msra.mxu0 %v2386
        %v2388 = vand.u32 %v2293, 4294901760
        %v2389 = vsub.f32 %v2293, %v2388
        %v2390 = vand.u32 %v2389, 4294901760
        %2391 = vmatmul.f32.gmra.mxu0 %v2390
        %v2392 = vpop.f32.mrf.mxu0
        %v2393 = vadd.f32 %v2369, %v2392
        %2394 = vdwg.mxu0
        %2395 = vmatpush.msra.mxu0 0.0
        %2396 = vmatpush.msra.mxu0 0.0
        %2397 = vmatpush.msra.mxu0 0.0
        %2398 = vmatpush.msra.mxu0 0.0
        %2399 = vmatpush.msra.mxu0 0.0
        %2400 = vmatpush.msra.mxu0 0.0
        %2401 = vmatpush.msra.mxu0 0.0
        %2402 = vmatpush.msra.mxu0 0.0
        %2403 = vmatpush.msra.mxu0 0.0
        %2404 = vmatpush.msra.mxu0 0.0
        %2405 = vmatpush.msra.mxu0 0.0
        %2406 = vmatpush.msra.mxu0 0.0
        %2407 = vmatpush.msra.mxu0 0.0
        %2408 = vmatpush.msra.mxu0 0.0
        %2409 = vmatpush.msra.mxu0 0.0
        %v2410 = vand.u32 %v2291, 4294901760
        %v2411 = vsub.f32 %v2291, %v2410
        %v2412 = vand.u32 %v2411, 4294901760
        %2413 = vmatpush.msra.mxu0 %v2412
        %v2414 = vand.u32 %v2293, 4294901760
        %2415 = vmatmul.f32.gmra.mxu0 %v2414
        %v2416 = vpop.f32.mrf.mxu0
        %v2417 = vadd.f32 %v2393, %v2416
        %2418 = vdwg.mxu0
        %2419 = vmatpush.msra.mxu0 0.0
        %2420 = vmatpush.msra.mxu0 0.0
        %2421 = vmatpush.msra.mxu0 0.0
        %2422 = vmatpush.msra.mxu0 0.0
        %2423 = vmatpush.msra.mxu0 0.0
        %2424 = vmatpush.msra.mxu0 0.0
        %2425 = vmatpush.msra.mxu0 0.0
        %2426 = vmatpush.msra.mxu0 0.0
        %2427 = vmatpush.msra.mxu0 0.0
        %2428 = vmatpush.msra.mxu0 0.0
        %2429 = vmatpush.msra.mxu0 0.0
        %2430 = vmatpush.msra.mxu0 0.0
        %2431 = vmatpush.msra.mxu0 0.0
        %2432 = vmatpush.msra.mxu0 0.0
        %2433 = vmatpush.msra.mxu0 0.0
        %v2434 = vand.u32 %v2291, 4294901760
        %2435 = vmatpush.msra.mxu0 %v2434
        %v2436 = vand.u32 %v2293, 4294901760
        %2437 = vmatmul.f32.gmra.mxu0 %v2436
        %v2438 = vpop.f32.mrf.mxu0
        %v2439 = vadd.f32 %v2417, %v2438
        %2440 = vdwg.mxu0
        %v2441 = vadd.f32 %v2288, %v2439
        %s2442 = scalar_lea.vmem %s4, 24
        %v2443 = vld [vmem:[%s2442] sm:$0xff]
        %v2445 = vsel %vm684, %v1987, 0
        %2447 = vmatpush.msra.mxu0 0.0
        %2448 = vmatpush.msra.mxu0 0.0
        %2449 = vmatpush.msra.mxu0 0.0
        %2450 = vmatpush.msra.mxu0 0.0
        %2451 = vmatpush.msra.mxu0 0.0
        %2452 = vmatpush.msra.mxu0 0.0
        %2453 = vmatpush.msra.mxu0 0.0
        %2454 = vmatpush.msra.mxu0 0.0
        %2455 = vmatpush.msra.mxu0 0.0
        %2456 = vmatpush.msra.mxu0 0.0
        %2457 = vmatpush.msra.mxu0 0.0
        %2458 = vmatpush.msra.mxu0 0.0
        %2459 = vmatpush.msra.mxu0 0.0
        %2460 = vmatpush.msra.mxu0 0.0
        %2461 = vmatpush.msra.mxu0 0.0
        %v2462 = vand.u32 %v2443, 4294901760
        %2463 = vmatpush.msra.mxu0 %v2462
        %v2464 = vand.u32 %v2445, 4294901760
        %v2465 = vsub.f32 %v2445, %v2464
        %v2466 = vand.u32 %v2465, 4294901760
        %v2467 = vsub.f32 %v2465, %v2466
        %v2468 = vand.u32 %v2467, 4294901760
        %2469 = vmatmul.f32.gmra.mxu0 %v2468
        %v2470 = vpop.f32.mrf.mxu0
        %v2471 = vadd.f32 0.0, %v2470
        %2472 = vdwg.mxu0
        %2473 = vmatpush.msra.mxu0 0.0
        %2474 = vmatpush.msra.mxu0 0.0
        %2475 = vmatpush.msra.mxu0 0.0
        %2476 = vmatpush.msra.mxu0 0.0
        %2477 = vmatpush.msra.mxu0 0.0
        %2478 = vmatpush.msra.mxu0 0.0
        %2479 = vmatpush.msra.mxu0 0.0
        %2480 = vmatpush.msra.mxu0 0.0
        %2481 = vmatpush.msra.mxu0 0.0
        %2482 = vmatpush.msra.mxu0 0.0
        %2483 = vmatpush.msra.mxu0 0.0
        %2484 = vmatpush.msra.mxu0 0.0
        %2485 = vmatpush.msra.mxu0 0.0
        %2486 = vmatpush.msra.mxu0 0.0
        %2487 = vmatpush.msra.mxu0 0.0
        %v2488 = vand.u32 %v2443, 4294901760
        %v2489 = vsub.f32 %v2443, %v2488
        %v2490 = vand.u32 %v2489, 4294901760
        %v2491 = vsub.f32 %v2489, %v2490
        %v2492 = vand.u32 %v2491, 4294901760
        %2493 = vmatpush.msra.mxu0 %v2492
        %v2494 = vand.u32 %v2445, 4294901760
        %2495 = vmatmul.f32.gmra.mxu0 %v2494
        %v2496 = vpop.f32.mrf.mxu0
        %v2497 = vadd.f32 %v2471, %v2496
        %2498 = vdwg.mxu0
        %2499 = vmatpush.msra.mxu0 0.0
        %2500 = vmatpush.msra.mxu0 0.0
        %2501 = vmatpush.msra.mxu0 0.0
        %2502 = vmatpush.msra.mxu0 0.0
        %2503 = vmatpush.msra.mxu0 0.0
        %2504 = vmatpush.msra.mxu0 0.0
        %2505 = vmatpush.msra.mxu0 0.0
        %2506 = vmatpush.msra.mxu0 0.0
        %2507 = vmatpush.msra.mxu0 0.0
        %2508 = vmatpush.msra.mxu0 0.0
        %2509 = vmatpush.msra.mxu0 0.0
        %2510 = vmatpush.msra.mxu0 0.0
        %2511 = vmatpush.msra.mxu0 0.0
        %2512 = vmatpush.msra.mxu0 0.0
        %2513 = vmatpush.msra.mxu0 0.0
        %v2514 = vand.u32 %v2443, 4294901760
        %v2515 = vsub.f32 %v2443, %v2514
        %2516 = vmatpush.msra.mxu0 %v2515
        %v2517 = vand.u32 %v2445, 4294901760
        %v2518 = vsub.f32 %v2445, %v2517
        %2519 = vmatmul.f32.gmra.mxu0 %v2518
        %v2520 = vpop.f32.mrf.mxu0
        %v2521 = vadd.f32 %v2497, %v2520
        %2522 = vdwg.mxu0
        %2523 = vmatpush.msra.mxu0 0.0
        %2524 = vmatpush.msra.mxu0 0.0
        %2525 = vmatpush.msra.mxu0 0.0
        %2526 = vmatpush.msra.mxu0 0.0
        %2527 = vmatpush.msra.mxu0 0.0
        %2528 = vmatpush.msra.mxu0 0.0
        %2529 = vmatpush.msra.mxu0 0.0
        %2530 = vmatpush.msra.mxu0 0.0
        %2531 = vmatpush.msra.mxu0 0.0
        %2532 = vmatpush.msra.mxu0 0.0
        %2533 = vmatpush.msra.mxu0 0.0
        %2534 = vmatpush.msra.mxu0 0.0
        %2535 = vmatpush.msra.mxu0 0.0
        %2536 = vmatpush.msra.mxu0 0.0
        %2537 = vmatpush.msra.mxu0 0.0
        %v2538 = vand.u32 %v2443, 4294901760
        %2539 = vmatpush.msra.mxu0 %v2538
        %v2540 = vand.u32 %v2445, 4294901760
        %v2541 = vsub.f32 %v2445, %v2540
        %v2542 = vand.u32 %v2541, 4294901760
        %2543 = vmatmul.f32.gmra.mxu0 %v2542
        %v2544 = vpop.f32.mrf.mxu0
        %v2545 = vadd.f32 %v2521, %v2544
        %2546 = vdwg.mxu0
        %2547 = vmatpush.msra.mxu0 0.0
        %2548 = vmatpush.msra.mxu0 0.0
        %2549 = vmatpush.msra.mxu0 0.0
        %2550 = vmatpush.msra.mxu0 0.0
        %2551 = vmatpush.msra.mxu0 0.0
        %2552 = vmatpush.msra.mxu0 0.0
        %2553 = vmatpush.msra.mxu0 0.0
        %2554 = vmatpush.msra.mxu0 0.0
        %2555 = vmatpush.msra.mxu0 0.0
        %2556 = vmatpush.msra.mxu0 0.0
        %2557 = vmatpush.msra.mxu0 0.0
        %2558 = vmatpush.msra.mxu0 0.0
        %2559 = vmatpush.msra.mxu0 0.0
        %2560 = vmatpush.msra.mxu0 0.0
        %2561 = vmatpush.msra.mxu0 0.0
        %v2562 = vand.u32 %v2443, 4294901760
        %v2563 = vsub.f32 %v2443, %v2562
        %v2564 = vand.u32 %v2563, 4294901760
        %2565 = vmatpush.msra.mxu0 %v2564
        %v2566 = vand.u32 %v2445, 4294901760
        %2567 = vmatmul.f32.gmra.mxu0 %v2566
        %v2568 = vpop.f32.mrf.mxu0
        %v2569 = vadd.f32 %v2545, %v2568
        %2570 = vdwg.mxu0
        %2571 = vmatpush.msra.mxu0 0.0
        %2572 = vmatpush.msra.mxu0 0.0
        %2573 = vmatpush.msra.mxu0 0.0
        %2574 = vmatpush.msra.mxu0 0.0
        %2575 = vmatpush.msra.mxu0 0.0
        %2576 = vmatpush.msra.mxu0 0.0
        %2577 = vmatpush.msra.mxu0 0.0
        %2578 = vmatpush.msra.mxu0 0.0
        %2579 = vmatpush.msra.mxu0 0.0
        %2580 = vmatpush.msra.mxu0 0.0
        %2581 = vmatpush.msra.mxu0 0.0
        %2582 = vmatpush.msra.mxu0 0.0
        %2583 = vmatpush.msra.mxu0 0.0
        %2584 = vmatpush.msra.mxu0 0.0
        %2585 = vmatpush.msra.mxu0 0.0
        %v2586 = vand.u32 %v2443, 4294901760
        %2587 = vmatpush.msra.mxu0 %v2586
        %v2588 = vand.u32 %v2445, 4294901760
        %2589 = vmatmul.f32.gmra.mxu0 %v2588
        %v2590 = vpop.f32.mrf.mxu0
        %v2591 = vadd.f32 %v2569, %v2590
        %2592 = vdwg.mxu0
        %v2593 = vadd.f32 %v2441, %v2591
        %v2594 = vld [vmem:[%s5] sm:$0x1]
        %v2596 = vperm.slane %v2594, 0
        %v2598 = vadd.f32 %v2593, %v2596
        %v2599 = vadd.f32 %v671, %v2598
        %v2600 = vld [vmem:[%s10] sm:$0x1]
        %v2601 = vld [vmem:[%s11] sm:$0x1]
        %vm2602 = vcmask 261120
        %v2603 = vsel %vm2602, %v2599, 0.0
        %2604 = vadd.xlane.f32.xlu0 %v2603
        %v2605 = vpop.xlane.xlu0 %2604
        %v2606 = vrcp.pop 32.0
        %v2607 = vmul.f32 32.0, %v2606
        %v2608 = vsub.f32 1.0, %v2607
        %v2609 = vmul.f32 %v2606, %v2608
        %v2610 = vadd.f32 %v2606, %v2609
        %vm2611 = vweird.f32 %v2606
        %v2612 = vsel %vm2611, %v2606, %v2610
        %v2613 = vmul.f32 %v2605, %v2612
        %v2614 = vsub.f32 %v2599, %v2613
        %v2615 = vmul.f32 %v2614, %v2614
        %v2616 = vsel %vm2602, %v2615, 0.0
        %2617 = vadd.xlane.f32.xlu0 %v2616
        %v2618 = vpop.xlane.xlu0 %2617
        %v2619 = vmul.f32 %v2618, %v2612
        %v2620 = vadd.f32 %v2619, 1e-05
        %v2621 = vrsqrt.pop %v2620
        %v2622 = vmul.f32 %v2621, %v2620
        %v2623 = vmul.f32 %v2622, %v2621
        %v2624 = vmul.f32 0.5, %v2623
        %v2625 = vsub.f32 1.5, %v2624
        %v2626 = vmul.f32 %v2621, %v2625
        %vm2627 = vweird.f32 %v2620
        %vm2628 = vweird.f32 %v2621
        %vm2629 = vmor %vm2627, %vm2628
        %v2630 = vsel %vm2629, %v2621, %v2626
        %v2631 = vmul.f32 %v2614, %v2630
        %v2633 = vperm.slane %v2600, 0
        %v2635 = vmul.f32 %v2631, %v2633
        %v2637 = vperm.slane %v2601, 0
        %v2639 = vadd.f32 %v2635, %v2637
        %v2640 = vld [vmem:[#allocation8] sm:$0xff]
        %v2641 = vld [vmem:[#allocation8 + $0x8] sm:$0xff]
        %v2642 = vld [vmem:[#allocation8 + $0x10] sm:$0xff]
        %v2643 = vld [vmem:[#allocation8 + $0x18] sm:$0xff]
        %v2644 = vld [vmem:[%s7] sm:$0x1]
        %v2646 = vperm.slane %v2644, 0
        %v2649 = vsel %vm2602, %v2639, 0
        %2651 = vmatpush.msra.mxu0 0.0
        %2652 = vmatpush.msra.mxu0 0.0
        %2653 = vmatpush.msra.mxu0 0.0
        %2654 = vmatpush.msra.mxu0 0.0
        %2655 = vmatpush.msra.mxu0 0.0
        %2656 = vmatpush.msra.mxu0 0.0
        %2657 = vmatpush.msra.mxu0 0.0
        %2658 = vmatpush.msra.mxu0 0.0
        %2659 = vmatpush.msra.mxu0 0.0
        %2660 = vmatpush.msra.mxu0 0.0
        %2661 = vmatpush.msra.mxu0 0.0
        %2662 = vmatpush.msra.mxu0 0.0
        %v2663 = vand.u32 %v2643, 4294901760
        %2664 = vmatpush.msra.mxu0 %v2663
        %v2665 = vand.u32 %v2642, 4294901760
        %2666 = vmatpush.msra.mxu0 %v2665
        %v2667 = vand.u32 %v2641, 4294901760
        %2668 = vmatpush.msra.mxu0 %v2667
        %v2669 = vand.u32 %v2640, 4294901760
        %2670 = vmatpush.msra.mxu0 %v2669
        %v2671 = vand.u32 %v2649, 4294901760
        %v2672 = vsub.f32 %v2649, %v2671
        %v2673 = vand.u32 %v2672, 4294901760
        %v2674 = vsub.f32 %v2672, %v2673
        %v2675 = vand.u32 %v2674, 4294901760
        %2676 = vmatmul.f32.gmra.mxu0 %v2675
        %v2677 = vpop.f32.mrf.mxu0
        %v2678 = vadd.f32 %v2646, %v2677
        %2679 = vdwg.mxu0
        %2680 = vmatpush.msra.mxu0 0.0
        %2681 = vmatpush.msra.mxu0 0.0
        %2682 = vmatpush.msra.mxu0 0.0
        %2683 = vmatpush.msra.mxu0 0.0
        %2684 = vmatpush.msra.mxu0 0.0
        %2685 = vmatpush.msra.mxu0 0.0
        %2686 = vmatpush.msra.mxu0 0.0
        %2687 = vmatpush.msra.mxu0 0.0
        %2688 = vmatpush.msra.mxu0 0.0
        %2689 = vmatpush.msra.mxu0 0.0
        %2690 = vmatpush.msra.mxu0 0.0
        %2691 = vmatpush.msra.mxu0 0.0
        %v2692 = vand.u32 %v2643, 4294901760
        %v2693 = vsub.f32 %v2643, %v2692
        %v2694 = vand.u32 %v2693, 4294901760
        %v2695 = vsub.f32 %v2693, %v2694
        %v2696 = vand.u32 %v2695, 4294901760
        %2697 = vmatpush.msra.mxu0 %v2696
        %v2698 = vand.u32 %v2642, 4294901760
        %v2699 = vsub.f32 %v2642, %v2698
        %v2700 = vand.u32 %v2699, 4294901760
        %v2701 = vsub.f32 %v2699, %v2700
        %v2702 = vand.u32 %v2701, 4294901760
        %2703 = vmatpush.msra.mxu0 %v2702
        %v2704 = vand.u32 %v2641, 4294901760
        %v2705 = vsub.f32 %v2641, %v2704
        %v2706 = vand.u32 %v2705, 4294901760
        %v2707 = vsub.f32 %v2705, %v2706
        %v2708 = vand.u32 %v2707, 4294901760
        %2709 = vmatpush.msra.mxu0 %v2708
        %v2710 = vand.u32 %v2640, 4294901760
        %v2711 = vsub.f32 %v2640, %v2710
        %v2712 = vand.u32 %v2711, 4294901760
        %v2713 = vsub.f32 %v2711, %v2712
        %v2714 = vand.u32 %v2713, 4294901760
        %2715 = vmatpush.msra.mxu0 %v2714
        %v2716 = vand.u32 %v2649, 4294901760
        %2717 = vmatmul.f32.gmra.mxu0 %v2716
        %v2718 = vpop.f32.mrf.mxu0
        %v2719 = vadd.f32 %v2678, %v2718
        %2720 = vdwg.mxu0
        %2721 = vmatpush.msra.mxu0 0.0
        %2722 = vmatpush.msra.mxu0 0.0
        %2723 = vmatpush.msra.mxu0 0.0
        %2724 = vmatpush.msra.mxu0 0.0
        %2725 = vmatpush.msra.mxu0 0.0
        %2726 = vmatpush.msra.mxu0 0.0
        %2727 = vmatpush.msra.mxu0 0.0
        %2728 = vmatpush.msra.mxu0 0.0
        %2729 = vmatpush.msra.mxu0 0.0
        %2730 = vmatpush.msra.mxu0 0.0
        %2731 = vmatpush.msra.mxu0 0.0
        %2732 = vmatpush.msra.mxu0 0.0
        %v2733 = vand.u32 %v2643, 4294901760
        %v2734 = vsub.f32 %v2643, %v2733
        %2735 = vmatpush.msra.mxu0 %v2734
        %v2736 = vand.u32 %v2642, 4294901760
        %v2737 = vsub.f32 %v2642, %v2736
        %2738 = vmatpush.msra.mxu0 %v2737
        %v2739 = vand.u32 %v2641, 4294901760
        %v2740 = vsub.f32 %v2641, %v2739
        %2741 = vmatpush.msra.mxu0 %v2740
        %v2742 = vand.u32 %v2640, 4294901760
        %v2743 = vsub.f32 %v2640, %v2742
        %2744 = vmatpush.msra.mxu0 %v2743
        %v2745 = vand.u32 %v2649, 4294901760
        %v2746 = vsub.f32 %v2649, %v2745
        %2747 = vmatmul.f32.gmra.mxu0 %v2746
        %v2748 = vpop.f32.mrf.mxu0
        %v2749 = vadd.f32 %v2719, %v2748
        %2750 = vdwg.mxu0
        %2751 = vmatpush.msra.mxu0 0.0
        %2752 = vmatpush.msra.mxu0 0.0
        %2753 = vmatpush.msra.mxu0 0.0
        %2754 = vmatpush.msra.mxu0 0.0
        %2755 = vmatpush.msra.mxu0 0.0
        %2756 = vmatpush.msra.mxu0 0.0
        %2757 = vmatpush.msra.mxu0 0.0
        %2758 = vmatpush.msra.mxu0 0.0
        %2759 = vmatpush.msra.mxu0 0.0
        %2760 = vmatpush.msra.mxu0 0.0
        %2761 = vmatpush.msra.mxu0 0.0
        %2762 = vmatpush.msra.mxu0 0.0
        %v2763 = vand.u32 %v2643, 4294901760
        %2764 = vmatpush.msra.mxu0 %v2763
        %v2765 = vand.u32 %v2642, 4294901760
        %2766 = vmatpush.msra.mxu0 %v2765
        %v2767 = vand.u32 %v2641, 4294901760
        %2768 = vmatpush.msra.mxu0 %v2767
        %v2769 = vand.u32 %v2640, 4294901760
        %2770 = vmatpush.msra.mxu0 %v2769
        %v2771 = vand.u32 %v2649, 4294901760
        %v2772 = vsub.f32 %v2649, %v2771
        %v2773 = vand.u32 %v2772, 4294901760
        %2774 = vmatmul.f32.gmra.mxu0 %v2773
        %v2775 = vpop.f32.mrf.mxu0
        %v2776 = vadd.f32 %v2749, %v2775
        %2777 = vdwg.mxu0
        %2778 = vmatpush.msra.mxu0 0.0
        %2779 = vmatpush.msra.mxu0 0.0
        %2780 = vmatpush.msra.mxu0 0.0
        %2781 = vmatpush.msra.mxu0 0.0
        %2782 = vmatpush.msra.mxu0 0.0
        %2783 = vmatpush.msra.mxu0 0.0
        %2784 = vmatpush.msra.mxu0 0.0
        %2785 = vmatpush.msra.mxu0 0.0
        %2786 = vmatpush.msra.mxu0 0.0
        %2787 = vmatpush.msra.mxu0 0.0
        %2788 = vmatpush.msra.mxu0 0.0
        %2789 = vmatpush.msra.mxu0 0.0
        %v2790 = vand.u32 %v2643, 4294901760
        %v2791 = vsub.f32 %v2643, %v2790
        %v2792 = vand.u32 %v2791, 4294901760
        %2793 = vmatpush.msra.mxu0 %v2792
        %v2794 = vand.u32 %v2642, 4294901760
        %v2795 = vsub.f32 %v2642, %v2794
        %v2796 = vand.u32 %v2795, 4294901760
        %2797 = vmatpush.msra.mxu0 %v2796
        %v2798 = vand.u32 %v2641, 4294901760
        %v2799 = vsub.f32 %v2641, %v2798
        %v2800 = vand.u32 %v2799, 4294901760
        %2801 = vmatpush.msra.mxu0 %v2800
        %v2802 = vand.u32 %v2640, 4294901760
        %v2803 = vsub.f32 %v2640, %v2802
        %v2804 = vand.u32 %v2803, 4294901760
        %2805 = vmatpush.msra.mxu0 %v2804
        %v2806 = vand.u32 %v2649, 4294901760
        %2807 = vmatmul.f32.gmra.mxu0 %v2806
        %v2808 = vpop.f32.mrf.mxu0
        %v2809 = vadd.f32 %v2776, %v2808
        %2810 = vdwg.mxu0
        %2811 = vmatpush.msra.mxu0 0.0
        %2812 = vmatpush.msra.mxu0 0.0
        %2813 = vmatpush.msra.mxu0 0.0
        %2814 = vmatpush.msra.mxu0 0.0
        %2815 = vmatpush.msra.mxu0 0.0
        %2816 = vmatpush.msra.mxu0 0.0
        %2817 = vmatpush.msra.mxu0 0.0
        %2818 = vmatpush.msra.mxu0 0.0
        %2819 = vmatpush.msra.mxu0 0.0
        %2820 = vmatpush.msra.mxu0 0.0
        %2821 = vmatpush.msra.mxu0 0.0
        %2822 = vmatpush.msra.mxu0 0.0
        %v2823 = vand.u32 %v2643, 4294901760
        %2824 = vmatpush.msra.mxu0 %v2823
        %v2825 = vand.u32 %v2642, 4294901760
        %2826 = vmatpush.msra.mxu0 %v2825
        %v2827 = vand.u32 %v2641, 4294901760
        %2828 = vmatpush.msra.mxu0 %v2827
        %v2829 = vand.u32 %v2640, 4294901760
        %2830 = vmatpush.msra.mxu0 %v2829
        %v2831 = vand.u32 %v2649, 4294901760
        %2832 = vmatmul.f32.gmra.mxu0 %v2831
        %v2833 = vpop.f32.mrf.mxu0
        %v2834 = vadd.f32 %v2809, %v2833
        %2835 = vdwg.mxu0
        %v2836 = vmax.f32 %v2834, 0.0
        %v2837 = vld [vmem:[%s8] sm:$0xff]
        %v2838 = vld [vmem:[%s8 + $0x8] sm:$0xff]
        %v2839 = vld [vmem:[%s8 + $0x10] sm:$0xff]
        %v2840 = vld [vmem:[%s8 + $0x18] sm:$0xff]
        %v2841 = vld [vmem:[%s8 + $0x20] sm:$0xff]
        %v2842 = vld [vmem:[%s8 + $0x28] sm:$0xff]
        %v2843 = vld [vmem:[%s8 + $0x30] sm:$0xff]
        %v2844 = vld [vmem:[%s8 + $0x38] sm:$0xff]
        %v2845 = vld [vmem:[%s9] sm:$0x1]
        %v2847 = vperm.slane %v2845, 0
        %vm2849 = vcmask 523264
        %v2851 = vsel %vm2849, %v2836, 0
        %2853 = vmatpush.msra.mxu0 0.0
        %2854 = vmatpush.msra.mxu0 0.0
        %2855 = vmatpush.msra.mxu0 0.0
        %2856 = vmatpush.msra.mxu0 0.0
        %2857 = vmatpush.msra.mxu0 0.0
        %2858 = vmatpush.msra.mxu0 0.0
        %2859 = vmatpush.msra.mxu0 0.0
        %2860 = vmatpush.msra.mxu0 0.0
        %v2861 = vand.u32 %v2844, 4294901760
        %2862 = vmatpush.msra.mxu0 %v2861
        %v2863 = vand.u32 %v2843, 4294901760
        %2864 = vmatpush.msra.mxu0 %v2863
        %v2865 = vand.u32 %v2842, 4294901760
        %2866 = vmatpush.msra.mxu0 %v2865
        %v2867 = vand.u32 %v2841, 4294901760
        %2868 = vmatpush.msra.mxu0 %v2867
        %v2869 = vand.u32 %v2840, 4294901760
        %2870 = vmatpush.msra.mxu0 %v2869
        %v2871 = vand.u32 %v2839, 4294901760
        %2872 = vmatpush.msra.mxu0 %v2871
        %v2873 = vand.u32 %v2838, 4294901760
        %2874 = vmatpush.msra.mxu0 %v2873
        %v2875 = vand.u32 %v2837, 4294901760
        %2876 = vmatpush.msra.mxu0 %v2875
        %v2877 = vand.u32 %v2851, 4294901760
        %v2878 = vsub.f32 %v2851, %v2877
        %v2879 = vand.u32 %v2878, 4294901760
        %v2880 = vsub.f32 %v2878, %v2879
        %v2881 = vand.u32 %v2880, 4294901760
        %2882 = vmatmul.f32.gmra.mxu0 %v2881
        %v2883 = vpop.f32.mrf.mxu0
        %v2884 = vadd.f32 %v2847, %v2883
        %2885 = vdwg.mxu0
        %2886 = vmatpush.msra.mxu0 0.0
        %2887 = vmatpush.msra.mxu0 0.0
        %2888 = vmatpush.msra.mxu0 0.0
        %2889 = vmatpush.msra.mxu0 0.0
        %2890 = vmatpush.msra.mxu0 0.0
        %2891 = vmatpush.msra.mxu0 0.0
        %2892 = vmatpush.msra.mxu0 0.0
        %2893 = vmatpush.msra.mxu0 0.0
        %v2894 = vand.u32 %v2844, 4294901760
        %v2895 = vsub.f32 %v2844, %v2894
        %v2896 = vand.u32 %v2895, 4294901760
        %v2897 = vsub.f32 %v2895, %v2896
        %v2898 = vand.u32 %v2897, 4294901760
        %2899 = vmatpush.msra.mxu0 %v2898
        %v2900 = vand.u32 %v2843, 4294901760
        %v2901 = vsub.f32 %v2843, %v2900
        %v2902 = vand.u32 %v2901, 4294901760
        %v2903 = vsub.f32 %v2901, %v2902
        %v2904 = vand.u32 %v2903, 4294901760
        %2905 = vmatpush.msra.mxu0 %v2904
        %v2906 = vand.u32 %v2842, 4294901760
        %v2907 = vsub.f32 %v2842, %v2906
        %v2908 = vand.u32 %v2907, 4294901760
        %v2909 = vsub.f32 %v2907, %v2908
        %v2910 = vand.u32 %v2909, 4294901760
        %2911 = vmatpush.msra.mxu0 %v2910
        %v2912 = vand.u32 %v2841, 4294901760
        %v2913 = vsub.f32 %v2841, %v2912
        %v2914 = vand.u32 %v2913, 4294901760
        %v2915 = vsub.f32 %v2913, %v2914
        %v2916 = vand.u32 %v2915, 4294901760
        %2917 = vmatpush.msra.mxu0 %v2916
        %v2918 = vand.u32 %v2840, 4294901760
        %v2919 = vsub.f32 %v2840, %v2918
        %v2920 = vand.u32 %v2919, 4294901760
        %v2921 = vsub.f32 %v2919, %v2920
        %v2922 = vand.u32 %v2921, 4294901760
        %2923 = vmatpush.msra.mxu0 %v2922
        %v2924 = vand.u32 %v2839, 4294901760
        %v2925 = vsub.f32 %v2839, %v2924
        %v2926 = vand.u32 %v2925, 4294901760
        %v2927 = vsub.f32 %v2925, %v2926
        %v2928 = vand.u32 %v2927, 4294901760
        %2929 = vmatpush.msra.mxu0 %v2928
        %v2930 = vand.u32 %v2838, 4294901760
        %v2931 = vsub.f32 %v2838, %v2930
        %v2932 = vand.u32 %v2931, 4294901760
        %v2933 = vsub.f32 %v2931, %v2932
        %v2934 = vand.u32 %v2933, 4294901760
        %2935 = vmatpush.msra.mxu0 %v2934
        %v2936 = vand.u32 %v2837, 4294901760
        %v2937 = vsub.f32 %v2837, %v2936
        %v2938 = vand.u32 %v2937, 4294901760
        %v2939 = vsub.f32 %v2937, %v2938
        %v2940 = vand.u32 %v2939, 4294901760
        %2941 = vmatpush.msra.mxu0 %v2940
        %v2942 = vand.u32 %v2851, 4294901760
        %2943 = vmatmul.f32.gmra.mxu0 %v2942
        %v2944 = vpop.f32.mrf.mxu0
        %v2945 = vadd.f32 %v2884, %v2944
        %2946 = vdwg.mxu0
        %2947 = vmatpush.msra.mxu0 0.0
        %2948 = vmatpush.msra.mxu0 0.0
        %2949 = vmatpush.msra.mxu0 0.0
        %2950 = vmatpush.msra.mxu0 0.0
        %2951 = vmatpush.msra.mxu0 0.0
        %2952 = vmatpush.msra.mxu0 0.0
        %2953 = vmatpush.msra.mxu0 0.0
        %2954 = vmatpush.msra.mxu0 0.0
        %v2955 = vand.u32 %v2844, 4294901760
        %v2956 = vsub.f32 %v2844, %v2955
        %2957 = vmatpush.msra.mxu0 %v2956
        %v2958 = vand.u32 %v2843, 4294901760
        %v2959 = vsub.f32 %v2843, %v2958
        %2960 = vmatpush.msra.mxu0 %v2959
        %v2961 = vand.u32 %v2842, 4294901760
        %v2962 = vsub.f32 %v2842, %v2961
        %2963 = vmatpush.msra.mxu0 %v2962
        %v2964 = vand.u32 %v2841, 4294901760
        %v2965 = vsub.f32 %v2841, %v2964
        %2966 = vmatpush.msra.mxu0 %v2965
        %v2967 = vand.u32 %v2840, 4294901760
        %v2968 = vsub.f32 %v2840, %v2967
        %2969 = vmatpush.msra.mxu0 %v2968
        %v2970 = vand.u32 %v2839, 4294901760
        %v2971 = vsub.f32 %v2839, %v2970
        %2972 = vmatpush.msra.mxu0 %v2971
        %v2973 = vand.u32 %v2838, 4294901760
        %v2974 = vsub.f32 %v2838, %v2973
        %2975 = vmatpush.msra.mxu0 %v2974
        %v2976 = vand.u32 %v2837, 4294901760
        %v2977 = vsub.f32 %v2837, %v2976
        %2978 = vmatpush.msra.mxu0 %v2977
        %v2979 = vand.u32 %v2851, 4294901760
        %v2980 = vsub.f32 %v2851, %v2979
        %2981 = vmatmul.f32.gmra.mxu0 %v2980
        %v2982 = vpop.f32.mrf.mxu0
        %v2983 = vadd.f32 %v2945, %v2982
        %2984 = vdwg.mxu0
        %2985 = vmatpush.msra.mxu0 0.0
        %2986 = vmatpush.msra.mxu0 0.0
        %2987 = vmatpush.msra.mxu0 0.0
        %2988 = vmatpush.msra.mxu0 0.0
        %2989 = vmatpush.msra.mxu0 0.0
        %2990 = vmatpush.msra.mxu0 0.0
        %2991 = vmatpush.msra.mxu0 0.0
        %2992 = vmatpush.msra.mxu0 0.0
        %v2993 = vand.u32 %v2844, 4294901760
        %2994 = vmatpush.msra.mxu0 %v2993
        %v2995 = vand.u32 %v2843, 4294901760
        %2996 = vmatpush.msra.mxu0 %v2995
        %v2997 = vand.u32 %v2842, 4294901760
        %2998 = vmatpush.msra.mxu0 %v2997
        %v2999 = vand.u32 %v2841, 4294901760
        %3000 = vmatpush.msra.mxu0 %v2999
        %v3001 = vand.u32 %v2840, 4294901760
        %3002 = vmatpush.msra.mxu0 %v3001
        %v3003 = vand.u32 %v2839, 4294901760
        %3004 = vmatpush.msra.mxu0 %v3003
        %v3005 = vand.u32 %v2838, 4294901760
        %3006 = vmatpush.msra.mxu0 %v3005
        %v3007 = vand.u32 %v2837, 4294901760
        %3008 = vmatpush.msra.mxu0 %v3007
        %v3009 = vand.u32 %v2851, 4294901760
        %v3010 = vsub.f32 %v2851, %v3009
        %v3011 = vand.u32 %v3010, 4294901760
        %3012 = vmatmul.f32.gmra.mxu0 %v3011
        %v3013 = vpop.f32.mrf.mxu0
        %v3014 = vadd.f32 %v2983, %v3013
        %3015 = vdwg.mxu0
        %3016 = vmatpush.msra.mxu0 0.0
        %3017 = vmatpush.msra.mxu0 0.0
        %3018 = vmatpush.msra.mxu0 0.0
        %3019 = vmatpush.msra.mxu0 0.0
        %3020 = vmatpush.msra.mxu0 0.0
        %3021 = vmatpush.msra.mxu0 0.0
        %3022 = vmatpush.msra.mxu0 0.0
        %3023 = vmatpush.msra.mxu0 0.0
        %v3024 = vand.u32 %v2844, 4294901760
        %v3025 = vsub.f32 %v2844, %v3024
        %v3026 = vand.u32 %v3025, 4294901760
        %3027 = vmatpush.msra.mxu0 %v3026
        %v3028 = vand.u32 %v2843, 4294901760
        %v3029 = vsub.f32 %v2843, %v3028
        %v3030 = vand.u32 %v3029, 4294901760
        %3031 = vmatpush.msra.mxu0 %v3030
        %v3032 = vand.u32 %v2842, 4294901760
        %v3033 = vsub.f32 %v2842, %v3032
        %v3034 = vand.u32 %v3033, 4294901760
        %3035 = vmatpush.msra.mxu0 %v3034
        %v3036 = vand.u32 %v2841, 4294901760
        %v3037 = vsub.f32 %v2841, %v3036
        %v3038 = vand.u32 %v3037, 4294901760
        %3039 = vmatpush.msra.mxu0 %v3038
        %v3040 = vand.u32 %v2840, 4294901760
        %v3041 = vsub.f32 %v2840, %v3040
        %v3042 = vand.u32 %v3041, 4294901760
        %3043 = vmatpush.msra.mxu0 %v3042
        %v3044 = vand.u32 %v2839, 4294901760
        %v3045 = vsub.f32 %v2839, %v3044
        %v3046 = vand.u32 %v3045, 4294901760
        %3047 = vmatpush.msra.mxu0 %v3046
        %v3048 = vand.u32 %v2838, 4294901760
        %v3049 = vsub.f32 %v2838, %v3048
        %v3050 = vand.u32 %v3049, 4294901760
        %3051 = vmatpush.msra.mxu0 %v3050
        %v3052 = vand.u32 %v2837, 4294901760
        %v3053 = vsub.f32 %v2837, %v3052
        %v3054 = vand.u32 %v3053, 4294901760
        %3055 = vmatpush.msra.mxu0 %v3054
        %v3056 = vand.u32 %v2851, 4294901760
        %3057 = vmatmul.f32.gmra.mxu0 %v3056
        %v3058 = vpop.f32.mrf.mxu0
        %v3059 = vadd.f32 %v3014, %v3058
        %3060 = vdwg.mxu0
        %3061 = vmatpush.msra.mxu0 0.0
        %3062 = vmatpush.msra.mxu0 0.0
        %3063 = vmatpush.msra.mxu0 0.0
        %3064 = vmatpush.msra.mxu0 0.0
        %3065 = vmatpush.msra.mxu0 0.0
        %3066 = vmatpush.msra.mxu0 0.0
        %3067 = vmatpush.msra.mxu0 0.0
        %3068 = vmatpush.msra.mxu0 0.0
        %v3069 = vand.u32 %v2844, 4294901760
        %3070 = vmatpush.msra.mxu0 %v3069
        %v3071 = vand.u32 %v2843, 4294901760
        %3072 = vmatpush.msra.mxu0 %v3071
        %v3073 = vand.u32 %v2842, 4294901760
        %3074 = vmatpush.msra.mxu0 %v3073
        %v3075 = vand.u32 %v2841, 4294901760
        %3076 = vmatpush.msra.mxu0 %v3075
        %v3077 = vand.u32 %v2840, 4294901760
        %3078 = vmatpush.msra.mxu0 %v3077
        %v3079 = vand.u32 %v2839, 4294901760
        %3080 = vmatpush.msra.mxu0 %v3079
        %v3081 = vand.u32 %v2838, 4294901760
        %3082 = vmatpush.msra.mxu0 %v3081
        %v3083 = vand.u32 %v2837, 4294901760
        %3084 = vmatpush.msra.mxu0 %v3083
        %v3085 = vand.u32 %v2851, 4294901760
        %3086 = vmatmul.f32.gmra.mxu0 %v3085
        %v3087 = vpop.f32.mrf.mxu0
        %v3088 = vadd.f32 %v3059, %v3087
        %3089 = vdwg.mxu0
        %v3090 = vadd.f32 %v2639, %v3088
        %v3091 = vld [vmem:[%s12] sm:$0x1]
        %v3092 = vld [vmem:[%s13] sm:$0x1]
        %v3093 = vsel %vm2602, %v3090, 0.0
        %3094 = vadd.xlane.f32.xlu0 %v3093
        %v3095 = vpop.xlane.xlu0 %3094
        %v3096 = vmul.f32 %v3095, %v2612
        %v3097 = vsub.f32 %v3090, %v3096
        %v3098 = vmul.f32 %v3097, %v3097
        %v3099 = vsel %vm2602, %v3098, 0.0
        %3100 = vadd.xlane.f32.xlu0 %v3099
        %v3101 = vpop.xlane.xlu0 %3100
        %v3102 = vmul.f32 %v3101, %v2612
        %v3103 = vadd.f32 %v3102, 1e-05
        %v3104 = vrsqrt.pop %v3103
        %v3105 = vmul.f32 %v3104, %v3103
        %v3106 = vmul.f32 %v3105, %v3104
        %v3107 = vmul.f32 0.5, %v3106
        %v3108 = vsub.f32 1.5, %v3107
        %v3109 = vmul.f32 %v3104, %v3108
        %vm3110 = vweird.f32 %v3103
        %vm3111 = vweird.f32 %v3104
        %vm3112 = vmor %vm3110, %vm3111
        %v3113 = vsel %vm3112, %v3104, %v3109
        %v3114 = vmul.f32 %v3097, %v3113
        %v3116 = vperm.slane %v3091, 0
        %v3118 = vmul.f32 %v3114, %v3116
        %v3120 = vperm.slane %v3092, 0
        %v3122 = vadd.f32 %v3118, %v3120
        %3123 = vst.msk [vmem:[%s655] sm:$0xff] %vm2602, %v3122
        %s3124 = sand.u32 %s380, 1
        %s3125 = scalar_lea.sflag [#allocation4], %s3124
        %s3126 = sand.u32 %s380, 1
        %s3127 = smul.addr %s3126, 8
        %s3128 = scalar_lea.vmem [#allocation10], %s3127
        %s3129 = sand.u32 %s408, 1
        %s3130 = scalar_lea.sflag [#allocation12], %s3129
        %s3131 = sand.u32 %s408, 1
        %s3132 = smul.addr %s3131, 32
        %s3133 = scalar_lea.vmem [#allocation11], %s3132
        // Predicated region
        $region93: #{tpu_custom_call.1} parent=75 // pred_check
          %p3134 = pneg %p390
        $region94: #{tpu_custom_call.1} parent=75 // pred_check_branch
          %3136 = sbr.rel (%p3134) target = $region96
        $region95: #{tpu_custom_call.1} parent=75 // pred_region
          %3138 = vsyncadd %s3125, 0
          %s3139 = sadd.s32 %s45, %s44
          %s3140 = smul.addr %s3139, 8
          %s3141 = scalar_lea.hbm %s14, %s3140
          %s3143 = sshll.u32 %s3128, 4
          %s3144 = int_to_ptr.vmem [resolvable:$true] %s3143
          %s3145 = sshll.u32 %s3141, 4
          %s3146 = int_to_ptr.hbm [resolvable:$true] %s3145
          %3148 = dma.vmem_to_hbm [thread:$0]  %s3144, 128, %s3146, %s3125
        $region96: #{tpu_custom_call.1} parent=75 // pred_fallthru
          _
        // Predicated region
        $region97: #{tpu_custom_call.1} parent=75 // pred_check
          %p3149 = pneg %p418
        $region98: #{tpu_custom_call.1} parent=75 // pred_check_branch
          %3151 = sbr.rel (%p3149) target = $region100
        $region99: #{tpu_custom_call.1} parent=75 // pred_region
          %3153 = vsyncadd %s3130, 0
          %s3154 = smul.addr %s44, 4
          %s3155 = sadd.s32 %s45, %s3154
          %s3156 = smul.addr %s3155, 8
          %s3157 = scalar_lea.hbm %s15, %s3156
          %s3158 = sshll.u32 %s3133, 4
          %s3159 = int_to_ptr.vmem [resolvable:$true] %s3158
          %s3160 = sshll.u32 %s3157, 4
          %s3161 = int_to_ptr.hbm [resolvable:$true] %s3160
          %3166 = dma.vmem_to_hbm [thread:$0]  %s3159, 512, %s3161, %s3130, 128, 128, 8
        $region100: #{tpu_custom_call.1} parent=75 // pred_fallthru
          _
      $region76: #{tpu_custom_call.1} parent=5 // pred_fallthru
        _
      %p3167 = scmp.le.s32.totalorder 2, %s35
      // Predicated region
      $region101: #{tpu_custom_call.1} parent=5 // pred_check
        %p3168 = pneg %p3167
      $region102: #{tpu_custom_call.1} parent=5 // pred_check_branch
        %3170 = sbr.rel (%p3168) target = $region104
      $region103: #{tpu_custom_call.1} parent=5 // pred_region
        %s3171 = ssub.s32 %s35, 2
        // Predicated region
        $region105: #{tpu_custom_call.1} parent=103 // pred_check
          %p3172 = pneg %p396
        $region106: #{tpu_custom_call.1} parent=103 // pred_check_branch
          %3174 = sbr.rel (%p3172) target = $region108
        $region107: #{tpu_custom_call.1} parent=103 // pred_region
          %s3175 = sand.u32 %s381, 1
          %s3176 = scalar_lea.sflag [#allocation4], %s3175
          %s3177 = sand.u32 %s381, 1
          %s3178 = smul.addr %s3177, 8
          %s3179 = scalar_lea.vmem [#allocation10], %s3178
          %3181 = dma.done %s3176, 128
        $region108: #{tpu_custom_call.1} parent=103 // pred_fallthru
          _
        // Predicated region
        $region109: #{tpu_custom_call.1} parent=103 // pred_check
          %p3182 = pneg %p424
        $region110: #{tpu_custom_call.1} parent=103 // pred_check_branch
          %3184 = sbr.rel (%p3182) target = $region112
        $region111: #{tpu_custom_call.1} parent=103 // pred_region
          %s3185 = sand.u32 %s409, 1
          %s3186 = scalar_lea.sflag [#allocation12], %s3185
          %s3187 = sand.u32 %s409, 1
          %s3188 = smul.addr %s3187, 32
          %s3189 = scalar_lea.vmem [#allocation11], %s3188
          %3191 = dma.done %s3186, 512
        $region112: #{tpu_custom_call.1} parent=103 // pred_fallthru
          _
      $region104: #{tpu_custom_call.1} parent=5 // pred_fallthru
        _
    $region6: #{tpu_custom_call.1} parent=1 // loop_footer
      %s39 = sadd.s32 1, %s35
    $region7: #{tpu_custom_call.1} parent=1 // loop_footer_branch
      %34 = sbr.rel target = $region3
    $region8: #{tpu_custom_call.1} parent=1 // loop_exit
      _
    %3192 = vsyncpa [#allocation3], 1
    %s3193 = scalar_lea.sflag [#allocation3], 1
    %3194 = vsyncpa %s3193, 1
    %3195 = vsyncpa [#allocation6], 1
    %s3196 = scalar_lea.sflag [#allocation6], 1
    %3197 = vsyncpa %s3196, 1
    %3198 = vsyncpa [#allocation9], 1
    %3199 = vsyncpa [#allocation4], 1
    %s3200 = scalar_lea.sflag [#allocation4], 1
    %3201 = vsyncpa %s3200, 1
    %3202 = vsyncpa [#allocation12], 1
    %s3203 = scalar_lea.sflag [#allocation12], 1
    %3204 = vsyncpa %s3203, 1

</llo_original>
